<compile_context>
chip_gen: v7x
topology: tpu7x:2x2x1
jax: 0.10.0
libtpu: 0.0.40
codegen_flags: <defaults>
</compile_context>

<pallas_src>
import functools

import jax
import jax.numpy as jnp
from jax.experimental import pallas as pl
from jax.experimental.pallas import tpu as pltpu


# ---------------------------------------------------------------------------
# Pallas kernels
# ---------------------------------------------------------------------------
def conv_phase_kernel(x_ref, w_ref, b_ref, o_ref, s_ref):
    """Phase-folded 'upsample-x2 + 3x3 conv + bias' for one image / Cout tile.

    x_ref: (1, H+2, W+2, Cin)  bf16  zero-padded ORIGINAL-resolution input
    w_ref: (3, 3, Cin, Ct)     bf16  phase-folded weights, Ct = tile of 4*Cout
    b_ref: (1, Ct)             f32   bias (tiled over the 4 output parities)
    o_ref: (1, H*W, Ct)        f32   phase-stacked conv+bias output
    s_ref: (1, 2, Ct)          f32   per-(image, tile) BN stats [sum, sum_sq]
    """
    Cin = x_ref.shape[3]
    H = x_ref.shape[1] - 2
    W = x_ref.shape[2] - 2
    Ct = o_ref.shape[2]

    x = x_ref[0]                                        # small original-res tile
    acc = jnp.zeros((H * W, Ct), jnp.float32)
    for kh in range(3):
        for kw in range(3):
            patch = x[kh:kh + H, kw:kw + W, :].reshape(H * W, Cin)
            acc = acc + jnp.dot(patch, w_ref[kh, kw],
                                preferred_element_type=jnp.float32)
    acc = acc + b_ref[...]                              # (1, Ct) broadcast
    o_ref[0] = acc.astype(o_ref.dtype)

    # Partial BatchNorm statistics; reduced over N (and the 4 phase groups) in
    # XLA, so both grid axes stay fully parallel (megacore-friendly).
    s_ref[0, 0:1, :] = jnp.sum(acc, axis=0, keepdims=True)
    s_ref[0, 1:2, :] = jnp.sum(acc * acc, axis=0, keepdims=True)


def bn_relu_kernel(y_ref, scale_ref, shift_ref, o_ref):
    """Elementwise folded BatchNorm (scale/shift) + ReLU on lane-dense tiles."""
    o_ref[...] = jnp.maximum(
        y_ref[...] * scale_ref[...] + shift_ref[...], 0.0).astype(o_ref.dtype)


# ---------------------------------------------------------------------------
# Wrapper
# ---------------------------------------------------------------------------
def _phase_fold_matrix():
    # A[parity a, tap on padded original x, original 3x3 row tap].
    # nearest-x2 upsample + 3x3/pad=1 conv  ==  per output-row-parity a:
    #   a=0: x[i-1] gets w[0],        x[i] gets w[1]+w[2]
    #   a=1: x[i]   gets w[0]+w[1],   x[i+1] gets w[2]
    # (same fold applies independently to columns with parity b).
    return jnp.array(
        [[[1.0, 0.0, 0.0],
          [0.0, 1.0, 1.0],
          [0.0, 0.0, 0.0]],
         [[0.0, 0.0, 0.0],
          [1.0, 1.0, 0.0],
          [0.0, 0.0, 1.0]]], dtype=jnp.float32)


def _pick_tile(dim, candidates):
    for cand in candidates:
        if cand <= dim and dim % cand == 0:
            return cand
    return dim


@functools.partial(jax.jit, static_argnames=("eps",))
def up_conv_forward(x_nchw, w_oihw, b, gamma, beta, eps=1e-5):
    """Forward pass of the PyTorch `up_conv` module (training-mode BatchNorm)."""
    N, Cin, H, W = x_nchw.shape
    Cout = w_oihw.shape[0]
    C4 = 4 * Cout
    H2, W2 = 2 * H, 2 * W
    Hp, Wp = H + 2, W + 2

    # Phase-folded weights: (3, 3, Cin, a, b, Cout) -> (3, 3, Cin, 4*Cout).
    w_hwio = jnp.transpose(w_oihw, (2, 3, 1, 0)).astype(jnp.float32)
    A = _phase_fold_matrix()
    w_eff = jnp.einsum('aHh,bWw,hwic->HWiabc', A, A, w_hwio)
    w_eff = w_eff.reshape(3, 3, Cin, C4).astype(jnp.bfloat16)
    bias4 = jnp.tile(b.astype(jnp.float32), 4).reshape(1, C4)

    # Original-resolution NHWC input, zero-padded by 1 (no upsample in HBM).
    x_nhwc = jnp.transpose(x_nchw, (0, 2, 3, 1))
    x_pad = jnp.pad(x_nhwc, ((0, 0), (1, 1), (1, 1), (0, 0))).astype(jnp.bfloat16)

    # Output-channel tile: MXU/lane-friendly multiple of 128 that bounds the
    # double-buffered weight block; falls back to full C4 for tiny layers.
    ct = _pick_tile(C4, (256, 128))
    num_ct = C4 // ct

    # NOTE: at production U-Net spatial sizes an extra H-tile grid axis (halo
    # rows) would bound the per-image block as well; at these shapes a whole
    # image per block is far below the VMEM limit.
    conv_out, stats = pl.pallas_call(
        conv_phase_kernel,
        out_shape=(
            jax.ShapeDtypeStruct((N, H * W, C4), jnp.float32),
            jax.ShapeDtypeStruct((N, 2, C4), jnp.float32),
        ),
        # Weight-stationary order: the Cout-tile (outer) stays resident while
        # the batch (inner) streams, so each weight tile is DMA'd once.
        grid=(num_ct, N),
        in_specs=[
            pl.BlockSpec((1, Hp, Wp, Cin), lambda j, n: (n, 0, 0, 0)),
            pl.BlockSpec((3, 3, Cin, ct), lambda j, n: (0, 0, 0, j)),
            pl.BlockSpec((1, ct), lambda j, n: (0, j)),
        ],
        out_specs=(
            pl.BlockSpec((1, H * W, ct), lambda j, n: (n, 0, j)),
            pl.BlockSpec((1, 2, ct), lambda j, n: (n, 0, j)),
        ),
        compiler_params=pltpu.CompilerParams(
            dimension_semantics=("parallel", "parallel"),
            vmem_limit_bytes=32 * 1024 * 1024),
    )(x_pad, w_eff, bias4)

    # Training-mode BatchNorm (biased batch variance) folded to scale/shift.
    s = jnp.sum(stats, axis=0).reshape(2, 4, Cout).sum(axis=1)      # (2, Cout)
    cnt = jnp.float32(N * H2 * W2)
    mean = s[0] / cnt
    var = s[1] / cnt - mean * mean
    scale = gamma.astype(jnp.float32) * jax.lax.rsqrt(var + eps)
    shift = beta.astype(jnp.float32) - mean * scale

    # Lane-dense elementwise BN + ReLU, in place (aliased with its input).
    rows = N * H
    lanes = W * C4                                      # multiple of 128 here
    l_tile = _pick_tile(lanes, (4096, 2048, 1024, 512, 256, 128))
    max_rows = max(8, (1 << 20) // l_tile)              # keep blocks <= ~4 MB f32
    r_tile = _pick_tile(
        rows, tuple(c for c in (1024, 512, 256, 128, 64, 32, 16, 8)
                    if c <= max_rows))

    y2d = conv_out.reshape(rows, lanes)                 # metadata-only reshape
    scale_row = jnp.tile(scale, 4 * W).reshape(1, lanes)
    shift_row = jnp.tile(shift, 4 * W).reshape(1, lanes)

    out2d = pl.pallas_call(
        bn_relu_kernel,
        out_shape=jax.ShapeDtypeStruct((rows, lanes), jnp.float32),
        grid=(rows // r_tile, lanes // l_tile),
        in_specs=[
            pl.BlockSpec((r_tile, l_tile), lambda r, c: (r, c)),
            pl.BlockSpec((1, l_tile), lambda r, c: (0, c)),
            pl.BlockSpec((1, l_tile), lambda r, c: (0, c)),
        ],
        out_specs=pl.BlockSpec((r_tile, l_tile), lambda r, c: (r, c)),
        input_output_aliases={0: 0},
        compiler_params=pltpu.CompilerParams(
            dimension_semantics=("parallel", "parallel")),
    )(y2d, scale_row, shift_row)

    # Phase-stacked (n, i, j, a, b, c) -> NCHW (n, c, 2i+a, 2j+b): one transpose.
    out = out2d.reshape(N, H, W, 2, 2, Cout)
    out = jnp.transpose(out, (0, 5, 1, 3, 2, 4)).reshape(N, Cout, H2, W2)
    return out


# ---------------------------------------------------------------------------
# Pure-JAX reference (mirrors the PyTorch module, training-mode BN)
# ---------------------------------------------------------------------------
def reference_forward(x, w, b, gamma, beta, eps=1e-5):
    x_up = jnp.repeat(jnp.repeat(x, 2, axis=2), 2, axis=3)
    y = jax.lax.conv_general_dilated(
        x_up, w, window_strides=(1, 1), padding=((1, 1), (1, 1)),
        dimension_numbers=("NCHW", "OIHW", "NCHW"),
        precision=jax.lax.Precision.HIGHEST)
    y = y + b[None, :, None, None]
    mean = y.mean(axis=(0, 2, 3), keepdims=True)
    var = y.var(axis=(0, 2, 3), keepdims=True)      # biased, as in train-mode BN
    y = (y - mean) / jnp.sqrt(var + eps)
    y = y * gamma[None, :, None, None] + beta[None, :, None, None]
    return jnp.maximum(y, 0.0)


if __name__ == "__main__":
    key = jax.random.PRNGKey(0)
    k_x, k_w, k_b, k_g, k_bt = jax.random.split(key, 5)

    N, Cin, H, W = 2, 4, 16, 16
    Cout = 32                      # 4*Cout = 128 -> lane-dense conv output tile

    x = jax.random.normal(k_x, (N, Cin, H, W), dtype=jnp.float32)
    # Conv2d(ch_in, ch_out, 3, 1, 1, bias=True): weight (Cout, Cin, 3, 3), bias (Cout,)
    fan_in = Cin * 3 * 3
    w = jax.random.normal(k_w, (Cout, Cin, 3, 3), dtype=jnp.float32) / jnp.sqrt(fan_in)
    b = jax.random.normal(k_b, (Cout,), dtype=jnp.float32) * 0.1
    # BatchNorm2d affine params
    gamma = 1.0 + 0.1 * jax.random.normal(k_g, (Cout,), dtype=jnp.float32)
    beta = 0.1 * jax.random.normal(k_bt, (Cout,), dtype=jnp.float32)

    out = up_conv_forward(x, w, b, gamma, beta)
    out = jax.block_until_ready(out)

    ref = reference_forward(x, w, b, gamma, beta)
    assert out.shape == (N, Cout, 2 * H, 2 * W), out.shape
    max_err = float(jnp.max(jnp.abs(out - ref)))
    # bf16 MXU path (no Precision.HIGHEST) -> tolerance slightly above 1e-2.
    assert jnp.allclose(out, ref, atol=2e-2, rtol=2e-2), max_err

    print("KERNEL_OK")
</pallas_src>

<mosaic_0001>
module attributes {stable_mosaic.version = 11 : i64} {
  func.func @conv_phase_kernel(%arg0: i32, %arg1: i32, %arg2: memref<1x18x18x4xbf16, #tpu.memory_space<vmem>>, %arg3: memref<3x3x4x128xbf16, #tpu.memory_space<vmem>>, %arg4: memref<1x128xf32, #tpu.memory_space<vmem>>, %arg5: memref<1x256x128xf32, #tpu.memory_space<vmem>>, %arg6: memref<1x2x128xf32, #tpu.memory_space<vmem>>) attributes {dimension_semantics = [#tpu.dimension_semantics<parallel>, #tpu.dimension_semantics<parallel>], iteration_bounds = array<i64: 1, 2>, scalar_prefetch = 0 : i64, scratch_operands = 0 : i64, tpu.core_type = #tpu.core_type<tc>, window_params = [{transform_indices = @transform_0, window_bounds = array<i64: 1, 18, 18, 4>}, {transform_indices = @transform_1, window_bounds = array<i64: 3, 3, 4, 128>}, {transform_indices = @transform_2, window_bounds = array<i64: 1, 128>}, {transform_indices = @transform_3, window_bounds = array<i64: 1, 256, 128>}, {transform_indices = @transform_4, window_bounds = array<i64: 1, 2, 128>}]} {
    %c0 = arith.constant 0 : index
    %c0_0 = arith.constant 0 : index
    %c0_1 = arith.constant 0 : index
    %c0_2 = arith.constant 0 : index
    %0 = vector.load %arg2[%c0, %c0_0, %c0_1, %c0_2] : memref<1x18x18x4xbf16, #tpu.memory_space<vmem>>, vector<1x18x18x4xbf16>
    %1 = vector.shape_cast %0 : vector<1x18x18x4xbf16> to vector<18x18x4xbf16>
    %cst = arith.constant 0.000000e+00 : f32
    %2 = vector.broadcast %cst : f32 to vector<256x128xf32>
    %3 = vector.extract_strided_slice %1 {offsets = [0, 0, 0], sizes = [16, 16, 4], strides = [1, 1, 1]} : vector<18x18x4xbf16> to vector<16x16x4xbf16>
    %4 = vector.shape_cast %3 : vector<16x16x4xbf16> to vector<256x4xbf16>
    %c0_3 = arith.constant 0 : index
    %c0_4 = arith.constant 0 : index
    %c0_5 = arith.constant 0 : index
    %c0_6 = arith.constant 0 : index
    %5 = vector.load %arg3[%c0_3, %c0_4, %c0_5, %c0_6] : memref<3x3x4x128xbf16, #tpu.memory_space<vmem>>, vector<1x1x4x128xbf16>
    %6 = vector.shape_cast %5 : vector<1x1x4x128xbf16> to vector<4x128xbf16>
    %cst_7 = arith.constant dense<0.000000e+00> : vector<256x128xf32>
    %7 = tpu.matmul %4, %6, %cst_7 {dimension_numbers = #tpu.dot_dimension_numbers<[1], [0], [0], [1], [0, 0, 1, 1], [], []>} : vector<256x4xbf16>, vector<4x128xbf16>, vector<256x128xf32> -> vector<256x128xf32>
    %8 = arith.addf %2, %7 : vector<256x128xf32>
    %9 = vector.extract_strided_slice %1 {offsets = [0, 1, 0], sizes = [16, 16, 4], strides = [1, 1, 1]} : vector<18x18x4xbf16> to vector<16x16x4xbf16>
    %10 = vector.shape_cast %9 : vector<16x16x4xbf16> to vector<256x4xbf16>
    %c0_8 = arith.constant 0 : index
    %c1 = arith.constant 1 : index
    %c0_9 = arith.constant 0 : index
    %c0_10 = arith.constant 0 : index
    %11 = vector.load %arg3[%c0_8, %c1, %c0_9, %c0_10] : memref<3x3x4x128xbf16, #tpu.memory_space<vmem>>, vector<1x1x4x128xbf16>
    %12 = vector.shape_cast %11 : vector<1x1x4x128xbf16> to vector<4x128xbf16>
    %cst_11 = arith.constant dense<0.000000e+00> : vector<256x128xf32>
    %13 = tpu.matmul %10, %12, %cst_11 {dimension_numbers = #tpu.dot_dimension_numbers<[1], [0], [0], [1], [0, 0, 1, 1], [], []>} : vector<256x4xbf16>, vector<4x128xbf16>, vector<256x128xf32> -> vector<256x128xf32>
    %14 = arith.addf %8, %13 : vector<256x128xf32>
    %15 = vector.extract_strided_slice %1 {offsets = [0, 2, 0], sizes = [16, 16, 4], strides = [1, 1, 1]} : vector<18x18x4xbf16> to vector<16x16x4xbf16>
    %16 = vector.shape_cast %15 : vector<16x16x4xbf16> to vector<256x4xbf16>
    %c0_12 = arith.constant 0 : index
    %c2 = arith.constant 2 : index
    %c0_13 = arith.constant 0 : index
    %c0_14 = arith.constant 0 : index
    %17 = vector.load %arg3[%c0_12, %c2, %c0_13, %c0_14] : memref<3x3x4x128xbf16, #tpu.memory_space<vmem>>, vector<1x1x4x128xbf16>
    %18 = vector.shape_cast %17 : vector<1x1x4x128xbf16> to vector<4x128xbf16>
    %cst_15 = arith.constant dense<0.000000e+00> : vector<256x128xf32>
    %19 = tpu.matmul %16, %18, %cst_15 {dimension_numbers = #tpu.dot_dimension_numbers<[1], [0], [0], [1], [0, 0, 1, 1], [], []>} : vector<256x4xbf16>, vector<4x128xbf16>, vector<256x128xf32> -> vector<256x128xf32>
    %20 = arith.addf %14, %19 : vector<256x128xf32>
    %21 = vector.extract_strided_slice %1 {offsets = [1, 0, 0], sizes = [16, 16, 4], strides = [1, 1, 1]} : vector<18x18x4xbf16> to vector<16x16x4xbf16>
    %22 = vector.shape_cast %21 : vector<16x16x4xbf16> to vector<256x4xbf16>
    %c1_16 = arith.constant 1 : index
    %c0_17 = arith.constant 0 : index
    %c0_18 = arith.constant 0 : index
    %c0_19 = arith.constant 0 : index
    %23 = vector.load %arg3[%c1_16, %c0_17, %c0_18, %c0_19] : memref<3x3x4x128xbf16, #tpu.memory_space<vmem>>, vector<1x1x4x128xbf16>
    %24 = vector.shape_cast %23 : vector<1x1x4x128xbf16> to vector<4x128xbf16>
    %cst_20 = arith.constant dense<0.000000e+00> : vector<256x128xf32>
    %25 = tpu.matmul %22, %24, %cst_20 {dimension_numbers = #tpu.dot_dimension_numbers<[1], [0], [0], [1], [0, 0, 1, 1], [], []>} : vector<256x4xbf16>, vector<4x128xbf16>, vector<256x128xf32> -> vector<256x128xf32>
    %26 = arith.addf %20, %25 : vector<256x128xf32>
    %27 = vector.extract_strided_slice %1 {offsets = [1, 1, 0], sizes = [16, 16, 4], strides = [1, 1, 1]} : vector<18x18x4xbf16> to vector<16x16x4xbf16>
    %28 = vector.shape_cast %27 : vector<16x16x4xbf16> to vector<256x4xbf16>
    %c1_21 = arith.constant 1 : index
    %c1_22 = arith.constant 1 : index
    %c0_23 = arith.constant 0 : index
    %c0_24 = arith.constant 0 : index
    %29 = vector.load %arg3[%c1_21, %c1_22, %c0_23, %c0_24] : memref<3x3x4x128xbf16, #tpu.memory_space<vmem>>, vector<1x1x4x128xbf16>
    %30 = vector.shape_cast %29 : vector<1x1x4x128xbf16> to vector<4x128xbf16>
    %cst_25 = arith.constant dense<0.000000e+00> : vector<256x128xf32>
    %31 = tpu.matmul %28, %30, %cst_25 {dimension_numbers = #tpu.dot_dimension_numbers<[1], [0], [0], [1], [0, 0, 1, 1], [], []>} : vector<256x4xbf16>, vector<4x128xbf16>, vector<256x128xf32> -> vector<256x128xf32>
    %32 = arith.addf %26, %31 : vector<256x128xf32>
    %33 = vector.extract_strided_slice %1 {offsets = [1, 2, 0], sizes = [16, 16, 4], strides = [1, 1, 1]} : vector<18x18x4xbf16> to vector<16x16x4xbf16>
    %34 = vector.shape_cast %33 : vector<16x16x4xbf16> to vector<256x4xbf16>
    %c1_26 = arith.constant 1 : index
    %c2_27 = arith.constant 2 : index
    %c0_28 = arith.constant 0 : index
    %c0_29 = arith.constant 0 : index
    %35 = vector.load %arg3[%c1_26, %c2_27, %c0_28, %c0_29] : memref<3x3x4x128xbf16, #tpu.memory_space<vmem>>, vector<1x1x4x128xbf16>
    %36 = vector.shape_cast %35 : vector<1x1x4x128xbf16> to vector<4x128xbf16>
    %cst_30 = arith.constant dense<0.000000e+00> : vector<256x128xf32>
    %37 = tpu.matmul %34, %36, %cst_30 {dimension_numbers = #tpu.dot_dimension_numbers<[1], [0], [0], [1], [0, 0, 1, 1], [], []>} : vector<256x4xbf16>, vector<4x128xbf16>, vector<256x128xf32> -> vector<256x128xf32>
    %38 = arith.addf %32, %37 : vector<256x128xf32>
    %39 = vector.extract_strided_slice %1 {offsets = [2, 0, 0], sizes = [16, 16, 4], strides = [1, 1, 1]} : vector<18x18x4xbf16> to vector<16x16x4xbf16>
    %40 = vector.shape_cast %39 : vector<16x16x4xbf16> to vector<256x4xbf16>
    %c2_31 = arith.constant 2 : index
    %c0_32 = arith.constant 0 : index
    %c0_33 = arith.constant 0 : index
    %c0_34 = arith.constant 0 : index
    %41 = vector.load %arg3[%c2_31, %c0_32, %c0_33, %c0_34] : memref<3x3x4x128xbf16, #tpu.memory_space<vmem>>, vector<1x1x4x128xbf16>
    %42 = vector.shape_cast %41 : vector<1x1x4x128xbf16> to vector<4x128xbf16>
    %cst_35 = arith.constant dense<0.000000e+00> : vector<256x128xf32>
    %43 = tpu.matmul %40, %42, %cst_35 {dimension_numbers = #tpu.dot_dimension_numbers<[1], [0], [0], [1], [0, 0, 1, 1], [], []>} : vector<256x4xbf16>, vector<4x128xbf16>, vector<256x128xf32> -> vector<256x128xf32>
    %44 = arith.addf %38, %43 : vector<256x128xf32>
    %45 = vector.extract_strided_slice %1 {offsets = [2, 1, 0], sizes = [16, 16, 4], strides = [1, 1, 1]} : vector<18x18x4xbf16> to vector<16x16x4xbf16>
    %46 = vector.shape_cast %45 : vector<16x16x4xbf16> to vector<256x4xbf16>
    %c2_36 = arith.constant 2 : index
    %c1_37 = arith.constant 1 : index
    %c0_38 = arith.constant 0 : index
    %c0_39 = arith.constant 0 : index
    %47 = vector.load %arg3[%c2_36, %c1_37, %c0_38, %c0_39] : memref<3x3x4x128xbf16, #tpu.memory_space<vmem>>, vector<1x1x4x128xbf16>
    %48 = vector.shape_cast %47 : vector<1x1x4x128xbf16> to vector<4x128xbf16>
    %cst_40 = arith.constant dense<0.000000e+00> : vector<256x128xf32>
    %49 = tpu.matmul %46, %48, %cst_40 {dimension_numbers = #tpu.dot_dimension_numbers<[1], [0], [0], [1], [0, 0, 1, 1], [], []>} : vector<256x4xbf16>, vector<4x128xbf16>, vector<256x128xf32> -> vector<256x128xf32>
    %50 = arith.addf %44, %49 : vector<256x128xf32>
    %51 = vector.extract_strided_slice %1 {offsets = [2, 2, 0], sizes = [16, 16, 4], strides = [1, 1, 1]} : vector<18x18x4xbf16> to vector<16x16x4xbf16>
    %52 = vector.shape_cast %51 : vector<16x16x4xbf16> to vector<256x4xbf16>
    %c2_41 = arith.constant 2 : index
    %c2_42 = arith.constant 2 : index
    %c0_43 = arith.constant 0 : index
    %c0_44 = arith.constant 0 : index
    %53 = vector.load %arg3[%c2_41, %c2_42, %c0_43, %c0_44] : memref<3x3x4x128xbf16, #tpu.memory_space<vmem>>, vector<1x1x4x128xbf16>
    %54 = vector.shape_cast %53 : vector<1x1x4x128xbf16> to vector<4x128xbf16>
    %cst_45 = arith.constant dense<0.000000e+00> : vector<256x128xf32>
    %55 = tpu.matmul %52, %54, %cst_45 {dimension_numbers = #tpu.dot_dimension_numbers<[1], [0], [0], [1], [0, 0, 1, 1], [], []>} : vector<256x4xbf16>, vector<4x128xbf16>, vector<256x128xf32> -> vector<256x128xf32>
    %56 = arith.addf %50, %55 : vector<256x128xf32>
    %c0_46 = arith.constant 0 : index
    %c0_47 = arith.constant 0 : index
    %57 = vector.load %arg4[%c0_46, %c0_47] : memref<1x128xf32, #tpu.memory_space<vmem>>, vector<1x128xf32>
    %58 = vector.broadcast %57 : vector<1x128xf32> to vector<256x128xf32>
    %59 = arith.addf %56, %58 : vector<256x128xf32>
    %c0_48 = arith.constant 0 : index
    %c0_49 = arith.constant 0 : index
    %c0_50 = arith.constant 0 : index
    %60 = vector.load %arg5[%c0_48, %c0_49, %c0_50] : memref<1x256x128xf32, #tpu.memory_space<vmem>>, vector<1x256x128xf32>
    %61 = vector.shape_cast %60 : vector<1x256x128xf32> to vector<256x128xf32>
    %62 = vector.shape_cast %59 : vector<256x128xf32> to vector<1x256x128xf32>
    tpu.vector_store %arg5[%c0_48, %c0_49, %c0_50], %62 {strides = array<i32>} : memref<1x256x128xf32, #tpu.memory_space<vmem>>, vector<1x256x128xf32>,
    %cst_51 = arith.constant dense<0.000000e+00> : vector<128xf32>
    %63 = vector.multi_reduction <add>, %59, %cst_51 [0] : vector<256x128xf32> to vector<128xf32>
    %64 = vector.shape_cast %63 : vector<128xf32> to vector<1x128xf32>
    %c0_52 = arith.constant 0 : index
    %c0_53 = arith.constant 0 : index
    %c0_54 = arith.constant 0 : index
    %65 = vector.load %arg6[%c0_52, %c0_53, %c0_54] : memref<1x2x128xf32, #tpu.memory_space<vmem>>, vector<1x1x128xf32>
    %66 = vector.shape_cast %65 : vector<1x1x128xf32> to vector<1x128xf32>
    %67 = vector.shape_cast %64 : vector<1x128xf32> to vector<1x1x128xf32>
    tpu.vector_store %arg6[%c0_52, %c0_53, %c0_54], %67 {strides = array<i32>} : memref<1x2x128xf32, #tpu.memory_space<vmem>>, vector<1x1x128xf32>,
    %68 = arith.mulf %59, %59 : vector<256x128xf32>
    %cst_55 = arith.constant dense<0.000000e+00> : vector<128xf32>
    %69 = vector.multi_reduction <add>, %68, %cst_55 [0] : vector<256x128xf32> to vector<128xf32>
    %70 = vector.shape_cast %69 : vector<128xf32> to vector<1x128xf32>
    %c0_56 = arith.constant 0 : index
    %c1_57 = arith.constant 1 : index
    %c0_58 = arith.constant 0 : index
    %71 = vector.load %arg6[%c0_56, %c1_57, %c0_58] : memref<1x2x128xf32, #tpu.memory_space<vmem>>, vector<1x1x128xf32>
    %72 = vector.shape_cast %71 : vector<1x1x128xf32> to vector<1x128xf32>
    %73 = vector.shape_cast %70 : vector<1x128xf32> to vector<1x1x128xf32>
    tpu.vector_store %arg6[%c0_56, %c1_57, %c0_58], %73 {strides = array<i32>} : memref<1x2x128xf32, #tpu.memory_space<vmem>>, vector<1x1x128xf32>,
    return
  }
  func.func @transform_0(%arg0: i32, %arg1: i32) -> (i32, i32, i32, i32) {
    %c0_i32 = arith.constant 0 : i32
    %c0_i32_0 = arith.constant 0 : i32
    %c0_i32_1 = arith.constant 0 : i32
    %c0_i32_2 = arith.constant 0 : i32
    return %arg1, %c0_i32, %c0_i32_0, %c0_i32_1 : i32, i32, i32, i32
  }
  func.func @transform_1(%arg0: i32, %arg1: i32) -> (i32, i32, i32, i32) {
    %c0_i32 = arith.constant 0 : i32
    %c0_i32_0 = arith.constant 0 : i32
    %c0_i32_1 = arith.constant 0 : i32
    %c0_i32_2 = arith.constant 0 : i32
    return %c0_i32, %c0_i32_0, %c0_i32_1, %arg0 : i32, i32, i32, i32
  }
  func.func @transform_2(%arg0: i32, %arg1: i32) -> (i32, i32) {
    %c0_i32 = arith.constant 0 : i32
    %c0_i32_0 = arith.constant 0 : i32
    return %c0_i32, %arg0 : i32, i32
  }
  func.func @transform_3(%arg0: i32, %arg1: i32) -> (i32, i32, i32) {
    %c0_i32 = arith.constant 0 : i32
    %c0_i32_0 = arith.constant 0 : i32
    return %arg1, %c0_i32, %arg0 : i32, i32, i32
  }
  func.func @transform_4(%arg0: i32, %arg1: i32) -> (i32, i32, i32) {
    %c0_i32 = arith.constant 0 : i32
    %c0_i32_0 = arith.constant 0 : i32
    return %arg1, %c0_i32, %arg0 : i32, i32, i32
  }
}

module attributes {stable_mosaic.version = 11 : i64} {
  func.func @bn_relu_kernel(%arg0: i32, %arg1: i32, %arg2: memref<32x2048xf32, #tpu.memory_space<vmem>>, %arg3: memref<1x2048xf32, #tpu.memory_space<vmem>>, %arg4: memref<1x2048xf32, #tpu.memory_space<vmem>>, %arg5: memref<32x2048xf32, #tpu.memory_space<vmem>>) attributes {dimension_semantics = [#tpu.dimension_semantics<parallel>, #tpu.dimension_semantics<parallel>], iteration_bounds = array<i64: 1, 1>, scalar_prefetch = 0 : i64, scratch_operands = 0 : i64, tpu.core_type = #tpu.core_type<tc>, window_params = [{transform_indices = @transform_0, window_bounds = array<i64: 32, 2048>}, {transform_indices = @transform_1, window_bounds = array<i64: 1, 2048>}, {transform_indices = @transform_2, window_bounds = array<i64: 1, 2048>}, {transform_indices = @transform_3, window_bounds = array<i64: 32, 2048>}]} {
    %c0 = arith.constant 0 : index
    %c0_0 = arith.constant 0 : index
    %0 = vector.load %arg2[%c0, %c0_0] : memref<32x2048xf32, #tpu.memory_space<vmem>>, vector<32x2048xf32>
    %c0_1 = arith.constant 0 : index
    %c0_2 = arith.constant 0 : index
    %1 = vector.load %arg3[%c0_1, %c0_2] : memref<1x2048xf32, #tpu.memory_space<vmem>>, vector<1x2048xf32>
    %2 = vector.broadcast %1 : vector<1x2048xf32> to vector<32x2048xf32>
    %3 = arith.mulf %0, %2 : vector<32x2048xf32>
    %c0_3 = arith.constant 0 : index
    %c0_4 = arith.constant 0 : index
    %4 = vector.load %arg4[%c0_3, %c0_4] : memref<1x2048xf32, #tpu.memory_space<vmem>>, vector<1x2048xf32>
    %5 = vector.broadcast %4 : vector<1x2048xf32> to vector<32x2048xf32>
    %6 = arith.addf %3, %5 : vector<32x2048xf32>
    %cst = arith.constant 0.000000e+00 : f32
    %7 = vector.broadcast %cst : f32 to vector<32x2048xf32>
    %8 = arith.maximumf %6, %7 : vector<32x2048xf32>
    %c0_5 = arith.constant 0 : index
    %c0_6 = arith.constant 0 : index
    %9 = vector.load %arg5[%c0_5, %c0_6] : memref<32x2048xf32, #tpu.memory_space<vmem>>, vector<32x2048xf32>
    tpu.vector_store %arg5[%c0_5, %c0_6], %8 {strides = array<i32>} : memref<32x2048xf32, #tpu.memory_space<vmem>>, vector<32x2048xf32>,
    return
  }
  func.func @transform_0(%arg0: i32, %arg1: i32) -> (i32, i32) {
    %c0_i32 = arith.constant 0 : i32
    return %arg0, %arg1 : i32, i32
  }
  func.func @transform_1(%arg0: i32, %arg1: i32) -> (i32, i32) {
    %c0_i32 = arith.constant 0 : i32
    %c0_i32_0 = arith.constant 0 : i32
    return %c0_i32, %arg1 : i32, i32
  }
  func.func @transform_2(%arg0: i32, %arg1: i32) -> (i32, i32) {
    %c0_i32 = arith.constant 0 : i32
    %c0_i32_0 = arith.constant 0 : i32
    return %c0_i32, %arg1 : i32, i32
  }
  func.func @transform_3(%arg0: i32, %arg1: i32) -> (i32, i32) {
    %c0_i32 = arith.constant 0 : i32
    return %arg0, %arg1 : i32, i32
  }
}

</mosaic_0001>

<llo_original>
// kernel: tile.18
$region0: #{tile.18}
  #allocation0 [shape = 's32[1]{0}', space=sflag, size = 0x4, scoped, tag = 'scoped memory for tile.18']
  %s0 = inlined_call_operand.vmem [shape: f32[32], index: 0, kind: input, shape index: {}]
  %s1 = inlined_call_operand.vmem [shape: f32[4,32], index: 1, kind: output, shape index: {}]
  // Predicated region
  $region2: #{tile.18} parent=0 // pred_check
    _
  $region3: #{tile.18} parent=0 // pred_check_branch
    %3 = sbr.rel (0) target = $region5
  $region4: #{tile.18} parent=0 // pred_region
    _
  $region5: #{tile.18} parent=0 // pred_fallthru
    _
  %v4 = vld [vmem:[%s0] ss:$0 sm:$0xff]
  %5 = vst [vmem:[%s1] sm:$0xf] %v4

// kernel: tile.19
$region0: #{tile.19}
  %s0 = inlined_call_operand.vmem [shape: f32[4,32], index: 0, kind: input, shape index: {}]
  %s1 = inlined_call_operand.vmem [shape: f32[1,128], index: 1, kind: output, shape index: {}]
  $region1: #{tile.19} parent=0
    #allocation0 [shape = 'u8[4096]{0}', space=vmem, size = 0x1000, scoped, tag = 'scoped mem for output reshape']
    #allocation1 [shape = 'u8[4096]{0}', space=vmem, size = 0x1000, scoped, tag = 'scoped mem for input reshape']
    %s3 = sshllo.u32 0, 4
    %v4 = vld [vmem:[%s0] sm:%s3]
    %5 = vst [vmem:[#allocation1] sm:%s3] %v4
    %v6 = vld [vmem:[#allocation1] sm:$0x1]
    %vm7 = vcmask 261120
    %8 = vst.msk [vmem:[#allocation0] sm:$0x1] %vm7, %v6
    %s9 = scalar_lea.vmem [#allocation1], 3
    %v10 = vld [vmem:[%s9] sm:$0x1]
    %11 = vrot.lane.b32.xlu0 %v10, 96
    %v12 = vpop.permute.xlu0 %11
    %vm13 = vcmask 1048320
    %14 = vst.msk [vmem:[#allocation0] sm:$0x1] %vm13, %v12
    %s15 = scalar_lea.vmem [#allocation1], 2
    %v16 = vld [vmem:[%s15] sm:$0x1]
    %17 = vrot.lane.b32.xlu0 %v16, 64
    %v18 = vpop.permute.xlu0 %17
    %vm19 = vcmask 785920
    %20 = vst.msk [vmem:[#allocation0] sm:$0x1] %vm19, %v18
    %s21 = scalar_lea.vmem [#allocation1], 1
    %v22 = vld [vmem:[%s21] sm:$0x1]
    %23 = vrot.lane.b32.xlu0 %v22, 32
    %v24 = vpop.permute.xlu0 %23
    %vm25 = vcmask 523520
    %26 = vst.msk [vmem:[#allocation0] sm:$0x1] %vm25, %v24
    %s28 = sshllo.u32 0, 1
    %v30 = vld [vmem:[#allocation0] sm:%s28]
    %s31 = sshllo.u32 0, 1
    %32 = vst [vmem:[%s1] sm:%s31] %v30

// kernel: tile.28
$region0: #{tile.28}
  #allocation0 [shape = 's32[1]{0}', space=sflag, size = 0x4, scoped, tag = 'scoped memory for tile.28']
  %s0 = inlined_call_operand.vmem [shape: f32[32], index: 0, kind: input, shape index: {}]
  %s1 = inlined_call_operand.vmem [shape: f32[64,32], index: 1, kind: output, shape index: {}]
  // Predicated region
  $region2: #{tile.28} parent=0 // pred_check
    _
  $region3: #{tile.28} parent=0 // pred_check_branch
    %3 = sbr.rel (0) target = $region5
  $region4: #{tile.28} parent=0 // pred_region
    _
  $region5: #{tile.28} parent=0 // pred_fallthru
    _
  %v4 = vld [vmem:[%s0] ss:$0 sm:$0xff]
  %5 = vst [vmem:[%s1] sm:$0xff] %v4
  %s6 = scalar_lea.vmem %s1, 8
  %7 = vst [vmem:[%s6] sm:$0xff] %v4
  %s8 = scalar_lea.vmem %s1, 16
  %9 = vst [vmem:[%s8] sm:$0xff] %v4
  %s10 = scalar_lea.vmem %s1, 24
  %11 = vst [vmem:[%s10] sm:$0xff] %v4
  %s12 = scalar_lea.vmem %s1, 32
  %13 = vst [vmem:[%s12] sm:$0xff] %v4
  %s14 = scalar_lea.vmem %s1, 40
  %15 = vst [vmem:[%s14] sm:$0xff] %v4
  %s16 = scalar_lea.vmem %s1, 48
  %17 = vst [vmem:[%s16] sm:$0xff] %v4
  %s18 = scalar_lea.vmem %s1, 56
  %19 = vst [vmem:[%s18] sm:$0xff] %v4

// kernel: tile.29
$region0: #{tile.29}
  %s0 = inlined_call_operand.vmem [shape: f32[64,32], index: 0, kind: input, shape index: {}]
  %s1 = inlined_call_operand.vmem [shape: f32[1,2048], index: 1, kind: output, shape index: {}]
  $region1: #{tile.29} parent=0
    #allocation0 [shape = 'u8[65536]{0}', space=vmem, size = 0x10000, scoped, tag = 'scoped mem for output reshape']
    %v2 = vld [vmem:[%s0] ss:$4 sm:$0xff]
    %vm3 = vcmask 261120
    %4 = vst.msk [vmem:[#allocation0] ss:$8 sm:$0xf] %vm3, %v2
    %5 = vst.msk [vmem:[#allocation0] ss:$8 sm:$0xf0] %vm3, %v2
    %s6 = scalar_lea.vmem %s0, 32
    %v7 = vld [vmem:[%s6] ss:$4 sm:$0xff]
    %vm8 = vcmask 261120
    %s9 = scalar_lea.vmem [#allocation0], 64
    %10 = vst.msk [vmem:[%s9] ss:$8 sm:$0xf] %vm8, %v7
    %s11 = scalar_lea.vmem [#allocation0], 64
    %12 = vst.msk [vmem:[%s11] ss:$8 sm:$0xf0] %vm8, %v7
    %s13 = scalar_lea.vmem %s0, 3
    %v14 = vld [vmem:[%s13] ss:$4 sm:$0xff]
    %15 = vrot.lane.b32.xlu0 %v14, 96
    %v16 = vpop.permute.xlu0 %15
    %vm17 = vcmask 1048320
    %18 = vst.msk [vmem:[#allocation0] ss:$8 sm:$0xf] %vm17, %v16
    %19 = vst.msk [vmem:[#allocation0] ss:$8 sm:$0xf0] %vm17, %v16
    %s20 = scalar_lea.vmem %s0, 35
    %v21 = vld [vmem:[%s20] ss:$4 sm:$0xff]
    %22 = vrot.lane.b32.xlu0 %v21, 96
    %v23 = vpop.permute.xlu0 %22
    %vm24 = vcmask 1048320
    %s25 = scalar_lea.vmem [#allocation0], 64
    %26 = vst.msk [vmem:[%s25] ss:$8 sm:$0xf] %vm24, %v23
    %s27 = scalar_lea.vmem [#allocation0], 64
    %28 = vst.msk [vmem:[%s27] ss:$8 sm:$0xf0] %vm24, %v23
    %s29 = scalar_lea.vmem %s0, 2
    %v30 = vld [vmem:[%s29] ss:$4 sm:$0xff]
    %31 = vrot.lane.b32.xlu0 %v30, 64
    %v32 = vpop.permute.xlu0 %31
    %vm33 = vcmask 785920
    %34 = vst.msk [vmem:[#allocation0] ss:$8 sm:$0xf] %vm33, %v32
    %35 = vst.msk [vmem:[#allocation0] ss:$8 sm:$0xf0] %vm33, %v32
    %s36 = scalar_lea.vmem %s0, 34
    %v37 = vld [vmem:[%s36] ss:$4 sm:$0xff]
    %38 = vrot.lane.b32.xlu0 %v37, 64
    %v39 = vpop.permute.xlu0 %38
    %vm40 = vcmask 785920
    %s41 = scalar_lea.vmem [#allocation0], 64
    %42 = vst.msk [vmem:[%s41] ss:$8 sm:$0xf] %vm40, %v39
    %s43 = scalar_lea.vmem [#allocation0], 64
    %44 = vst.msk [vmem:[%s43] ss:$8 sm:$0xf0] %vm40, %v39
    %s45 = scalar_lea.vmem %s0, 1
    %v46 = vld [vmem:[%s45] ss:$4 sm:$0xff]
    %47 = vrot.lane.b32.xlu0 %v46, 32
    %v48 = vpop.permute.xlu0 %47
    %vm49 = vcmask 523520
    %50 = vst.msk [vmem:[#allocation0] ss:$8 sm:$0xf] %vm49, %v48
    %51 = vst.msk [vmem:[#allocation0] ss:$8 sm:$0xf0] %vm49, %v48
    %s52 = scalar_lea.vmem %s0, 33
    %v53 = vld [vmem:[%s52] ss:$4 sm:$0xff]
    %54 = vrot.lane.b32.xlu0 %v53, 32
    %v55 = vpop.permute.xlu0 %54
    %vm56 = vcmask 523520
    %s57 = scalar_lea.vmem [#allocation0], 64
    %58 = vst.msk [vmem:[%s57] ss:$8 sm:$0xf] %vm56, %v55
    %s59 = scalar_lea.vmem [#allocation0], 64
    %60 = vst.msk [vmem:[%s59] ss:$8 sm:$0xf0] %vm56, %v55
    %s62 = sshllo.u32 0, 1
    %v64 = vld [vmem:[#allocation0] sm:%s62]
    %s65 = sshllo.u32 0, 1
    %66 = vst [vmem:[%s1] sm:%s65] %v64
    %s67 = scalar_lea.vmem [#allocation0], 8
    %v68 = vld [vmem:[%s67] sm:%s62]
    %s69 = sshllo.u32 0, 1
    %s70 = scalar_lea.vmem %s1, 1
    %71 = vst [vmem:[%s70] sm:%s69] %v68
    %s72 = scalar_lea.vmem [#allocation0], 16
    %v73 = vld [vmem:[%s72] sm:%s62]
    %s74 = sshllo.u32 0, 1
    %s75 = smul.addr 1, 2
    %s76 = scalar_lea.vmem %s1, %s75
    %77 = vst [vmem:[%s76] sm:%s74] %v73
    %s78 = scalar_lea.vmem [#allocation0], 24
    %v79 = vld [vmem:[%s78] sm:%s62]
    %s80 = sshllo.u32 0, 1
    %s81 = smul.addr 1, 3
    %s82 = scalar_lea.vmem %s1, %s81
    %83 = vst [vmem:[%s82] sm:%s80] %v79
    %s84 = scalar_lea.vmem [#allocation0], 32
    %v85 = vld [vmem:[%s84] sm:%s62]
    %s86 = sshllo.u32 0, 1
    %s87 = smul.addr 1, 4
    %s88 = scalar_lea.vmem %s1, %s87
    %89 = vst [vmem:[%s88] sm:%s86] %v85
    %s90 = scalar_lea.vmem [#allocation0], 40
    %v91 = vld [vmem:[%s90] sm:%s62]
    %s92 = sshllo.u32 0, 1
    %s93 = smul.addr 1, 5
    %s94 = scalar_lea.vmem %s1, %s93
    %95 = vst [vmem:[%s94] sm:%s92] %v91
    %s96 = scalar_lea.vmem [#allocation0], 48
    %v97 = vld [vmem:[%s96] sm:%s62]
    %s98 = sshllo.u32 0, 1
    %s99 = smul.addr 1, 6
    %s100 = scalar_lea.vmem %s1, %s99
    %101 = vst [vmem:[%s100] sm:%s98] %v97
    %s102 = scalar_lea.vmem [#allocation0], 56
    %v103 = vld [vmem:[%s102] sm:%s62]
    %s104 = sshllo.u32 0, 1
    %s105 = smul.addr 1, 7
    %s106 = scalar_lea.vmem %s1, %s105
    %107 = vst [vmem:[%s106] sm:%s104] %v103
    %s108 = scalar_lea.vmem [#allocation0], 64
    %v109 = vld [vmem:[%s108] sm:%s62]
    %s110 = sshllo.u32 0, 1
    %s111 = smul.addr 1, 8
    %s112 = scalar_lea.vmem %s1, %s111
    %113 = vst [vmem:[%s112] sm:%s110] %v109
    %s114 = scalar_lea.vmem [#allocation0], 72
    %v115 = vld [vmem:[%s114] sm:%s62]
    %s116 = sshllo.u32 0, 1
    %s117 = smul.addr 1, 9
    %s118 = scalar_lea.vmem %s1, %s117
    %119 = vst [vmem:[%s118] sm:%s116] %v115
    %s120 = scalar_lea.vmem [#allocation0], 80
    %v121 = vld [vmem:[%s120] sm:%s62]
    %s122 = sshllo.u32 0, 1
    %s123 = smul.addr 1, 10
    %s124 = scalar_lea.vmem %s1, %s123
    %125 = vst [vmem:[%s124] sm:%s122] %v121
    %s126 = scalar_lea.vmem [#allocation0], 88
    %v127 = vld [vmem:[%s126] sm:%s62]
    %s128 = sshllo.u32 0, 1
    %s129 = smul.addr 1, 11
    %s130 = scalar_lea.vmem %s1, %s129
    %131 = vst [vmem:[%s130] sm:%s128] %v127
    %s132 = scalar_lea.vmem [#allocation0], 96
    %v133 = vld [vmem:[%s132] sm:%s62]
    %s134 = sshllo.u32 0, 1
    %s135 = smul.addr 1, 12
    %s136 = scalar_lea.vmem %s1, %s135
    %137 = vst [vmem:[%s136] sm:%s134] %v133
    %s138 = scalar_lea.vmem [#allocation0], 104
    %v139 = vld [vmem:[%s138] sm:%s62]
    %s140 = sshllo.u32 0, 1
    %s141 = smul.addr 1, 13
    %s142 = scalar_lea.vmem %s1, %s141
    %143 = vst [vmem:[%s142] sm:%s140] %v139
    %s144 = scalar_lea.vmem [#allocation0], 112
    %v145 = vld [vmem:[%s144] sm:%s62]
    %s146 = sshllo.u32 0, 1
    %s147 = smul.addr 1, 14
    %s148 = scalar_lea.vmem %s1, %s147
    %149 = vst [vmem:[%s148] sm:%s146] %v145
    %s150 = scalar_lea.vmem [#allocation0], 120
    %v151 = vld [vmem:[%s150] sm:%s62]
    %s152 = sshllo.u32 0, 1
    %s153 = smul.addr 1, 15
    %s154 = scalar_lea.vmem %s1, %s153
    %155 = vst [vmem:[%s154] sm:%s152] %v151

// kernel: up_conv_forward.3
$region0: #{up_conv_forward.3}
  #allocation0 [shape = 'u32[]', space=smem, size = 0x4, offset = 0x4, fixed_abs, tag = 'smem constant byte address 0x4 - core index']
  #allocation1 [shape = 'u32[144,128]{1,0:T(1,128)}', space=vmem, size = 0x12000, scoped, tag = 'internal scratch']
  %s0 = inlined_call_operand.vmem [shape: f32[32,2048], index: 0, kind: input, shape index: {}, may-alias: {0,3}]
  %s1 = inlined_call_operand.vmem [shape: f32[1,2048], index: 1, kind: input, shape index: {}]
  %s2 = inlined_call_operand.vmem [shape: f32[1,2048], index: 2, kind: input, shape index: {}]
  %s3 = inlined_call_operand.vmem [shape: f32[32,2048], index: 3, kind: output, shape index: {}, may-alias: {0,3}]
  %s4 = sld [smem:[#allocation0]]
  $region22: #{up_conv_forward.3} parent=0
    _
  %s6 = ssub.s32 1, %s4
  %s7 = scalar_select 0, %s6, %s4
  // Predicated region
  $region2: #{up_conv_forward.3} parent=0 // pred_check
    _
  $region3: #{up_conv_forward.3} parent=0 // pred_check_branch
    %9 = sbr.rel (0) target = $region5
  $region4: #{up_conv_forward.3} parent=0 // pred_region
    _
  $region5: #{up_conv_forward.3} parent=0 // pred_fallthru
    _
  // Predicated region
  $region6: #{up_conv_forward.3} parent=0 // pred_check
    _
  $region7: #{up_conv_forward.3} parent=0 // pred_check_branch
    %11 = sbr.rel (0) target = $region9
  $region8: #{up_conv_forward.3} parent=0 // pred_region
    _
  $region9: #{up_conv_forward.3} parent=0 // pred_fallthru
    _
  // Predicated region
  $region10: #{up_conv_forward.3} parent=0 // pred_check
    _
  $region11: #{up_conv_forward.3} parent=0 // pred_check_branch
    %13 = sbr.rel (0) target = $region13
  $region12: #{up_conv_forward.3} parent=0 // pred_region
    _
  $region13: #{up_conv_forward.3} parent=0 // pred_fallthru
    _
  %v14 = vld [vmem:[%s0] sm:$0xff]
  %v15 = vld [vmem:[%s0 + $0x8] sm:$0xff]
  %v16 = vld [vmem:[%s0 + $0x10] sm:$0xff]
  %v17 = vld [vmem:[%s0 + $0x18] sm:$0xff]
  %v18 = vld [vmem:[%s0 + $0x20] sm:$0xff]
  %v19 = vld [vmem:[%s0 + $0x28] sm:$0xff]
  %v20 = vld [vmem:[%s0 + $0x30] sm:$0xff]
  %v21 = vld [vmem:[%s0 + $0x38] sm:$0xff]
  %v22 = vld [vmem:[%s0 + $0x40] sm:$0xff]
  %v23 = vld [vmem:[%s0 + $0x48] sm:$0xff]
  %v24 = vld [vmem:[%s0 + $0x50] sm:$0xff]
  %v25 = vld [vmem:[%s0 + $0x58] sm:$0xff]
  %v26 = vld [vmem:[%s0 + $0x60] sm:$0xff]
  %v27 = vld [vmem:[%s0 + $0x68] sm:$0xff]
  %v28 = vld [vmem:[%s0 + $0x70] sm:$0xff]
  %v29 = vld [vmem:[%s0 + $0x78] sm:$0xff]
  %v30 = vld [vmem:[%s0 + $0x80] sm:$0xff]
  %v31 = vld [vmem:[%s0 + $0x88] sm:$0xff]
  %v32 = vld [vmem:[%s0 + $0x90] sm:$0xff]
  %v33 = vld [vmem:[%s0 + $0x98] sm:$0xff]
  %v34 = vld [vmem:[%s0 + $0xa0] sm:$0xff]
  %v35 = vld [vmem:[%s0 + $0xa8] sm:$0xff]
  %v36 = vld [vmem:[%s0 + $0xb0] sm:$0xff]
  %v37 = vld [vmem:[%s0 + $0xb8] sm:$0xff]
  %v38 = vld [vmem:[%s0 + $0xc0] sm:$0xff]
  %v39 = vld [vmem:[%s0 + $0xc8] sm:$0xff]
  %v40 = vld [vmem:[%s0 + $0xd0] sm:$0xff]
  %v41 = vld [vmem:[%s0 + $0xd8] sm:$0xff]
  %v42 = vld [vmem:[%s0 + $0xe0] sm:$0xff]
  %v43 = vld [vmem:[%s0 + $0xe8] sm:$0xff]
  %v44 = vld [vmem:[%s0 + $0xf0] sm:$0xff]
  %v45 = vld [vmem:[%s0 + $0xf8] sm:$0xff]
  %v46 = vld [vmem:[%s0 + $0x100] sm:$0xff]
  %v47 = vld [vmem:[%s0 + $0x108] sm:$0xff]
  %v48 = vld [vmem:[%s0 + $0x110] sm:$0xff]
  %v49 = vld [vmem:[%s0 + $0x118] sm:$0xff]
  %v50 = vld [vmem:[%s0 + $0x120] sm:$0xff]
  %v51 = vld [vmem:[%s0 + $0x128] sm:$0xff]
  %v52 = vld [vmem:[%s0 + $0x130] sm:$0xff]
  %v53 = vld [vmem:[%s0 + $0x138] sm:$0xff]
  %v54 = vld [vmem:[%s0 + $0x140] sm:$0xff]
  %v55 = vld [vmem:[%s0 + $0x148] sm:$0xff]
  %v56 = vld [vmem:[%s0 + $0x150] sm:$0xff]
  %v57 = vld [vmem:[%s0 + $0x158] sm:$0xff]
  %v58 = vld [vmem:[%s0 + $0x160] sm:$0xff]
  %v59 = vld [vmem:[%s0 + $0x168] sm:$0xff]
  %v60 = vld [vmem:[%s0 + $0x170] sm:$0xff]
  %v61 = vld [vmem:[%s0 + $0x178] sm:$0xff]
  %v62 = vld [vmem:[%s0 + $0x180] sm:$0xff]
  %v63 = vld [vmem:[%s0 + $0x188] sm:$0xff]
  %v64 = vld [vmem:[%s0 + $0x190] sm:$0xff]
  %v65 = vld [vmem:[%s0 + $0x198] sm:$0xff]
  %v66 = vld [vmem:[%s0 + $0x1a0] sm:$0xff]
  %v67 = vld [vmem:[%s0 + $0x1a8] sm:$0xff]
  %v68 = vld [vmem:[%s0 + $0x1b0] sm:$0xff]
  %v69 = vld [vmem:[%s0 + $0x1b8] sm:$0xff]
  %v70 = vld [vmem:[%s0 + $0x1c0] sm:$0xff]
  %v71 = vld [vmem:[%s0 + $0x1c8] sm:$0xff]
  %v72 = vld [vmem:[%s0 + $0x1d0] sm:$0xff]
  %v73 = vld [vmem:[%s0 + $0x1d8] sm:$0xff]
  %v74 = vld [vmem:[%s0 + $0x1e0] sm:$0xff]
  %v75 = vld [vmem:[%s0 + $0x1e8] sm:$0xff]
  %v76 = vld [vmem:[%s0 + $0x1f0] sm:$0xff]
  %v77 = vld [vmem:[%s0 + $0x1f8] sm:$0xff]
  %v78 = vld [vmem:[%s1] sm:$0xff]
  %v79 = vld [vmem:[%s1 + $0x8] sm:$0xff]
  %v82 = vlaneseq
  %v83 = vshrl.u32 %v82, 7
  %v84 = vsub.s32 0, %v83
  %v85 = vrot.slane %v78, %v84
  %v86 = vlaneseq
  %v87 = vshrl.u32 %v86, 7
  %v88 = vsub.s32 1, %v87
  %v89 = vrot.slane %v78, %v88
  %v90 = vlaneseq
  %v91 = vshrl.u32 %v90, 7
  %v92 = vsub.s32 2, %v91
  %v93 = vrot.slane %v78, %v92
  %v94 = vlaneseq
  %v95 = vshrl.u32 %v94, 7
  %v96 = vsub.s32 3, %v95
  %v97 = vrot.slane %v78, %v96
  %v98 = vlaneseq
  %v99 = vshrl.u32 %v98, 7
  %v100 = vsub.s32 4, %v99
  %v101 = vrot.slane %v78, %v100
  %v102 = vlaneseq
  %v103 = vshrl.u32 %v102, 7
  %v104 = vsub.s32 5, %v103
  %v105 = vrot.slane %v78, %v104
  %v106 = vlaneseq
  %v107 = vshrl.u32 %v106, 7
  %v108 = vsub.s32 6, %v107
  %v109 = vrot.slane %v78, %v108
  %v110 = vlaneseq
  %v111 = vshrl.u32 %v110, 7
  %v112 = vsub.s32 7, %v111
  %v113 = vrot.slane %v78, %v112
  %v114 = vlaneseq
  %v115 = vshrl.u32 %v114, 7
  %v116 = vsub.s32 0, %v115
  %v117 = vrot.slane %v79, %v116
  %v118 = vlaneseq
  %v119 = vshrl.u32 %v118, 7
  %v120 = vsub.s32 1, %v119
  %v121 = vrot.slane %v79, %v120
  %v122 = vlaneseq
  %v123 = vshrl.u32 %v122, 7
  %v124 = vsub.s32 2, %v123
  %v125 = vrot.slane %v79, %v124
  %v126 = vlaneseq
  %v127 = vshrl.u32 %v126, 7
  %v128 = vsub.s32 3, %v127
  %v129 = vrot.slane %v79, %v128
  %v130 = vlaneseq
  %v131 = vshrl.u32 %v130, 7
  %v132 = vsub.s32 4, %v131
  %v133 = vrot.slane %v79, %v132
  %v134 = vlaneseq
  %v135 = vshrl.u32 %v134, 7
  %v136 = vsub.s32 5, %v135
  %v137 = vrot.slane %v79, %v136
  %v138 = vlaneseq
  %v139 = vshrl.u32 %v138, 7
  %v140 = vsub.s32 6, %v139
  %v141 = vrot.slane %v79, %v140
  %v142 = vlaneseq
  %v143 = vshrl.u32 %v142, 7
  %v144 = vsub.s32 7, %v143
  %v145 = vrot.slane %v79, %v144
  %v162 = vmul.f32 %v14, %v85
  %v163 = vmul.f32 %v15, %v89
  %v164 = vmul.f32 %v16, %v93
  %v165 = vmul.f32 %v17, %v97
  %v166 = vmul.f32 %v18, %v101
  %v167 = vmul.f32 %v19, %v105
  %v168 = vmul.f32 %v20, %v109
  %v169 = vmul.f32 %v21, %v113
  %v170 = vmul.f32 %v22, %v117
  %v171 = vmul.f32 %v23, %v121
  %v172 = vmul.f32 %v24, %v125
  %v173 = vmul.f32 %v25, %v129
  %v174 = vmul.f32 %v26, %v133
  %v175 = vmul.f32 %v27, %v137
  %v176 = vmul.f32 %v28, %v141
  %v177 = vmul.f32 %v29, %v145
  %v178 = vmul.f32 %v30, %v85
  %v179 = vmul.f32 %v31, %v89
  %v180 = vmul.f32 %v32, %v93
  %v181 = vmul.f32 %v33, %v97
  %v182 = vmul.f32 %v34, %v101
  %v183 = vmul.f32 %v35, %v105
  %v184 = vmul.f32 %v36, %v109
  %v185 = vmul.f32 %v37, %v113
  %v186 = vmul.f32 %v38, %v117
  %v187 = vmul.f32 %v39, %v121
  %v188 = vmul.f32 %v40, %v125
  %v189 = vmul.f32 %v41, %v129
  %v190 = vmul.f32 %v42, %v133
  %v191 = vmul.f32 %v43, %v137
  %v192 = vmul.f32 %v44, %v141
  %v193 = vmul.f32 %v45, %v145
  %v194 = vmul.f32 %v46, %v85
  %v195 = vmul.f32 %v47, %v89
  %v196 = vmul.f32 %v48, %v93
  %v197 = vmul.f32 %v49, %v97
  %v198 = vmul.f32 %v50, %v101
  %v199 = vmul.f32 %v51, %v105
  %v200 = vmul.f32 %v52, %v109
  %v201 = vmul.f32 %v53, %v113
  %v202 = vmul.f32 %v54, %v117
  %v203 = vmul.f32 %v55, %v121
  %v204 = vmul.f32 %v56, %v125
  %v205 = vmul.f32 %v57, %v129
  %v206 = vmul.f32 %v58, %v133
  %v207 = vmul.f32 %v59, %v137
  %v208 = vmul.f32 %v60, %v141
  %v209 = vmul.f32 %v61, %v145
  %v210 = vmul.f32 %v62, %v85
  %v211 = vmul.f32 %v63, %v89
  %v212 = vmul.f32 %v64, %v93
  %v213 = vmul.f32 %v65, %v97
  %v214 = vmul.f32 %v66, %v101
  %v215 = vmul.f32 %v67, %v105
  %v216 = vmul.f32 %v68, %v109
  %v217 = vmul.f32 %v69, %v113
  %v218 = vmul.f32 %v70, %v117
  %v219 = vmul.f32 %v71, %v121
  %v220 = vmul.f32 %v72, %v125
  %v221 = vmul.f32 %v73, %v129
  %v222 = vmul.f32 %v74, %v133
  %v223 = vmul.f32 %v75, %v137
  %v224 = vmul.f32 %v76, %v141
  %v225 = vmul.f32 %v77, %v145
  %v226 = vld [vmem:[%s2] sm:$0xff]
  %v227 = vld [vmem:[%s2 + $0x8] sm:$0xff]
  %v230 = vlaneseq
  %v231 = vshrl.u32 %v230, 7
  %v232 = vsub.s32 0, %v231
  %v233 = vrot.slane %v226, %v232
  %v234 = vlaneseq
  %v235 = vshrl.u32 %v234, 7
  %v236 = vsub.s32 1, %v235
  %v237 = vrot.slane %v226, %v236
  %v238 = vlaneseq
  %v239 = vshrl.u32 %v238, 7
  %v240 = vsub.s32 2, %v239
  %v241 = vrot.slane %v226, %v240
  %v242 = vlaneseq
  %v243 = vshrl.u32 %v242, 7
  %v244 = vsub.s32 3, %v243
  %v245 = vrot.slane %v226, %v244
  %v246 = vlaneseq
  %v247 = vshrl.u32 %v246, 7
  %v248 = vsub.s32 4, %v247
  %v249 = vrot.slane %v226, %v248
  %v250 = vlaneseq
  %v251 = vshrl.u32 %v250, 7
  %v252 = vsub.s32 5, %v251
  %v253 = vrot.slane %v226, %v252
  %v254 = vlaneseq
  %v255 = vshrl.u32 %v254, 7
  %v256 = vsub.s32 6, %v255
  %v257 = vrot.slane %v226, %v256
  %v258 = vlaneseq
  %v259 = vshrl.u32 %v258, 7
  %v260 = vsub.s32 7, %v259
  %v261 = vrot.slane %v226, %v260
  %v262 = vlaneseq
  %v263 = vshrl.u32 %v262, 7
  %v264 = vsub.s32 0, %v263
  %v265 = vrot.slane %v227, %v264
  %v266 = vlaneseq
  %v267 = vshrl.u32 %v266, 7
  %v268 = vsub.s32 1, %v267
  %v269 = vrot.slane %v227, %v268
  %v270 = vlaneseq
  %v271 = vshrl.u32 %v270, 7
  %v272 = vsub.s32 2, %v271
  %v273 = vrot.slane %v227, %v272
  %v274 = vlaneseq
  %v275 = vshrl.u32 %v274, 7
  %v276 = vsub.s32 3, %v275
  %v277 = vrot.slane %v227, %v276
  %v278 = vlaneseq
  %v279 = vshrl.u32 %v278, 7
  %v280 = vsub.s32 4, %v279
  %v281 = vrot.slane %v227, %v280
  %v282 = vlaneseq
  %v283 = vshrl.u32 %v282, 7
  %v284 = vsub.s32 5, %v283
  %v285 = vrot.slane %v227, %v284
  %v286 = vlaneseq
  %v287 = vshrl.u32 %v286, 7
  %v288 = vsub.s32 6, %v287
  %v289 = vrot.slane %v227, %v288
  %v290 = vlaneseq
  %v291 = vshrl.u32 %v290, 7
  %v292 = vsub.s32 7, %v291
  %v293 = vrot.slane %v227, %v292
  %v310 = vadd.f32 %v162, %v233
  %v311 = vadd.f32 %v163, %v237
  %v312 = vadd.f32 %v164, %v241
  %v313 = vadd.f32 %v165, %v245
  %v314 = vadd.f32 %v166, %v249
  %v315 = vadd.f32 %v167, %v253
  %v316 = vadd.f32 %v168, %v257
  %v317 = vadd.f32 %v169, %v261
  %v318 = vadd.f32 %v170, %v265
  %v319 = vadd.f32 %v171, %v269
  %v320 = vadd.f32 %v172, %v273
  %v321 = vadd.f32 %v173, %v277
  %v322 = vadd.f32 %v174, %v281
  %v323 = vadd.f32 %v175, %v285
  %v324 = vadd.f32 %v176, %v289
  %v325 = vadd.f32 %v177, %v293
  %v326 = vadd.f32 %v178, %v233
  %v327 = vadd.f32 %v179, %v237
  %v328 = vadd.f32 %v180, %v241
  %v329 = vadd.f32 %v181, %v245
  %v330 = vadd.f32 %v182, %v249
  %v331 = vadd.f32 %v183, %v253
  %v332 = vadd.f32 %v184, %v257
  %v333 = vadd.f32 %v185, %v261
  %v334 = vadd.f32 %v186, %v265
  %v335 = vadd.f32 %v187, %v269
  %v336 = vadd.f32 %v188, %v273
  %v337 = vadd.f32 %v189, %v277
  %v338 = vadd.f32 %v190, %v281
  %v339 = vadd.f32 %v191, %v285
  %v340 = vadd.f32 %v192, %v289
  %v341 = vadd.f32 %v193, %v293
  %v342 = vadd.f32 %v194, %v233
  %v343 = vadd.f32 %v195, %v237
  %v344 = vadd.f32 %v196, %v241
  %v345 = vadd.f32 %v197, %v245
  %v346 = vadd.f32 %v198, %v249
  %v347 = vadd.f32 %v199, %v253
  %v348 = vadd.f32 %v200, %v257
  %v349 = vadd.f32 %v201, %v261
  %v350 = vadd.f32 %v202, %v265
  %v351 = vadd.f32 %v203, %v269
  %v352 = vadd.f32 %v204, %v273
  %v353 = vadd.f32 %v205, %v277
  %v354 = vadd.f32 %v206, %v281
  %v355 = vadd.f32 %v207, %v285
  %v356 = vadd.f32 %v208, %v289
  %v357 = vadd.f32 %v209, %v293
  %v358 = vadd.f32 %v210, %v233
  %v359 = vadd.f32 %v211, %v237
  %v360 = vadd.f32 %v212, %v241
  %v361 = vadd.f32 %v213, %v245
  %v362 = vadd.f32 %v214, %v249
  %v363 = vadd.f32 %v215, %v253
  %v364 = vadd.f32 %v216, %v257
  %v365 = vadd.f32 %v217, %v261
  %v366 = vadd.f32 %v218, %v265
  %v367 = vadd.f32 %v219, %v269
  %v368 = vadd.f32 %v220, %v273
  %v369 = vadd.f32 %v221, %v277
  %v370 = vadd.f32 %v222, %v281
  %v371 = vadd.f32 %v223, %v285
  %v372 = vadd.f32 %v224, %v289
  %v373 = vadd.f32 %v225, %v293
  %v374 = vmax.f32 %v310, 0.0
  %v375 = vmax.f32 %v311, 0.0
  %v376 = vmax.f32 %v312, 0.0
  %v377 = vmax.f32 %v313, 0.0
  %v378 = vmax.f32 %v314, 0.0
  %v379 = vmax.f32 %v315, 0.0
  %v380 = vmax.f32 %v316, 0.0
  %v381 = vmax.f32 %v317, 0.0
  %v382 = vmax.f32 %v318, 0.0
  %v383 = vmax.f32 %v319, 0.0
  %v384 = vmax.f32 %v320, 0.0
  %v385 = vmax.f32 %v321, 0.0
  %v386 = vmax.f32 %v322, 0.0
  %v387 = vmax.f32 %v323, 0.0
  %v388 = vmax.f32 %v324, 0.0
  %v389 = vmax.f32 %v325, 0.0
  %v390 = vmax.f32 %v326, 0.0
  %v391 = vmax.f32 %v327, 0.0
  %v392 = vmax.f32 %v328, 0.0
  %v393 = vmax.f32 %v329, 0.0
  %v394 = vmax.f32 %v330, 0.0
  %v395 = vmax.f32 %v331, 0.0
  %v396 = vmax.f32 %v332, 0.0
  %v397 = vmax.f32 %v333, 0.0
  %v398 = vmax.f32 %v334, 0.0
  %v399 = vmax.f32 %v335, 0.0
  %v400 = vmax.f32 %v336, 0.0
  %v401 = vmax.f32 %v337, 0.0
  %v402 = vmax.f32 %v338, 0.0
  %v403 = vmax.f32 %v339, 0.0
  %v404 = vmax.f32 %v340, 0.0
  %v405 = vmax.f32 %v341, 0.0
  %v406 = vmax.f32 %v342, 0.0
  %v407 = vmax.f32 %v343, 0.0
  %v408 = vmax.f32 %v344, 0.0
  %v409 = vmax.f32 %v345, 0.0
  %v410 = vmax.f32 %v346, 0.0
  %v411 = vmax.f32 %v347, 0.0
  %v412 = vmax.f32 %v348, 0.0
  %v413 = vmax.f32 %v349, 0.0
  %v414 = vmax.f32 %v350, 0.0
  %v415 = vmax.f32 %v351, 0.0
  %v416 = vmax.f32 %v352, 0.0
  %v417 = vmax.f32 %v353, 0.0
  %v418 = vmax.f32 %v354, 0.0
  %v419 = vmax.f32 %v355, 0.0
  %v420 = vmax.f32 %v356, 0.0
  %v421 = vmax.f32 %v357, 0.0
  %v422 = vmax.f32 %v358, 0.0
  %v423 = vmax.f32 %v359, 0.0
  %v424 = vmax.f32 %v360, 0.0
  %v425 = vmax.f32 %v361, 0.0
  %v426 = vmax.f32 %v362, 0.0
  %v427 = vmax.f32 %v363, 0.0
  %v428 = vmax.f32 %v364, 0.0
  %v429 = vmax.f32 %v365, 0.0
  %v430 = vmax.f32 %v366, 0.0
  %v431 = vmax.f32 %v367, 0.0
  %v432 = vmax.f32 %v368, 0.0
  %v433 = vmax.f32 %v369, 0.0
  %v434 = vmax.f32 %v370, 0.0
  %v435 = vmax.f32 %v371, 0.0
  %v436 = vmax.f32 %v372, 0.0
  %v437 = vmax.f32 %v373, 0.0
  %438 = vst [vmem:[%s3] sm:$0xff] %v374
  %439 = vst [vmem:[%s3 + $0x8] sm:$0xff] %v375
  %440 = vst [vmem:[%s3 + $0x10] sm:$0xff] %v376
  %441 = vst [vmem:[%s3 + $0x18] sm:$0xff] %v377
  %442 = vst [vmem:[%s3 + $0x20] sm:$0xff] %v378
  %443 = vst [vmem:[%s3 + $0x28] sm:$0xff] %v379
  %444 = vst [vmem:[%s3 + $0x30] sm:$0xff] %v380
  %445 = vst [vmem:[%s3 + $0x38] sm:$0xff] %v381
  %446 = vst [vmem:[%s3 + $0x40] sm:$0xff] %v382
  %447 = vst [vmem:[%s3 + $0x48] sm:$0xff] %v383
  %448 = vst [vmem:[%s3 + $0x50] sm:$0xff] %v384
  %449 = vst [vmem:[%s3 + $0x58] sm:$0xff] %v385
  %450 = vst [vmem:[%s3 + $0x60] sm:$0xff] %v386
  %451 = vst [vmem:[%s3 + $0x68] sm:$0xff] %v387
  %452 = vst [vmem:[%s3 + $0x70] sm:$0xff] %v388
  %453 = vst [vmem:[%s3 + $0x78] sm:$0xff] %v389
  %454 = vst [vmem:[%s3 + $0x80] sm:$0xff] %v390
  %455 = vst [vmem:[%s3 + $0x88] sm:$0xff] %v391
  %456 = vst [vmem:[%s3 + $0x90] sm:$0xff] %v392
  %457 = vst [vmem:[%s3 + $0x98] sm:$0xff] %v393
  %458 = vst [vmem:[%s3 + $0xa0] sm:$0xff] %v394
  %459 = vst [vmem:[%s3 + $0xa8] sm:$0xff] %v395
  %460 = vst [vmem:[%s3 + $0xb0] sm:$0xff] %v396
  %461 = vst [vmem:[%s3 + $0xb8] sm:$0xff] %v397
  %462 = vst [vmem:[%s3 + $0xc0] sm:$0xff] %v398
  %463 = vst [vmem:[%s3 + $0xc8] sm:$0xff] %v399
  %464 = vst [vmem:[%s3 + $0xd0] sm:$0xff] %v400
  %465 = vst [vmem:[%s3 + $0xd8] sm:$0xff] %v401
  %466 = vst [vmem:[%s3 + $0xe0] sm:$0xff] %v402
  %467 = vst [vmem:[%s3 + $0xe8] sm:$0xff] %v403
  %468 = vst [vmem:[%s3 + $0xf0] sm:$0xff] %v404
  %469 = vst [vmem:[%s3 + $0xf8] sm:$0xff] %v405
  %470 = vst [vmem:[%s3 + $0x100] sm:$0xff] %v406
  %471 = vst [vmem:[%s3 + $0x108] sm:$0xff] %v407
  %472 = vst [vmem:[%s3 + $0x110] sm:$0xff] %v408
  %473 = vst [vmem:[%s3 + $0x118] sm:$0xff] %v409
  %474 = vst [vmem:[%s3 + $0x120] sm:$0xff] %v410
  %475 = vst [vmem:[%s3 + $0x128] sm:$0xff] %v411
  %476 = vst [vmem:[%s3 + $0x130] sm:$0xff] %v412
  %477 = vst [vmem:[%s3 + $0x138] sm:$0xff] %v413
  %478 = vst [vmem:[%s3 + $0x140] sm:$0xff] %v414
  %479 = vst [vmem:[%s3 + $0x148] sm:$0xff] %v415
  %480 = vst [vmem:[%s3 + $0x150] sm:$0xff] %v416
  %481 = vst [vmem:[%s3 + $0x158] sm:$0xff] %v417
  %482 = vst [vmem:[%s3 + $0x160] sm:$0xff] %v418
  %483 = vst [vmem:[%s3 + $0x168] sm:$0xff] %v419
  %484 = vst [vmem:[%s3 + $0x170] sm:$0xff] %v420
  %485 = vst [vmem:[%s3 + $0x178] sm:$0xff] %v421
  %486 = vst [vmem:[%s3 + $0x180] sm:$0xff] %v422
  %487 = vst [vmem:[%s3 + $0x188] sm:$0xff] %v423
  %488 = vst [vmem:[%s3 + $0x190] sm:$0xff] %v424
  %489 = vst [vmem:[%s3 + $0x198] sm:$0xff] %v425
  %490 = vst [vmem:[%s3 + $0x1a0] sm:$0xff] %v426
  %491 = vst [vmem:[%s3 + $0x1a8] sm:$0xff] %v427
  %492 = vst [vmem:[%s3 + $0x1b0] sm:$0xff] %v428
  %493 = vst [vmem:[%s3 + $0x1b8] sm:$0xff] %v429
  %494 = vst [vmem:[%s3 + $0x1c0] sm:$0xff] %v430
  %495 = vst [vmem:[%s3 + $0x1c8] sm:$0xff] %v431
  %496 = vst [vmem:[%s3 + $0x1d0] sm:$0xff] %v432
  %497 = vst [vmem:[%s3 + $0x1d8] sm:$0xff] %v433
  %498 = vst [vmem:[%s3 + $0x1e0] sm:$0xff] %v434
  %499 = vst [vmem:[%s3 + $0x1e8] sm:$0xff] %v435
  %500 = vst [vmem:[%s3 + $0x1f0] sm:$0xff] %v436
  %501 = vst [vmem:[%s3 + $0x1f8] sm:$0xff] %v437
  // Predicated region
  $region14: #{up_conv_forward.3} parent=0 // pred_check
    _
  $region15: #{up_conv_forward.3} parent=0 // pred_check_branch
    %503 = sbr.rel (0) target = $region17
  $region16: #{up_conv_forward.3} parent=0 // pred_region
    _
  $region17: #{up_conv_forward.3} parent=0 // pred_fallthru
    _
  // Predicated region
  $region18: #{up_conv_forward.3} parent=0 // pred_check
    _
  $region19: #{up_conv_forward.3} parent=0 // pred_check_branch
    %505 = sbr.rel (0) target = $region21
  $region20: #{up_conv_forward.3} parent=0 // pred_region
    _
  $region21: #{up_conv_forward.3} parent=0 // pred_fallthru
    _

// kernel: up_conv_forward.2
$region0: #{up_conv_forward.2}
  #allocation0 [shape = 'u32[]', space=smem, size = 0x4, offset = 0x4, fixed_abs, tag = 'smem constant byte address 0x4 - core index']
  #allocation1 [shape = 'u32[144,128]{1,0:T(1,128)}', space=vmem, size = 0x12000, scoped, tag = 'internal scratch']
  %s0 = inlined_call_operand.vmem [shape: bf16[2,18,18,4], index: 0, kind: input, shape index: {}]
  %s1 = inlined_call_operand.vmem [shape: bf16[3,3,4,128], index: 1, kind: input, shape index: {}]
  %s2 = inlined_call_operand.vmem [shape: f32[1,128], index: 2, kind: input, shape index: {}]
  %s3 = inlined_call_operand.vmem [shape: f32[2,256,128], index: 3, kind: output, shape index: {0}]
  %s4 = inlined_call_operand.vmem [shape: f32[2,2,128], index: 4, kind: output, shape index: {1}]
  %5 = xla_tuple %s3, %s4
  %s6 = sld [smem:[#allocation0]]
  $region53: #{up_conv_forward.2} parent=0
    _
  %s8 = ssub.s32 1, %s6
  %s9 = scalar_select 0, %s8, %s6
  loop: start=0, step=1, limit=4
  $region2: #{up_conv_forward.2} parent=0 // loop_pre_header
    _
  $region3: #{up_conv_forward.2} parent=0 // loop_header
    %s11 = sphi 0, %s15
    %p12 = scmp.ge.s32.totalorder %s11, 4
    %s18 = sphi 0, %s30
    %s19 = sphi 0, %s26
    %s20 = sphi 0, %s18
    %s21 = sphi 0, %s19
    %s22 = sphi 0, %s20
    %s23 = sphi 0, %s21
    %s33 = sphi 0, %s35
    %s36 = sphi 0, %s33
    %s37 = sphi 0, %s36
    %s53 = sphi 0, %s37
    %s59 = sphi 0, %s61
    %s62 = sphi 0, %s59
    %s63 = sphi 0, %s62
    %s79 = sphi 0, %s63
    %s85 = sphi 0, %s87
    %s88 = sphi 0, %s85
    %s89 = sphi 0, %s88
    %s105 = sphi 0, %s89
    %s113 = sphi 0, %s115
    %s116 = sphi 0, %s113
    %s117 = sphi 0, %s116
    %s133 = sphi 0, %s117
    %s141 = sphi 0, %s143
    %s144 = sphi 0, %s141
    %s145 = sphi 0, %s144
    %s161 = sphi 0, %s145
  $region4: #{up_conv_forward.2} parent=0 // loop_header_branch
    %14 = sbr.rel (%p12) target = $region8
  $region5: #{up_conv_forward.2} parent=0 // loop_body
    %s16 = ssub.s32 %s11, 1
    %s17 = ssub.s32 %s11, 2
    %s24 = sadd.s32 1, %s19
    %p25 = scmp.ge.s32.totalorder %s24, 2
    %s26 = scalar_select %p25, 0, %s24
    %s27 = sadd.s32 1, %s18
    %s28 = scalar_select %p25, %s27, %s18
    %p29 = scmp.ge.s32.totalorder %s28, 1
    %s30 = scalar_select %p29, 0, %s28
    %s31 = ssub.s32 %s19, %s26
    %p32 = scmp.eq.s32.totalorder %s31, 0
    %s34 = sadd.s32 %s33, 1
    %s35 = scalar_select %p32, %s33, %s34
    %p38 = pneg %p32
    %p39 = scmp.eq.s32.totalorder %s11, 1
    %p40 = por %p38, %p39
    %p41 = scmp.ne.s32.totalorder %s33, %s36
    %p42 = scmp.eq.s32.totalorder %s11, 0
    %p43 = por %p41, %p42
    %p44 = scmp.ne.s32.totalorder %s33, %s36
    %p45 = scmp.eq.s32.totalorder %s16, 1
    %p46 = por %p44, %p45
    %p47 = scmp.ne.s32.totalorder %s36, %s37
    %p48 = scmp.eq.s32.totalorder %s16, 0
    %p49 = por %p47, %p48
    %p50 = scmp.ne.s32.totalorder %s36, %s37
    %p51 = scmp.eq.s32.totalorder %s17, 1
    %p52 = por %p50, %p51
    %p54 = scmp.ne.s32.totalorder %s37, %s53
    %p55 = scmp.eq.s32.totalorder %s17, 0
    %p56 = por %p54, %p55
    %s57 = ssub.s32 %s18, %s30
    %p58 = scmp.eq.s32.totalorder %s57, 0
    %s60 = sadd.s32 %s59, 1
    %s61 = scalar_select %p58, %s59, %s60
    %p64 = pneg %p58
    %p65 = scmp.eq.s32.totalorder %s11, 1
    %p66 = por %p64, %p65
    %p67 = scmp.ne.s32.totalorder %s59, %s62
    %p68 = scmp.eq.s32.totalorder %s11, 0
    %p69 = por %p67, %p68
    %p70 = scmp.ne.s32.totalorder %s59, %s62
    %p71 = scmp.eq.s32.totalorder %s16, 1
    %p72 = por %p70, %p71
    %p73 = scmp.ne.s32.totalorder %s62, %s63
    %p74 = scmp.eq.s32.totalorder %s16, 0
    %p75 = por %p73, %p74
    %p76 = scmp.ne.s32.totalorder %s62, %s63
    %p77 = scmp.eq.s32.totalorder %s17, 1
    %p78 = por %p76, %p77
    %p80 = scmp.ne.s32.totalorder %s63, %s79
    %p81 = scmp.eq.s32.totalorder %s17, 0
    %p82 = por %p80, %p81
    %s83 = ssub.s32 %s18, %s30
    %p84 = scmp.eq.s32.totalorder %s83, 0
    %s86 = sadd.s32 %s85, 1
    %s87 = scalar_select %p84, %s85, %s86
    %p90 = pneg %p84
    %p91 = scmp.eq.s32.totalorder %s11, 1
    %p92 = por %p90, %p91
    %p93 = scmp.ne.s32.totalorder %s85, %s88
    %p94 = scmp.eq.s32.totalorder %s11, 0
    %p95 = por %p93, %p94
    %p96 = scmp.ne.s32.totalorder %s85, %s88
    %p97 = scmp.eq.s32.totalorder %s16, 1
    %p98 = por %p96, %p97
    %p99 = scmp.ne.s32.totalorder %s88, %s89
    %p100 = scmp.eq.s32.totalorder %s16, 0
    %p101 = por %p99, %p100
    %p102 = scmp.ne.s32.totalorder %s88, %s89
    %p103 = scmp.eq.s32.totalorder %s17, 1
    %p104 = por %p102, %p103
    %p106 = scmp.ne.s32.totalorder %s89, %s105
    %p107 = scmp.eq.s32.totalorder %s17, 0
    %p108 = por %p106, %p107
    %s109 = ssub.s32 %s19, %s26
    %s110 = ssub.s32 %s18, %s30
    %s111 = sor.u32 %s109, %s110
    %p112 = scmp.eq.s32.totalorder %s111, 0
    %s114 = sadd.s32 %s113, 1
    %s115 = scalar_select %p112, %s113, %s114
    %p118 = pneg %p112
    %p119 = scmp.eq.s32.totalorder %s11, 1
    %p120 = por %p118, %p119
    %p121 = scmp.ne.s32.totalorder %s113, %s116
    %p122 = scmp.eq.s32.totalorder %s11, 0
    %p123 = por %p121, %p122
    %p124 = scmp.ne.s32.totalorder %s113, %s116
    %p125 = scmp.eq.s32.totalorder %s16, 1
    %p126 = por %p124, %p125
    %p127 = scmp.ne.s32.totalorder %s116, %s117
    %p128 = scmp.eq.s32.totalorder %s16, 0
    %p129 = por %p127, %p128
    %p130 = scmp.ne.s32.totalorder %s116, %s117
    %p131 = scmp.eq.s32.totalorder %s17, 1
    %p132 = por %p130, %p131
    %p134 = scmp.ne.s32.totalorder %s117, %s133
    %p135 = scmp.eq.s32.totalorder %s17, 0
    %p136 = por %p134, %p135
    %s137 = ssub.s32 %s19, %s26
    %s138 = ssub.s32 %s18, %s30
    %s139 = sor.u32 %s137, %s138
    %p140 = scmp.eq.s32.totalorder %s139, 0
    %s142 = sadd.s32 %s141, 1
    %s143 = scalar_select %p140, %s141, %s142
    %p146 = pneg %p140
    %p147 = scmp.eq.s32.totalorder %s11, 1
    %p148 = por %p146, %p147
    %p149 = scmp.ne.s32.totalorder %s141, %s144
    %p150 = scmp.eq.s32.totalorder %s11, 0
    %p151 = por %p149, %p150
    %p152 = scmp.ne.s32.totalorder %s141, %s144
    %p153 = scmp.eq.s32.totalorder %s16, 1
    %p154 = por %p152, %p153
    %p155 = scmp.ne.s32.totalorder %s144, %s145
    %p156 = scmp.eq.s32.totalorder %s16, 0
    %p157 = por %p155, %p156
    %p158 = scmp.ne.s32.totalorder %s144, %s145
    %p159 = scmp.eq.s32.totalorder %s17, 1
    %p160 = por %p158, %p159
    %p162 = scmp.ne.s32.totalorder %s145, %s161
    %p163 = scmp.eq.s32.totalorder %s17, 0
    %p164 = por %p162, %p163
    %p165 = scmp.le.s32.totalorder 1, %s11
    %p166 = scmp.lt.s32.totalorder %s11, 3
    %p167 = pnand %p165, %p166
    %p168 = pneg %p167
    // Predicated region
    $region9: #{up_conv_forward.2} parent=5 // pred_check
      _
    $region10: #{up_conv_forward.2} parent=5 // pred_check_branch
      %170 = sbr.rel (%p167) target = $region12
    $region11: #{up_conv_forward.2} parent=5 // pred_region
      %s171 = ssub.s32 %s11, 1
      // Predicated region
      $region13: #{up_conv_forward.2} parent=11 // pred_check
        %p172 = pneg %p75
      $region14: #{up_conv_forward.2} parent=11 // pred_check_branch
        %174 = sbr.rel (%p172) target = $region16
      $region15: #{up_conv_forward.2} parent=11 // pred_region
        %p175 = scmp.lt.s32.totalorder %s20, 0
        %s176 = scalar_select %p175, %s20, 0
        %s177 = smul.addr %s176, 2
        %s178 = scalar_lea.vmem %s1, %s177
      $region16: #{up_conv_forward.2} parent=11 // pred_fallthru
        _
      // Predicated region
      $region17: #{up_conv_forward.2} parent=11 // pred_check
        %p179 = pneg %p101
      $region18: #{up_conv_forward.2} parent=11 // pred_check_branch
        %181 = sbr.rel (%p179) target = $region20
      $region19: #{up_conv_forward.2} parent=11 // pred_region
        %p182 = scmp.lt.s32.totalorder %s20, 0
        %s183 = scalar_select %p182, %s20, 0
        %s184 = scalar_lea.vmem %s2, %s183
      $region20: #{up_conv_forward.2} parent=11 // pred_fallthru
        _
    $region12: #{up_conv_forward.2} parent=5 // pred_fallthru
      _
    %p185 = scmp.lt.s32.totalorder %s11, 2
    // Predicated region
    $region21: #{up_conv_forward.2} parent=5 // pred_check
      %p186 = pneg %p185
    $region22: #{up_conv_forward.2} parent=5 // pred_check_branch
      %188 = sbr.rel (%p186) target = $region24
    $region23: #{up_conv_forward.2} parent=5 // pred_region
      // Predicated region
      $region25: #{up_conv_forward.2} parent=23 // pred_check
        %p189 = pneg %p43
      $region26: #{up_conv_forward.2} parent=23 // pred_check_branch
        %191 = sbr.rel (%p189) target = $region28
      $region27: #{up_conv_forward.2} parent=23 // pred_region
        %p192 = scmp.lt.s32.totalorder %s19, 1
        %s193 = scalar_select %p192, %s19, 1
        %s194 = smul.addr %s193, 54
        %s195 = smul.addr %s194, 4
        %s196 = scalar_lea.vmem %s0, %s195
      $region28: #{up_conv_forward.2} parent=23 // pred_fallthru
        _
    $region24: #{up_conv_forward.2} parent=5 // pred_fallthru
      _
    %p197 = scmp.le.s32.totalorder 1, %s11
    %p198 = scmp.lt.s32.totalorder %s11, 3
    %p199 = pnand %p197, %p198
    %p200 = pneg %p199
    // Predicated region
    $region29: #{up_conv_forward.2} parent=5 // pred_check
      _
    $region30: #{up_conv_forward.2} parent=5 // pred_check_branch
      %202 = sbr.rel (%p199) target = $region32
    $region31: #{up_conv_forward.2} parent=5 // pred_region
      %s203 = ssub.s32 %s11, 1
      %p204 = scmp.lt.s32.totalorder %s21, 1
      %s205 = scalar_select %p204, %s21, 1
      %s206 = smul.addr %s205, 54
      %s207 = smul.addr %s206, 4
      %s208 = scalar_lea.vmem %s0, %s207
      %p209 = pneg %p49
      %p210 = pneg %p46
      %p211 = scmp.lt.s32.totalorder %s20, 0
      %s212 = scalar_select %p211, %s20, 0
      %s213 = smul.addr %s212, 2
      %s214 = scalar_lea.vmem %s1, %s213
      %p215 = pneg %p75
      %p216 = pneg %p72
      %p217 = scmp.lt.s32.totalorder %s20, 0
      %s218 = scalar_select %p217, %s20, 0
      %s219 = scalar_lea.vmem %s2, %s218
      %p220 = pneg %p101
      %p221 = pneg %p98
      %p222 = pneg %p129
      %p223 = pneg %p126
      %p224 = scmp.lt.s32.totalorder %s21, 1
      %s225 = scalar_select %p224, %s21, 1
      %p226 = scmp.lt.s32.totalorder %s20, 0
      %s227 = scalar_select %p226, %s20, 0
      %s228 = smul.addr %s225, 32
      %s229 = sadd.s32 %s227, %s228
      %s230 = smul.addr %s229, 8
      %s231 = scalar_lea.vmem %s3, %s230
      %p232 = pneg %p157
      %p233 = pneg %p154
      %p234 = scmp.lt.s32.totalorder %s21, 1
      %s235 = scalar_select %p234, %s21, 1
      %p236 = scmp.lt.s32.totalorder %s20, 0
      %s237 = scalar_select %p236, %s20, 0
      %s238 = sadd.s32 %s237, %s235
      %s239 = smul.addr %s238, 2
      %s240 = scalar_lea.vmem %s4, %s239
      %p241 = scmp.lt.s32.totalorder %s21, 1
      %s242 = scalar_select %p241, %s21, 1
      %s243 = smul.addr %s242, 54
      %s244 = smul.addr %s243, 4
      %s245 = scalar_lea.vmem %s0, %s244
      %p246 = scmp.lt.s32.totalorder %s20, 0
      %s247 = scalar_select %p246, %s20, 0
      %s248 = smul.addr %s247, 2
      %s249 = scalar_lea.vmem %s1, %s248
      %p250 = scmp.lt.s32.totalorder %s20, 0
      %s251 = scalar_select %p250, %s20, 0
      %s252 = scalar_lea.vmem %s2, %s251
      %p253 = scmp.lt.s32.totalorder %s21, 1
      %s254 = scalar_select %p253, %s21, 1
      %p255 = scmp.lt.s32.totalorder %s20, 0
      %s256 = scalar_select %p255, %s20, 0
      %s257 = smul.addr %s254, 32
      %s258 = sadd.s32 %s256, %s257
      %s259 = smul.addr %s258, 8
      %s260 = scalar_lea.vmem %s3, %s259
      %p261 = scmp.lt.s32.totalorder %s21, 1
      %s262 = scalar_select %p261, %s21, 1
      %p263 = scmp.lt.s32.totalorder %s20, 0
      %s264 = scalar_select %p263, %s20, 0
      %s265 = sadd.s32 %s264, %s262
      %s266 = smul.addr %s265, 2
      %s267 = scalar_lea.vmem %s4, %s266
      %v269 = vld [vmem:[%s245] sm:$0xf]
      %v270 = vld [vmem:[%s245 + $0x4] sm:$0xf]
      %v271 = vld [vmem:[%s245 + $0x8] sm:$0x1]
      %v272 = vld [vmem:[%s245 + $0xc] sm:$0xf]
      %v273 = vld [vmem:[%s245 + $0x10] sm:$0xf]
      %v274 = vld [vmem:[%s245 + $0x14] sm:$0x1]
      %v275 = vld [vmem:[%s245 + $0x18] sm:$0xf]
      %v276 = vld [vmem:[%s245 + $0x1c] sm:$0xf]
      %v277 = vld [vmem:[%s245 + $0x20] sm:$0x1]
      %v278 = vld [vmem:[%s245 + $0x24] sm:$0xf]
      %v279 = vld [vmem:[%s245 + $0x28] sm:$0xf]
      %v280 = vld [vmem:[%s245 + $0x2c] sm:$0x1]
      %v281 = vld [vmem:[%s245 + $0x30] sm:$0xf]
      %v282 = vld [vmem:[%s245 + $0x34] sm:$0xf]
      %v283 = vld [vmem:[%s245 + $0x38] sm:$0x1]
      %v284 = vld [vmem:[%s245 + $0x3c] sm:$0xf]
      %v285 = vld [vmem:[%s245 + $0x40] sm:$0xf]
      %v286 = vld [vmem:[%s245 + $0x44] sm:$0x1]
      %v287 = vld [vmem:[%s245 + $0x48] sm:$0xf]
      %v288 = vld [vmem:[%s245 + $0x4c] sm:$0xf]
      %v289 = vld [vmem:[%s245 + $0x50] sm:$0x1]
      %v290 = vld [vmem:[%s245 + $0x54] sm:$0xf]
      %v291 = vld [vmem:[%s245 + $0x58] sm:$0xf]
      %v292 = vld [vmem:[%s245 + $0x5c] sm:$0x1]
      %v293 = vld [vmem:[%s245 + $0x60] sm:$0xf]
      %v294 = vld [vmem:[%s245 + $0x64] sm:$0xf]
      %v295 = vld [vmem:[%s245 + $0x68] sm:$0x1]
      %v296 = vld [vmem:[%s245 + $0x6c] sm:$0xf]
      %v297 = vld [vmem:[%s245 + $0x70] sm:$0xf]
      %v298 = vld [vmem:[%s245 + $0x74] sm:$0x1]
      %v299 = vld [vmem:[%s245 + $0x78] sm:$0xf]
      %v300 = vld [vmem:[%s245 + $0x7c] sm:$0xf]
      %v301 = vld [vmem:[%s245 + $0x80] sm:$0x1]
      %v302 = vld [vmem:[%s245 + $0x84] sm:$0xf]
      %v303 = vld [vmem:[%s245 + $0x88] sm:$0xf]
      %v304 = vld [vmem:[%s245 + $0x8c] sm:$0x1]
      %v305 = vld [vmem:[%s245 + $0x90] sm:$0xf]
      %v306 = vld [vmem:[%s245 + $0x94] sm:$0xf]
      %v307 = vld [vmem:[%s245 + $0x98] sm:$0x1]
      %v308 = vld [vmem:[%s245 + $0x9c] sm:$0xf]
      %v309 = vld [vmem:[%s245 + $0xa0] sm:$0xf]
      %v310 = vld [vmem:[%s245 + $0xa4] sm:$0x1]
      %v311 = vld [vmem:[%s245 + $0xa8] sm:$0xf]
      %v312 = vld [vmem:[%s245 + $0xac] sm:$0xf]
      %v313 = vld [vmem:[%s245 + $0xb0] sm:$0x1]
      %v314 = vld [vmem:[%s245 + $0xb4] sm:$0xf]
      %v315 = vld [vmem:[%s245 + $0xb8] sm:$0xf]
      %v316 = vld [vmem:[%s245 + $0xbc] sm:$0x1]
      %v317 = vld [vmem:[%s245 + $0xc0] sm:$0xf]
      %v318 = vld [vmem:[%s245 + $0xc4] sm:$0xf]
      %v319 = vld [vmem:[%s245 + $0xc8] sm:$0x1]
      %v320 = vld [vmem:[%s245 + $0xcc] sm:$0xf]
      %v321 = vld [vmem:[%s245 + $0xd0] sm:$0xf]
      %v322 = vld [vmem:[%s245 + $0xd4] sm:$0x1]
      %v323 = vld [vmem:[%s249] sm:$0x3]
      %vm324 = vsmask.f32 3328
      %vm325 = vsmask.f32 7440
      %vm326 = vmor %vm324, %vm325
      %v328 = vshrl.u32 %v269, 16
      %v330 = vrot.slane %v328, 4
      %v331 = vshll.u32 %v269, 16
      %v333 = vrot.slane %v331, 5
      %v334 = vor.u32 %v330, %v333
      %v335 = vrot.slane %v334, 4
      %v337 = vshll.u32 %v270, 16
      %v339 = vrot.slane %v337, 5
      %v340 = vsel %vm326, %v335, %v339
      %v341 = vshrl.u32 %v270, 16
      %v343 = vrot.slane %v341, 4
      %v344 = vor.u32 %v343, %v339
      %v345 = vrot.slane %v344, 4
      %v347 = vshll.u32 %v271, 16
      %v349 = vrot.slane %v347, 5
      %v350 = vsel %vm326, %v345, %v349
      %v352 = vshrl.u32 %v272, 16
      %v354 = vrot.slane %v352, 4
      %v355 = vshll.u32 %v272, 16
      %v357 = vrot.slane %v355, 5
      %v358 = vor.u32 %v354, %v357
      %v359 = vrot.slane %v358, 4
      %v361 = vshll.u32 %v273, 16
      %v363 = vrot.slane %v361, 5
      %v364 = vsel %vm326, %v359, %v363
      %v365 = vshrl.u32 %v273, 16
      %v367 = vrot.slane %v365, 4
      %v368 = vor.u32 %v367, %v363
      %v369 = vrot.slane %v368, 4
      %v371 = vshll.u32 %v274, 16
      %v373 = vrot.slane %v371, 5
      %v374 = vsel %vm326, %v369, %v373
      %v376 = vshrl.u32 %v275, 16
      %v378 = vrot.slane %v376, 4
      %v379 = vshll.u32 %v275, 16
      %v381 = vrot.slane %v379, 5
      %v382 = vor.u32 %v378, %v381
      %v383 = vrot.slane %v382, 4
      %v385 = vshll.u32 %v276, 16
      %v387 = vrot.slane %v385, 5
      %v388 = vsel %vm326, %v383, %v387
      %v389 = vshrl.u32 %v276, 16
      %v391 = vrot.slane %v389, 4
      %v392 = vor.u32 %v391, %v387
      %v393 = vrot.slane %v392, 4
      %v395 = vshll.u32 %v277, 16
      %v397 = vrot.slane %v395, 5
      %v398 = vsel %vm326, %v393, %v397
      %v400 = vshrl.u32 %v278, 16
      %v402 = vrot.slane %v400, 4
      %v403 = vshll.u32 %v278, 16
      %v405 = vrot.slane %v403, 5
      %v406 = vor.u32 %v402, %v405
      %v407 = vrot.slane %v406, 4
      %v409 = vshll.u32 %v279, 16
      %v411 = vrot.slane %v409, 5
      %v412 = vsel %vm326, %v407, %v411
      %v413 = vshrl.u32 %v279, 16
      %v415 = vrot.slane %v413, 4
      %v416 = vor.u32 %v415, %v411
      %v417 = vrot.slane %v416, 4
      %v419 = vshll.u32 %v280, 16
      %v421 = vrot.slane %v419, 5
      %v422 = vsel %vm326, %v417, %v421
      %v424 = vshrl.u32 %v281, 16
      %v426 = vrot.slane %v424, 4
      %v427 = vshll.u32 %v281, 16
      %v429 = vrot.slane %v427, 5
      %v430 = vor.u32 %v426, %v429
      %v431 = vrot.slane %v430, 4
      %v433 = vshll.u32 %v282, 16
      %v435 = vrot.slane %v433, 5
      %v436 = vsel %vm326, %v431, %v435
      %v437 = vshrl.u32 %v282, 16
      %v439 = vrot.slane %v437, 4
      %v440 = vor.u32 %v439, %v435
      %v441 = vrot.slane %v440, 4
      %v443 = vshll.u32 %v283, 16
      %v445 = vrot.slane %v443, 5
      %v446 = vsel %vm326, %v441, %v445
      %v448 = vshrl.u32 %v284, 16
      %v450 = vrot.slane %v448, 4
      %v451 = vshll.u32 %v284, 16
      %v453 = vrot.slane %v451, 5
      %v454 = vor.u32 %v450, %v453
      %v455 = vrot.slane %v454, 4
      %v457 = vshll.u32 %v285, 16
      %v459 = vrot.slane %v457, 5
      %v460 = vsel %vm326, %v455, %v459
      %v461 = vshrl.u32 %v285, 16
      %v463 = vrot.slane %v461, 4
      %v464 = vor.u32 %v463, %v459
      %v465 = vrot.slane %v464, 4
      %v467 = vshll.u32 %v286, 16
      %v469 = vrot.slane %v467, 5
      %v470 = vsel %vm326, %v465, %v469
      %v472 = vshrl.u32 %v287, 16
      %v474 = vrot.slane %v472, 4
      %v475 = vshll.u32 %v287, 16
      %v477 = vrot.slane %v475, 5
      %v478 = vor.u32 %v474, %v477
      %v479 = vrot.slane %v478, 4
      %v481 = vshll.u32 %v288, 16
      %v483 = vrot.slane %v481, 5
      %v484 = vsel %vm326, %v479, %v483
      %v485 = vshrl.u32 %v288, 16
      %v487 = vrot.slane %v485, 4
      %v488 = vor.u32 %v487, %v483
      %v489 = vrot.slane %v488, 4
      %v491 = vshll.u32 %v289, 16
      %v493 = vrot.slane %v491, 5
      %v494 = vsel %vm326, %v489, %v493
      %v496 = vshrl.u32 %v290, 16
      %v498 = vrot.slane %v496, 4
      %v499 = vshll.u32 %v290, 16
      %v501 = vrot.slane %v499, 5
      %v502 = vor.u32 %v498, %v501
      %v503 = vrot.slane %v502, 4
      %v505 = vshll.u32 %v291, 16
      %v507 = vrot.slane %v505, 5
      %v508 = vsel %vm326, %v503, %v507
      %v509 = vshrl.u32 %v291, 16
      %v511 = vrot.slane %v509, 4
      %v512 = vor.u32 %v511, %v507
      %v513 = vrot.slane %v512, 4
      %v515 = vshll.u32 %v292, 16
      %v517 = vrot.slane %v515, 5
      %v518 = vsel %vm326, %v513, %v517
      %v520 = vshrl.u32 %v293, 16
      %v522 = vrot.slane %v520, 4
      %v523 = vshll.u32 %v293, 16
      %v525 = vrot.slane %v523, 5
      %v526 = vor.u32 %v522, %v525
      %v527 = vrot.slane %v526, 4
      %v529 = vshll.u32 %v294, 16
      %v531 = vrot.slane %v529, 5
      %v532 = vsel %vm326, %v527, %v531
      %v533 = vshrl.u32 %v294, 16
      %v535 = vrot.slane %v533, 4
      %v536 = vor.u32 %v535, %v531
      %v537 = vrot.slane %v536, 4
      %v539 = vshll.u32 %v295, 16
      %v541 = vrot.slane %v539, 5
      %v542 = vsel %vm326, %v537, %v541
      %v544 = vshrl.u32 %v296, 16
      %v546 = vrot.slane %v544, 4
      %v547 = vshll.u32 %v296, 16
      %v549 = vrot.slane %v547, 5
      %v550 = vor.u32 %v546, %v549
      %v551 = vrot.slane %v550, 4
      %v553 = vshll.u32 %v297, 16
      %v555 = vrot.slane %v553, 5
      %v556 = vsel %vm326, %v551, %v555
      %v557 = vshrl.u32 %v297, 16
      %v559 = vrot.slane %v557, 4
      %v560 = vor.u32 %v559, %v555
      %v561 = vrot.slane %v560, 4
      %v563 = vshll.u32 %v298, 16
      %v565 = vrot.slane %v563, 5
      %v566 = vsel %vm326, %v561, %v565
      %v568 = vshrl.u32 %v299, 16
      %v570 = vrot.slane %v568, 4
      %v571 = vshll.u32 %v299, 16
      %v573 = vrot.slane %v571, 5
      %v574 = vor.u32 %v570, %v573
      %v575 = vrot.slane %v574, 4
      %v577 = vshll.u32 %v300, 16
      %v579 = vrot.slane %v577, 5
      %v580 = vsel %vm326, %v575, %v579
      %v581 = vshrl.u32 %v300, 16
      %v583 = vrot.slane %v581, 4
      %v584 = vor.u32 %v583, %v579
      %v585 = vrot.slane %v584, 4
      %v587 = vshll.u32 %v301, 16
      %v589 = vrot.slane %v587, 5
      %v590 = vsel %vm326, %v585, %v589
      %v592 = vshrl.u32 %v302, 16
      %v594 = vrot.slane %v592, 4
      %v595 = vshll.u32 %v302, 16
      %v597 = vrot.slane %v595, 5
      %v598 = vor.u32 %v594, %v597
      %v599 = vrot.slane %v598, 4
      %v601 = vshll.u32 %v303, 16
      %v603 = vrot.slane %v601, 5
      %v604 = vsel %vm326, %v599, %v603
      %v605 = vshrl.u32 %v303, 16
      %v607 = vrot.slane %v605, 4
      %v608 = vor.u32 %v607, %v603
      %v609 = vrot.slane %v608, 4
      %v611 = vshll.u32 %v304, 16
      %v613 = vrot.slane %v611, 5
      %v614 = vsel %vm326, %v609, %v613
      %v616 = vshrl.u32 %v305, 16
      %v618 = vrot.slane %v616, 4
      %v619 = vshll.u32 %v305, 16
      %v621 = vrot.slane %v619, 5
      %v622 = vor.u32 %v618, %v621
      %v623 = vrot.slane %v622, 4
      %v625 = vshll.u32 %v306, 16
      %v627 = vrot.slane %v625, 5
      %v628 = vsel %vm326, %v623, %v627
      %v629 = vshrl.u32 %v306, 16
      %v631 = vrot.slane %v629, 4
      %v632 = vor.u32 %v631, %v627
      %v633 = vrot.slane %v632, 4
      %v635 = vshll.u32 %v307, 16
      %v637 = vrot.slane %v635, 5
      %v638 = vsel %vm326, %v633, %v637
      %v640 = vshrl.u32 %v308, 16
      %v642 = vrot.slane %v640, 4
      %v643 = vshll.u32 %v308, 16
      %v645 = vrot.slane %v643, 5
      %v646 = vor.u32 %v642, %v645
      %v647 = vrot.slane %v646, 4
      %v649 = vshll.u32 %v309, 16
      %v651 = vrot.slane %v649, 5
      %v652 = vsel %vm326, %v647, %v651
      %v653 = vshrl.u32 %v309, 16
      %v655 = vrot.slane %v653, 4
      %v656 = vor.u32 %v655, %v651
      %v657 = vrot.slane %v656, 4
      %v659 = vshll.u32 %v310, 16
      %v661 = vrot.slane %v659, 5
      %v662 = vsel %vm326, %v657, %v661
      %v664 = vshrl.u32 %v311, 16
      %v666 = vrot.slane %v664, 4
      %v667 = vshll.u32 %v311, 16
      %v669 = vrot.slane %v667, 5
      %v670 = vor.u32 %v666, %v669
      %v671 = vrot.slane %v670, 4
      %v673 = vshll.u32 %v312, 16
      %v675 = vrot.slane %v673, 5
      %v676 = vsel %vm326, %v671, %v675
      %v677 = vshrl.u32 %v312, 16
      %v679 = vrot.slane %v677, 4
      %v680 = vor.u32 %v679, %v675
      %v681 = vrot.slane %v680, 4
      %v683 = vshll.u32 %v313, 16
      %v685 = vrot.slane %v683, 5
      %v686 = vsel %vm326, %v681, %v685
      %v688 = vshrl.u32 %v314, 16
      %v690 = vrot.slane %v688, 4
      %v691 = vshll.u32 %v314, 16
      %v693 = vrot.slane %v691, 5
      %v694 = vor.u32 %v690, %v693
      %v695 = vrot.slane %v694, 4
      %v697 = vshll.u32 %v315, 16
      %v699 = vrot.slane %v697, 5
      %v700 = vsel %vm326, %v695, %v699
      %v701 = vshrl.u32 %v315, 16
      %v703 = vrot.slane %v701, 4
      %v704 = vor.u32 %v703, %v699
      %v705 = vrot.slane %v704, 4
      %v707 = vshll.u32 %v316, 16
      %v709 = vrot.slane %v707, 5
      %v710 = vsel %vm326, %v705, %v709
      %s711 = scalar_lea.vmem %s249, 2
      %v712 = vld [vmem:[%s711] sm:$0x3]
      %v713 = vunpack.c.l.b16 %v340
      %v714 = vunpack.c.l.b16 %v350
      %v715 = vunpack.c.l.b16 %v364
      %v716 = vunpack.c.l.b16 %v374
      %v717 = vunpack.c.l.b16 %v388
      %v718 = vunpack.c.l.b16 %v398
      %v719 = vunpack.c.l.b16 %v412
      %v720 = vunpack.c.l.b16 %v422
      %v721 = vunpack.c.l.b16 %v436
      %v722 = vunpack.c.l.b16 %v446
      %v723 = vunpack.c.l.b16 %v460
      %v724 = vunpack.c.l.b16 %v470
      %v725 = vunpack.c.l.b16 %v484
      %v726 = vunpack.c.l.b16 %v494
      %v727 = vunpack.c.l.b16 %v508
      %v728 = vunpack.c.l.b16 %v518
      %v729 = vunpack.c.l.b16 %v532
      %v730 = vunpack.c.l.b16 %v542
      %v731 = vunpack.c.l.b16 %v556
      %v732 = vunpack.c.l.b16 %v566
      %v733 = vunpack.c.l.b16 %v580
      %v734 = vunpack.c.l.b16 %v590
      %v735 = vunpack.c.l.b16 %v604
      %v736 = vunpack.c.l.b16 %v614
      %v737 = vunpack.c.l.b16 %v628
      %v738 = vunpack.c.l.b16 %v638
      %v739 = vunpack.c.l.b16 %v652
      %v740 = vunpack.c.l.b16 %v662
      %v741 = vunpack.c.l.b16 %v676
      %v742 = vunpack.c.l.b16 %v686
      %v743 = vunpack.c.l.b16 %v700
      %v744 = vunpack.c.l.b16 %v710
      %v745 = vpack.c.b16 %v714, %v713
      %v746 = vpack.c.b16 %v716, %v715
      %v747 = vpack.c.b16 %v718, %v717
      %v748 = vpack.c.b16 %v720, %v719
      %v749 = vpack.c.b16 %v722, %v721
      %v750 = vpack.c.b16 %v724, %v723
      %v751 = vpack.c.b16 %v726, %v725
      %v752 = vpack.c.b16 %v728, %v727
      %v753 = vpack.c.b16 %v730, %v729
      %v754 = vpack.c.b16 %v732, %v731
      %v755 = vpack.c.b16 %v734, %v733
      %v756 = vpack.c.b16 %v736, %v735
      %v757 = vpack.c.b16 %v738, %v737
      %v758 = vpack.c.b16 %v740, %v739
      %v759 = vpack.c.b16 %v742, %v741
      %v760 = vpack.c.b16 %v744, %v743
      %vm761 = vcmask 31744
      %v763 = vsel %vm761, %v745, 0
      %v766 = vsel %vm761, %v746, 0
      %v769 = vsel %vm761, %v747, 0
      %v772 = vsel %vm761, %v748, 0
      %v775 = vsel %vm761, %v749, 0
      %v778 = vsel %vm761, %v750, 0
      %v781 = vsel %vm761, %v751, 0
      %v784 = vsel %vm761, %v752, 0
      %v787 = vsel %vm761, %v753, 0
      %v790 = vsel %vm761, %v754, 0
      %v793 = vsel %vm761, %v755, 0
      %v796 = vsel %vm761, %v756, 0
      %v799 = vsel %vm761, %v757, 0
      %v802 = vsel %vm761, %v758, 0
      %v805 = vsel %vm761, %v759, 0
      %v808 = vsel %vm761, %v760, 0
      %vm810 = vcmask 1041408
      %v812 = vsel %vm810, %v712, 0
      %814 = vmatprep.subr.bf16.mxu0 0
      %815 = vmatpush1.bf16.msra.mxu0 %v812
      %816 = vmatprep.subr.bf16.mxu0 0
      %817 = vmatpush1.bf16.msra.mxu0 0
      %818 = vmatprep.subr.bf16.mxu0 0
      %819 = vmatpush1.bf16.msra.mxu0 0
      %820 = vmatprep.subr.bf16.mxu0 0
      %821 = vmatpush1.bf16.msra.mxu0 0
      %822 = vmatprep.subr.bf16.mxu0 0
      %823 = vmatpush1.bf16.msra.mxu0 0
      %824 = vmatprep.subr.bf16.mxu0 0
      %825 = vmatpush1.bf16.msra.mxu0 0
      %826 = vmatprep.subr.bf16.mxu0 0
      %827 = vmatpush1.bf16.msra.mxu0 0
      %828 = vmatprep.subr.bf16.mxu0 0
      %829 = vmatpush1.bf16.msra.mxu0 0
      %830 = vmatprep.subr.bf16.mxu0 0
      %831 = vmatpush1.bf16.msra.mxu0 0
      %832 = vmatprep.subr.bf16.mxu0 0
      %833 = vmatpush1.bf16.msra.mxu0 0
      %834 = vmatprep.subr.bf16.mxu0 0
      %835 = vmatpush1.bf16.msra.mxu0 0
      %836 = vmatprep.subr.bf16.mxu0 0
      %837 = vmatpush1.bf16.msra.mxu0 0
      %838 = vmatprep.subr.bf16.mxu0 0
      %839 = vmatpush1.bf16.msra.mxu0 0
      %840 = vmatprep.subr.bf16.mxu0 0
      %841 = vmatpush1.bf16.msra.mxu0 0
      %842 = vmatprep.subr.bf16.mxu0 0
      %843 = vmatpush1.bf16.msra.mxu0 0
      %844 = vmatprep.subr.bf16.mxu0 0
      %845 = vmatpush1.bf16.msra.mxu0 0
      %846 = vmatprep.mubr.bf16.mxu0 0
      %847 = vmatmul.mubr.bf16.gmra.mrb[0].mxu0 %v763
      %v848 = vpop.f32.mrb[0].mxu0
      %v849 = vadd.f32 0.0, %v848
      %v850 = vpop.f32.mrb[0].mxu0
      %v851 = vpop.f32.mrb[0].mxu0
      %v852 = vadd.f32 0.0, %v851
      %v853 = vpop.f32.mrb[0].mxu0
      %854 = vmatprep.mubr.bf16.mxu0 0
      %855 = vmatmul.mubr.bf16.gmra.mrb[0].mxu0 %v766
      %v856 = vpop.f32.mrb[0].mxu0
      %v857 = vadd.f32 0.0, %v856
      %v858 = vpop.f32.mrb[0].mxu0
      %v859 = vpop.f32.mrb[0].mxu0
      %v860 = vadd.f32 0.0, %v859
      %v861 = vpop.f32.mrb[0].mxu0
      %862 = vmatprep.mubr.bf16.mxu0 0
      %863 = vmatmul.mubr.bf16.gmra.mrb[0].mxu0 %v769
      %v864 = vpop.f32.mrb[0].mxu0
      %v865 = vadd.f32 0.0, %v864
      %v866 = vpop.f32.mrb[0].mxu0
      %v867 = vpop.f32.mrb[0].mxu0
      %v868 = vadd.f32 0.0, %v867
      %v869 = vpop.f32.mrb[0].mxu0
      %870 = vmatprep.mubr.bf16.mxu0 0
      %871 = vmatmul.mubr.bf16.gmra.mrb[0].mxu0 %v772
      %v872 = vpop.f32.mrb[0].mxu0
      %v873 = vadd.f32 0.0, %v872
      %v874 = vpop.f32.mrb[0].mxu0
      %v875 = vpop.f32.mrb[0].mxu0
      %v876 = vadd.f32 0.0, %v875
      %v877 = vpop.f32.mrb[0].mxu0
      %878 = vmatprep.mubr.bf16.mxu0 0
      %879 = vmatmul.mubr.bf16.gmra.mrb[0].mxu0 %v775
      %v880 = vpop.f32.mrb[0].mxu0
      %v881 = vadd.f32 0.0, %v880
      %v882 = vpop.f32.mrb[0].mxu0
      %v883 = vpop.f32.mrb[0].mxu0
      %v884 = vadd.f32 0.0, %v883
      %v885 = vpop.f32.mrb[0].mxu0
      %886 = vmatprep.mubr.bf16.mxu0 0
      %887 = vmatmul.mubr.bf16.gmra.mrb[0].mxu0 %v778
      %v888 = vpop.f32.mrb[0].mxu0
      %v889 = vadd.f32 0.0, %v888
      %v890 = vpop.f32.mrb[0].mxu0
      %v891 = vpop.f32.mrb[0].mxu0
      %v892 = vadd.f32 0.0, %v891
      %v893 = vpop.f32.mrb[0].mxu0
      %894 = vmatprep.mubr.bf16.mxu0 0
      %895 = vmatmul.mubr.bf16.gmra.mrb[0].mxu0 %v781
      %v896 = vpop.f32.mrb[0].mxu0
      %v897 = vadd.f32 0.0, %v896
      %v898 = vpop.f32.mrb[0].mxu0
      %v899 = vpop.f32.mrb[0].mxu0
      %v900 = vadd.f32 0.0, %v899
      %v901 = vpop.f32.mrb[0].mxu0
      %902 = vmatprep.mubr.bf16.mxu0 0
      %903 = vmatmul.mubr.bf16.gmra.mrb[0].mxu0 %v784
      %v904 = vpop.f32.mrb[0].mxu0
      %v905 = vadd.f32 0.0, %v904
      %v906 = vpop.f32.mrb[0].mxu0
      %v907 = vpop.f32.mrb[0].mxu0
      %v908 = vadd.f32 0.0, %v907
      %v909 = vpop.f32.mrb[0].mxu0
      %910 = vmatprep.mubr.bf16.mxu0 0
      %911 = vmatmul.mubr.bf16.gmra.mrb[0].mxu0 %v787
      %v912 = vpop.f32.mrb[0].mxu0
      %v913 = vadd.f32 0.0, %v912
      %v914 = vpop.f32.mrb[0].mxu0
      %v915 = vpop.f32.mrb[0].mxu0
      %v916 = vadd.f32 0.0, %v915
      %v917 = vpop.f32.mrb[0].mxu0
      %918 = vmatprep.mubr.bf16.mxu0 0
      %919 = vmatmul.mubr.bf16.gmra.mrb[0].mxu0 %v790
      %v920 = vpop.f32.mrb[0].mxu0
      %v921 = vadd.f32 0.0, %v920
      %v922 = vpop.f32.mrb[0].mxu0
      %v923 = vpop.f32.mrb[0].mxu0
      %v924 = vadd.f32 0.0, %v923
      %v925 = vpop.f32.mrb[0].mxu0
      %926 = vmatprep.mubr.bf16.mxu0 0
      %927 = vmatmul.mubr.bf16.gmra.mrb[0].mxu0 %v793
      %v928 = vpop.f32.mrb[0].mxu0
      %v929 = vadd.f32 0.0, %v928
      %v930 = vpop.f32.mrb[0].mxu0
      %v931 = vpop.f32.mrb[0].mxu0
      %v932 = vadd.f32 0.0, %v931
      %v933 = vpop.f32.mrb[0].mxu0
      %934 = vmatprep.mubr.bf16.mxu0 0
      %935 = vmatmul.mubr.bf16.gmra.mrb[0].mxu0 %v796
      %v936 = vpop.f32.mrb[0].mxu0
      %v937 = vadd.f32 0.0, %v936
      %v938 = vpop.f32.mrb[0].mxu0
      %v939 = vpop.f32.mrb[0].mxu0
      %v940 = vadd.f32 0.0, %v939
      %v941 = vpop.f32.mrb[0].mxu0
      %942 = vmatprep.mubr.bf16.mxu0 0
      %943 = vmatmul.mubr.bf16.gmra.mrb[0].mxu0 %v799
      %v944 = vpop.f32.mrb[0].mxu0
      %v945 = vadd.f32 0.0, %v944
      %v946 = vpop.f32.mrb[0].mxu0
      %v947 = vpop.f32.mrb[0].mxu0
      %v948 = vadd.f32 0.0, %v947
      %v949 = vpop.f32.mrb[0].mxu0
      %950 = vmatprep.mubr.bf16.mxu0 0
      %951 = vmatmul.mubr.bf16.gmra.mrb[0].mxu0 %v802
      %v952 = vpop.f32.mrb[0].mxu0
      %v953 = vadd.f32 0.0, %v952
      %v954 = vpop.f32.mrb[0].mxu0
      %v955 = vpop.f32.mrb[0].mxu0
      %v956 = vadd.f32 0.0, %v955
      %v957 = vpop.f32.mrb[0].mxu0
      %958 = vmatprep.mubr.bf16.mxu0 0
      %959 = vmatmul.mubr.bf16.gmra.mrb[0].mxu0 %v805
      %v960 = vpop.f32.mrb[0].mxu0
      %v961 = vadd.f32 0.0, %v960
      %v962 = vpop.f32.mrb[0].mxu0
      %v963 = vpop.f32.mrb[0].mxu0
      %v964 = vadd.f32 0.0, %v963
      %v965 = vpop.f32.mrb[0].mxu0
      %966 = vmatprep.mubr.bf16.mxu0 0
      %967 = vmatmul.mubr.bf16.gmra.mrb[0].mxu0 %v808
      %v968 = vpop.f32.mrb[0].mxu0
      %v969 = vadd.f32 0.0, %v968
      %v970 = vpop.f32.mrb[0].mxu0
      %v971 = vpop.f32.mrb[0].mxu0
      %v972 = vadd.f32 0.0, %v971
      %v973 = vpop.f32.mrb[0].mxu0
      %974 = vdwg.mxu0
      %v1007 = vunpack.c.l.b16 %v269
      %v1008 = vunpack.c.l.b16 %v270
      %v1009 = vunpack.c.l.b16 %v272
      %v1010 = vunpack.c.l.b16 %v273
      %v1011 = vunpack.c.l.b16 %v275
      %v1012 = vunpack.c.l.b16 %v276
      %v1013 = vunpack.c.l.b16 %v278
      %v1014 = vunpack.c.l.b16 %v279
      %v1015 = vunpack.c.l.b16 %v281
      %v1016 = vunpack.c.l.b16 %v282
      %v1017 = vunpack.c.l.b16 %v284
      %v1018 = vunpack.c.l.b16 %v285
      %v1019 = vunpack.c.l.b16 %v287
      %v1020 = vunpack.c.l.b16 %v288
      %v1021 = vunpack.c.l.b16 %v290
      %v1022 = vunpack.c.l.b16 %v291
      %v1023 = vunpack.c.l.b16 %v293
      %v1024 = vunpack.c.l.b16 %v294
      %v1025 = vunpack.c.l.b16 %v296
      %v1026 = vunpack.c.l.b16 %v297
      %v1027 = vunpack.c.l.b16 %v299
      %v1028 = vunpack.c.l.b16 %v300
      %v1029 = vunpack.c.l.b16 %v302
      %v1030 = vunpack.c.l.b16 %v303
      %v1031 = vunpack.c.l.b16 %v305
      %v1032 = vunpack.c.l.b16 %v306
      %v1033 = vunpack.c.l.b16 %v308
      %v1034 = vunpack.c.l.b16 %v309
      %v1035 = vunpack.c.l.b16 %v311
      %v1036 = vunpack.c.l.b16 %v312
      %v1037 = vunpack.c.l.b16 %v314
      %v1038 = vunpack.c.l.b16 %v315
      %v1039 = vpack.c.b16 %v1008, %v1007
      %v1040 = vpack.c.b16 %v1010, %v1009
      %v1041 = vpack.c.b16 %v1012, %v1011
      %v1042 = vpack.c.b16 %v1014, %v1013
      %v1043 = vpack.c.b16 %v1016, %v1015
      %v1044 = vpack.c.b16 %v1018, %v1017
      %v1045 = vpack.c.b16 %v1020, %v1019
      %v1046 = vpack.c.b16 %v1022, %v1021
      %v1047 = vpack.c.b16 %v1024, %v1023
      %v1048 = vpack.c.b16 %v1026, %v1025
      %v1049 = vpack.c.b16 %v1028, %v1027
      %v1050 = vpack.c.b16 %v1030, %v1029
      %v1051 = vpack.c.b16 %v1032, %v1031
      %v1052 = vpack.c.b16 %v1034, %v1033
      %v1053 = vpack.c.b16 %v1036, %v1035
      %v1054 = vpack.c.b16 %v1038, %v1037
      %v1056 = vsel %vm761, %v1039, 0
      %v1059 = vsel %vm761, %v1040, 0
      %v1062 = vsel %vm761, %v1041, 0
      %v1065 = vsel %vm761, %v1042, 0
      %v1068 = vsel %vm761, %v1043, 0
      %v1071 = vsel %vm761, %v1044, 0
      %v1074 = vsel %vm761, %v1045, 0
      %v1077 = vsel %vm761, %v1046, 0
      %v1080 = vsel %vm761, %v1047, 0
      %v1083 = vsel %vm761, %v1048, 0
      %v1086 = vsel %vm761, %v1049, 0
      %v1089 = vsel %vm761, %v1050, 0
      %v1092 = vsel %vm761, %v1051, 0
      %v1095 = vsel %vm761, %v1052, 0
      %v1098 = vsel %vm761, %v1053, 0
      %v1101 = vsel %vm761, %v1054, 0
      %v1104 = vsel %vm810, %v323, 0
      %1106 = vmatprep.subr.bf16.mxu0 0
      %1107 = vmatpush1.bf16.msra.mxu0 %v1104
      %1108 = vmatprep.subr.bf16.mxu0 0
      %1109 = vmatpush1.bf16.msra.mxu0 0
      %1110 = vmatprep.subr.bf16.mxu0 0
      %1111 = vmatpush1.bf16.msra.mxu0 0
      %1112 = vmatprep.subr.bf16.mxu0 0
      %1113 = vmatpush1.bf16.msra.mxu0 0
      %1114 = vmatprep.subr.bf16.mxu0 0
      %1115 = vmatpush1.bf16.msra.mxu0 0
      %1116 = vmatprep.subr.bf16.mxu0 0
      %1117 = vmatpush1.bf16.msra.mxu0 0
      %1118 = vmatprep.subr.bf16.mxu0 0
      %1119 = vmatpush1.bf16.msra.mxu0 0
      %1120 = vmatprep.subr.bf16.mxu0 0
      %1121 = vmatpush1.bf16.msra.mxu0 0
      %1122 = vmatprep.subr.bf16.mxu0 0
      %1123 = vmatpush1.bf16.msra.mxu0 0
      %1124 = vmatprep.subr.bf16.mxu0 0
      %1125 = vmatpush1.bf16.msra.mxu0 0
      %1126 = vmatprep.subr.bf16.mxu0 0
      %1127 = vmatpush1.bf16.msra.mxu0 0
      %1128 = vmatprep.subr.bf16.mxu0 0
      %1129 = vmatpush1.bf16.msra.mxu0 0
      %1130 = vmatprep.subr.bf16.mxu0 0
      %1131 = vmatpush1.bf16.msra.mxu0 0
      %1132 = vmatprep.subr.bf16.mxu0 0
      %1133 = vmatpush1.bf16.msra.mxu0 0
      %1134 = vmatprep.subr.bf16.mxu0 0
      %1135 = vmatpush1.bf16.msra.mxu0 0
      %1136 = vmatprep.subr.bf16.mxu0 0
      %1137 = vmatpush1.bf16.msra.mxu0 0
      %1138 = vmatprep.mubr.bf16.mxu0 0
      %1139 = vmatmul.mubr.bf16.gmra.mrb[0].mxu0 %v1056
      %v1140 = vpop.f32.mrb[0].mxu0
      %v1141 = vadd.f32 %v849, %v1140
      %v1142 = vpop.f32.mrb[0].mxu0
      %v1143 = vpop.f32.mrb[0].mxu0
      %v1144 = vadd.f32 %v852, %v1143
      %v1145 = vpop.f32.mrb[0].mxu0
      %1146 = vmatprep.mubr.bf16.mxu0 0
      %1147 = vmatmul.mubr.bf16.gmra.mrb[0].mxu0 %v1059
      %v1148 = vpop.f32.mrb[0].mxu0
      %v1149 = vadd.f32 %v857, %v1148
      %v1150 = vpop.f32.mrb[0].mxu0
      %v1151 = vpop.f32.mrb[0].mxu0
      %v1152 = vadd.f32 %v860, %v1151
      %v1153 = vpop.f32.mrb[0].mxu0
      %1154 = vmatprep.mubr.bf16.mxu0 0
      %1155 = vmatmul.mubr.bf16.gmra.mrb[0].mxu0 %v1062
      %v1156 = vpop.f32.mrb[0].mxu0
      %v1157 = vadd.f32 %v865, %v1156
      %v1158 = vpop.f32.mrb[0].mxu0
      %v1159 = vpop.f32.mrb[0].mxu0
      %v1160 = vadd.f32 %v868, %v1159
      %v1161 = vpop.f32.mrb[0].mxu0
      %1162 = vmatprep.mubr.bf16.mxu0 0
      %1163 = vmatmul.mubr.bf16.gmra.mrb[0].mxu0 %v1065
      %v1164 = vpop.f32.mrb[0].mxu0
      %v1165 = vadd.f32 %v873, %v1164
      %v1166 = vpop.f32.mrb[0].mxu0
      %v1167 = vpop.f32.mrb[0].mxu0
      %v1168 = vadd.f32 %v876, %v1167
      %v1169 = vpop.f32.mrb[0].mxu0
      %1170 = vmatprep.mubr.bf16.mxu0 0
      %1171 = vmatmul.mubr.bf16.gmra.mrb[0].mxu0 %v1068
      %v1172 = vpop.f32.mrb[0].mxu0
      %v1173 = vadd.f32 %v881, %v1172
      %v1174 = vpop.f32.mrb[0].mxu0
      %v1175 = vpop.f32.mrb[0].mxu0
      %v1176 = vadd.f32 %v884, %v1175
      %v1177 = vpop.f32.mrb[0].mxu0
      %1178 = vmatprep.mubr.bf16.mxu0 0
      %1179 = vmatmul.mubr.bf16.gmra.mrb[0].mxu0 %v1071
      %v1180 = vpop.f32.mrb[0].mxu0
      %v1181 = vadd.f32 %v889, %v1180
      %v1182 = vpop.f32.mrb[0].mxu0
      %v1183 = vpop.f32.mrb[0].mxu0
      %v1184 = vadd.f32 %v892, %v1183
      %v1185 = vpop.f32.mrb[0].mxu0
      %1186 = vmatprep.mubr.bf16.mxu0 0
      %1187 = vmatmul.mubr.bf16.gmra.mrb[0].mxu0 %v1074
      %v1188 = vpop.f32.mrb[0].mxu0
      %v1189 = vadd.f32 %v897, %v1188
      %v1190 = vpop.f32.mrb[0].mxu0
      %v1191 = vpop.f32.mrb[0].mxu0
      %v1192 = vadd.f32 %v900, %v1191
      %v1193 = vpop.f32.mrb[0].mxu0
      %1194 = vmatprep.mubr.bf16.mxu0 0
      %1195 = vmatmul.mubr.bf16.gmra.mrb[0].mxu0 %v1077
      %v1196 = vpop.f32.mrb[0].mxu0
      %v1197 = vadd.f32 %v905, %v1196
      %v1198 = vpop.f32.mrb[0].mxu0
      %v1199 = vpop.f32.mrb[0].mxu0
      %v1200 = vadd.f32 %v908, %v1199
      %v1201 = vpop.f32.mrb[0].mxu0
      %1202 = vmatprep.mubr.bf16.mxu0 0
      %1203 = vmatmul.mubr.bf16.gmra.mrb[0].mxu0 %v1080
      %v1204 = vpop.f32.mrb[0].mxu0
      %v1205 = vadd.f32 %v913, %v1204
      %v1206 = vpop.f32.mrb[0].mxu0
      %v1207 = vpop.f32.mrb[0].mxu0
      %v1208 = vadd.f32 %v916, %v1207
      %v1209 = vpop.f32.mrb[0].mxu0
      %1210 = vmatprep.mubr.bf16.mxu0 0
      %1211 = vmatmul.mubr.bf16.gmra.mrb[0].mxu0 %v1083
      %v1212 = vpop.f32.mrb[0].mxu0
      %v1213 = vadd.f32 %v921, %v1212
      %v1214 = vpop.f32.mrb[0].mxu0
      %v1215 = vpop.f32.mrb[0].mxu0
      %v1216 = vadd.f32 %v924, %v1215
      %v1217 = vpop.f32.mrb[0].mxu0
      %1218 = vmatprep.mubr.bf16.mxu0 0
      %1219 = vmatmul.mubr.bf16.gmra.mrb[0].mxu0 %v1086
      %v1220 = vpop.f32.mrb[0].mxu0
      %v1221 = vadd.f32 %v929, %v1220
      %v1222 = vpop.f32.mrb[0].mxu0
      %v1223 = vpop.f32.mrb[0].mxu0
      %v1224 = vadd.f32 %v932, %v1223
      %v1225 = vpop.f32.mrb[0].mxu0
      %1226 = vmatprep.mubr.bf16.mxu0 0
      %1227 = vmatmul.mubr.bf16.gmra.mrb[0].mxu0 %v1089
      %v1228 = vpop.f32.mrb[0].mxu0
      %v1229 = vadd.f32 %v937, %v1228
      %v1230 = vpop.f32.mrb[0].mxu0
      %v1231 = vpop.f32.mrb[0].mxu0
      %v1232 = vadd.f32 %v940, %v1231
      %v1233 = vpop.f32.mrb[0].mxu0
      %1234 = vmatprep.mubr.bf16.mxu0 0
      %1235 = vmatmul.mubr.bf16.gmra.mrb[0].mxu0 %v1092
      %v1236 = vpop.f32.mrb[0].mxu0
      %v1237 = vadd.f32 %v945, %v1236
      %v1238 = vpop.f32.mrb[0].mxu0
      %v1239 = vpop.f32.mrb[0].mxu0
      %v1240 = vadd.f32 %v948, %v1239
      %v1241 = vpop.f32.mrb[0].mxu0
      %1242 = vmatprep.mubr.bf16.mxu0 0
      %1243 = vmatmul.mubr.bf16.gmra.mrb[0].mxu0 %v1095
      %v1244 = vpop.f32.mrb[0].mxu0
      %v1245 = vadd.f32 %v953, %v1244
      %v1246 = vpop.f32.mrb[0].mxu0
      %v1247 = vpop.f32.mrb[0].mxu0
      %v1248 = vadd.f32 %v956, %v1247
      %v1249 = vpop.f32.mrb[0].mxu0
      %1250 = vmatprep.mubr.bf16.mxu0 0
      %1251 = vmatmul.mubr.bf16.gmra.mrb[0].mxu0 %v1098
      %v1252 = vpop.f32.mrb[0].mxu0
      %v1253 = vadd.f32 %v961, %v1252
      %v1254 = vpop.f32.mrb[0].mxu0
      %v1255 = vpop.f32.mrb[0].mxu0
      %v1256 = vadd.f32 %v964, %v1255
      %v1257 = vpop.f32.mrb[0].mxu0
      %1258 = vmatprep.mubr.bf16.mxu0 0
      %1259 = vmatmul.mubr.bf16.gmra.mrb[0].mxu0 %v1101
      %v1260 = vpop.f32.mrb[0].mxu0
      %v1261 = vadd.f32 %v969, %v1260
      %v1262 = vpop.f32.mrb[0].mxu0
      %v1263 = vpop.f32.mrb[0].mxu0
      %v1264 = vadd.f32 %v972, %v1263
      %v1265 = vpop.f32.mrb[0].mxu0
      %1266 = vdwg.mxu0
      %vm1283 = vcmask 1042432
      %vm1284 = vcmask 1046532
      %vm1285 = vmor %vm1283, %vm1284
      %v1286 = vrot.slane %v269, 5
      %v1287 = vrot.slane %v1286, 4
      %v1288 = vrot.slane %v270, 5
      %v1289 = vsel %vm1285, %v1287, %v1288
      %v1290 = vrot.slane %v1288, 4
      %v1291 = vrot.slane %v271, 5
      %v1292 = vsel %vm1285, %v1290, %v1291
      %v1293 = vrot.slane %v272, 5
      %v1294 = vrot.slane %v1293, 4
      %v1295 = vrot.slane %v273, 5
      %v1296 = vsel %vm1285, %v1294, %v1295
      %v1297 = vrot.slane %v1295, 4
      %v1298 = vrot.slane %v274, 5
      %v1299 = vsel %vm1285, %v1297, %v1298
      %v1300 = vrot.slane %v275, 5
      %v1301 = vrot.slane %v1300, 4
      %v1302 = vrot.slane %v276, 5
      %v1303 = vsel %vm1285, %v1301, %v1302
      %v1304 = vrot.slane %v1302, 4
      %v1305 = vrot.slane %v277, 5
      %v1306 = vsel %vm1285, %v1304, %v1305
      %v1307 = vrot.slane %v278, 5
      %v1308 = vrot.slane %v1307, 4
      %v1309 = vrot.slane %v279, 5
      %v1310 = vsel %vm1285, %v1308, %v1309
      %v1311 = vrot.slane %v1309, 4
      %v1312 = vrot.slane %v280, 5
      %v1313 = vsel %vm1285, %v1311, %v1312
      %v1314 = vrot.slane %v281, 5
      %v1315 = vrot.slane %v1314, 4
      %v1316 = vrot.slane %v282, 5
      %v1317 = vsel %vm1285, %v1315, %v1316
      %v1318 = vrot.slane %v1316, 4
      %v1319 = vrot.slane %v283, 5
      %v1320 = vsel %vm1285, %v1318, %v1319
      %v1321 = vrot.slane %v284, 5
      %v1322 = vrot.slane %v1321, 4
      %v1323 = vrot.slane %v285, 5
      %v1324 = vsel %vm1285, %v1322, %v1323
      %v1325 = vrot.slane %v1323, 4
      %v1326 = vrot.slane %v286, 5
      %v1327 = vsel %vm1285, %v1325, %v1326
      %v1328 = vrot.slane %v287, 5
      %v1329 = vrot.slane %v1328, 4
      %v1330 = vrot.slane %v288, 5
      %v1331 = vsel %vm1285, %v1329, %v1330
      %v1332 = vrot.slane %v1330, 4
      %v1333 = vrot.slane %v289, 5
      %v1334 = vsel %vm1285, %v1332, %v1333
      %v1335 = vrot.slane %v290, 5
      %v1336 = vrot.slane %v1335, 4
      %v1337 = vrot.slane %v291, 5
      %v1338 = vsel %vm1285, %v1336, %v1337
      %v1339 = vrot.slane %v1337, 4
      %v1340 = vrot.slane %v292, 5
      %v1341 = vsel %vm1285, %v1339, %v1340
      %v1342 = vrot.slane %v293, 5
      %v1343 = vrot.slane %v1342, 4
      %v1344 = vrot.slane %v294, 5
      %v1345 = vsel %vm1285, %v1343, %v1344
      %v1346 = vrot.slane %v1344, 4
      %v1347 = vrot.slane %v295, 5
      %v1348 = vsel %vm1285, %v1346, %v1347
      %v1349 = vrot.slane %v296, 5
      %v1350 = vrot.slane %v1349, 4
      %v1351 = vrot.slane %v297, 5
      %v1352 = vsel %vm1285, %v1350, %v1351
      %v1353 = vrot.slane %v1351, 4
      %v1354 = vrot.slane %v298, 5
      %v1355 = vsel %vm1285, %v1353, %v1354
      %v1356 = vrot.slane %v299, 5
      %v1357 = vrot.slane %v1356, 4
      %v1358 = vrot.slane %v300, 5
      %v1359 = vsel %vm1285, %v1357, %v1358
      %v1360 = vrot.slane %v1358, 4
      %v1361 = vrot.slane %v301, 5
      %v1362 = vsel %vm1285, %v1360, %v1361
      %v1363 = vrot.slane %v302, 5
      %v1364 = vrot.slane %v1363, 4
      %v1365 = vrot.slane %v303, 5
      %v1366 = vsel %vm1285, %v1364, %v1365
      %v1367 = vrot.slane %v1365, 4
      %v1368 = vrot.slane %v304, 5
      %v1369 = vsel %vm1285, %v1367, %v1368
      %v1370 = vrot.slane %v305, 5
      %v1371 = vrot.slane %v1370, 4
      %v1372 = vrot.slane %v306, 5
      %v1373 = vsel %vm1285, %v1371, %v1372
      %v1374 = vrot.slane %v1372, 4
      %v1375 = vrot.slane %v307, 5
      %v1376 = vsel %vm1285, %v1374, %v1375
      %v1377 = vrot.slane %v308, 5
      %v1378 = vrot.slane %v1377, 4
      %v1379 = vrot.slane %v309, 5
      %v1380 = vsel %vm1285, %v1378, %v1379
      %v1381 = vrot.slane %v1379, 4
      %v1382 = vrot.slane %v310, 5
      %v1383 = vsel %vm1285, %v1381, %v1382
      %v1384 = vrot.slane %v311, 5
      %v1385 = vrot.slane %v1384, 4
      %v1386 = vrot.slane %v312, 5
      %v1387 = vsel %vm1285, %v1385, %v1386
      %v1388 = vrot.slane %v1386, 4
      %v1389 = vrot.slane %v313, 5
      %v1390 = vsel %vm1285, %v1388, %v1389
      %v1391 = vrot.slane %v314, 5
      %v1392 = vrot.slane %v1391, 4
      %v1393 = vrot.slane %v315, 5
      %v1394 = vsel %vm1285, %v1392, %v1393
      %v1395 = vrot.slane %v1393, 4
      %v1396 = vrot.slane %v316, 5
      %v1397 = vsel %vm1285, %v1395, %v1396
      %s1398 = scalar_lea.vmem %s249, 4
      %v1399 = vld [vmem:[%s1398] sm:$0x3]
      %v1400 = vunpack.c.l.b16 %v1289
      %v1401 = vunpack.c.l.b16 %v1292
      %v1402 = vunpack.c.l.b16 %v1296
      %v1403 = vunpack.c.l.b16 %v1299
      %v1404 = vunpack.c.l.b16 %v1303
      %v1405 = vunpack.c.l.b16 %v1306
      %v1406 = vunpack.c.l.b16 %v1310
      %v1407 = vunpack.c.l.b16 %v1313
      %v1408 = vunpack.c.l.b16 %v1317
      %v1409 = vunpack.c.l.b16 %v1320
      %v1410 = vunpack.c.l.b16 %v1324
      %v1411 = vunpack.c.l.b16 %v1327
      %v1412 = vunpack.c.l.b16 %v1331
      %v1413 = vunpack.c.l.b16 %v1334
      %v1414 = vunpack.c.l.b16 %v1338
      %v1415 = vunpack.c.l.b16 %v1341
      %v1416 = vunpack.c.l.b16 %v1345
      %v1417 = vunpack.c.l.b16 %v1348
      %v1418 = vunpack.c.l.b16 %v1352
      %v1419 = vunpack.c.l.b16 %v1355
      %v1420 = vunpack.c.l.b16 %v1359
      %v1421 = vunpack.c.l.b16 %v1362
      %v1422 = vunpack.c.l.b16 %v1366
      %v1423 = vunpack.c.l.b16 %v1369
      %v1424 = vunpack.c.l.b16 %v1373
      %v1425 = vunpack.c.l.b16 %v1376
      %v1426 = vunpack.c.l.b16 %v1380
      %v1427 = vunpack.c.l.b16 %v1383
      %v1428 = vunpack.c.l.b16 %v1387
      %v1429 = vunpack.c.l.b16 %v1390
      %v1430 = vunpack.c.l.b16 %v1394
      %v1431 = vunpack.c.l.b16 %v1397
      %v1432 = vpack.c.b16 %v1401, %v1400
      %v1433 = vpack.c.b16 %v1403, %v1402
      %v1434 = vpack.c.b16 %v1405, %v1404
      %v1435 = vpack.c.b16 %v1407, %v1406
      %v1436 = vpack.c.b16 %v1409, %v1408
      %v1437 = vpack.c.b16 %v1411, %v1410
      %v1438 = vpack.c.b16 %v1413, %v1412
      %v1439 = vpack.c.b16 %v1415, %v1414
      %v1440 = vpack.c.b16 %v1417, %v1416
      %v1441 = vpack.c.b16 %v1419, %v1418
      %v1442 = vpack.c.b16 %v1421, %v1420
      %v1443 = vpack.c.b16 %v1423, %v1422
      %v1444 = vpack.c.b16 %v1425, %v1424
      %v1445 = vpack.c.b16 %v1427, %v1426
      %v1446 = vpack.c.b16 %v1429, %v1428
      %v1447 = vpack.c.b16 %v1431, %v1430
      %v1449 = vsel %vm761, %v1432, 0
      %v1452 = vsel %vm761, %v1433, 0
      %v1455 = vsel %vm761, %v1434, 0
      %v1458 = vsel %vm761, %v1435, 0
      %v1461 = vsel %vm761, %v1436, 0
      %v1464 = vsel %vm761, %v1437, 0
      %v1467 = vsel %vm761, %v1438, 0
      %v1470 = vsel %vm761, %v1439, 0
      %v1473 = vsel %vm761, %v1440, 0
      %v1476 = vsel %vm761, %v1441, 0
      %v1479 = vsel %vm761, %v1442, 0
      %v1482 = vsel %vm761, %v1443, 0
      %v1485 = vsel %vm761, %v1444, 0
      %v1488 = vsel %vm761, %v1445, 0
      %v1491 = vsel %vm761, %v1446, 0
      %v1494 = vsel %vm761, %v1447, 0
      %v1497 = vsel %vm810, %v1399, 0
      %1499 = vmatprep.subr.bf16.mxu0 0
      %1500 = vmatpush1.bf16.msra.mxu0 %v1497
      %1501 = vmatprep.subr.bf16.mxu0 0
      %1502 = vmatpush1.bf16.msra.mxu0 0
      %1503 = vmatprep.subr.bf16.mxu0 0
      %1504 = vmatpush1.bf16.msra.mxu0 0
      %1505 = vmatprep.subr.bf16.mxu0 0
      %1506 = vmatpush1.bf16.msra.mxu0 0
      %1507 = vmatprep.subr.bf16.mxu0 0
      %1508 = vmatpush1.bf16.msra.mxu0 0
      %1509 = vmatprep.subr.bf16.mxu0 0
      %1510 = vmatpush1.bf16.msra.mxu0 0
      %1511 = vmatprep.subr.bf16.mxu0 0
      %1512 = vmatpush1.bf16.msra.mxu0 0
      %1513 = vmatprep.subr.bf16.mxu0 0
      %1514 = vmatpush1.bf16.msra.mxu0 0
      %1515 = vmatprep.subr.bf16.mxu0 0
      %1516 = vmatpush1.bf16.msra.mxu0 0
      %1517 = vmatprep.subr.bf16.mxu0 0
      %1518 = vmatpush1.bf16.msra.mxu0 0
      %1519 = vmatprep.subr.bf16.mxu0 0
      %1520 = vmatpush1.bf16.msra.mxu0 0
      %1521 = vmatprep.subr.bf16.mxu0 0
      %1522 = vmatpush1.bf16.msra.mxu0 0
      %1523 = vmatprep.subr.bf16.mxu0 0
      %1524 = vmatpush1.bf16.msra.mxu0 0
      %1525 = vmatprep.subr.bf16.mxu0 0
      %1526 = vmatpush1.bf16.msra.mxu0 0
      %1527 = vmatprep.subr.bf16.mxu0 0
      %1528 = vmatpush1.bf16.msra.mxu0 0
      %1529 = vmatprep.subr.bf16.mxu0 0
      %1530 = vmatpush1.bf16.msra.mxu0 0
      %1531 = vmatprep.mubr.bf16.mxu0 0
      %1532 = vmatmul.mubr.bf16.gmra.mrb[0].mxu0 %v1449
      %v1533 = vpop.f32.mrb[0].mxu0
      %v1534 = vadd.f32 0.0, %v1533
      %v1535 = vpop.f32.mrb[0].mxu0
      %v1536 = vpop.f32.mrb[0].mxu0
      %v1537 = vadd.f32 0.0, %v1536
      %v1538 = vpop.f32.mrb[0].mxu0
      %1539 = vmatprep.mubr.bf16.mxu0 0
      %1540 = vmatmul.mubr.bf16.gmra.mrb[0].mxu0 %v1452
      %v1541 = vpop.f32.mrb[0].mxu0
      %v1542 = vadd.f32 0.0, %v1541
      %v1543 = vpop.f32.mrb[0].mxu0
      %v1544 = vpop.f32.mrb[0].mxu0
      %v1545 = vadd.f32 0.0, %v1544
      %v1546 = vpop.f32.mrb[0].mxu0
      %1547 = vmatprep.mubr.bf16.mxu0 0
      %1548 = vmatmul.mubr.bf16.gmra.mrb[0].mxu0 %v1455
      %v1549 = vpop.f32.mrb[0].mxu0
      %v1550 = vadd.f32 0.0, %v1549
      %v1551 = vpop.f32.mrb[0].mxu0
      %v1552 = vpop.f32.mrb[0].mxu0
      %v1553 = vadd.f32 0.0, %v1552
      %v1554 = vpop.f32.mrb[0].mxu0
      %1555 = vmatprep.mubr.bf16.mxu0 0
      %1556 = vmatmul.mubr.bf16.gmra.mrb[0].mxu0 %v1458
      %v1557 = vpop.f32.mrb[0].mxu0
      %v1558 = vadd.f32 0.0, %v1557
      %v1559 = vpop.f32.mrb[0].mxu0
      %v1560 = vpop.f32.mrb[0].mxu0
      %v1561 = vadd.f32 0.0, %v1560
      %v1562 = vpop.f32.mrb[0].mxu0
      %1563 = vmatprep.mubr.bf16.mxu0 0
      %1564 = vmatmul.mubr.bf16.gmra.mrb[0].mxu0 %v1461
      %v1565 = vpop.f32.mrb[0].mxu0
      %v1566 = vadd.f32 0.0, %v1565
      %v1567 = vpop.f32.mrb[0].mxu0
      %v1568 = vpop.f32.mrb[0].mxu0
      %v1569 = vadd.f32 0.0, %v1568
      %v1570 = vpop.f32.mrb[0].mxu0
      %1571 = vmatprep.mubr.bf16.mxu0 0
      %1572 = vmatmul.mubr.bf16.gmra.mrb[0].mxu0 %v1464
      %v1573 = vpop.f32.mrb[0].mxu0
      %v1574 = vadd.f32 0.0, %v1573
      %v1575 = vpop.f32.mrb[0].mxu0
      %v1576 = vpop.f32.mrb[0].mxu0
      %v1577 = vadd.f32 0.0, %v1576
      %v1578 = vpop.f32.mrb[0].mxu0
      %1579 = vmatprep.mubr.bf16.mxu0 0
      %1580 = vmatmul.mubr.bf16.gmra.mrb[0].mxu0 %v1467
      %v1581 = vpop.f32.mrb[0].mxu0
      %v1582 = vadd.f32 0.0, %v1581
      %v1583 = vpop.f32.mrb[0].mxu0
      %v1584 = vpop.f32.mrb[0].mxu0
      %v1585 = vadd.f32 0.0, %v1584
      %v1586 = vpop.f32.mrb[0].mxu0
      %1587 = vmatprep.mubr.bf16.mxu0 0
      %1588 = vmatmul.mubr.bf16.gmra.mrb[0].mxu0 %v1470
      %v1589 = vpop.f32.mrb[0].mxu0
      %v1590 = vadd.f32 0.0, %v1589
      %v1591 = vpop.f32.mrb[0].mxu0
      %v1592 = vpop.f32.mrb[0].mxu0
      %v1593 = vadd.f32 0.0, %v1592
      %v1594 = vpop.f32.mrb[0].mxu0
      %1595 = vmatprep.mubr.bf16.mxu0 0
      %1596 = vmatmul.mubr.bf16.gmra.mrb[0].mxu0 %v1473
      %v1597 = vpop.f32.mrb[0].mxu0
      %v1598 = vadd.f32 0.0, %v1597
      %v1599 = vpop.f32.mrb[0].mxu0
      %v1600 = vpop.f32.mrb[0].mxu0
      %v1601 = vadd.f32 0.0, %v1600
      %v1602 = vpop.f32.mrb[0].mxu0
      %1603 = vmatprep.mubr.bf16.mxu0 0
      %1604 = vmatmul.mubr.bf16.gmra.mrb[0].mxu0 %v1476
      %v1605 = vpop.f32.mrb[0].mxu0
      %v1606 = vadd.f32 0.0, %v1605
      %v1607 = vpop.f32.mrb[0].mxu0
      %v1608 = vpop.f32.mrb[0].mxu0
      %v1609 = vadd.f32 0.0, %v1608
      %v1610 = vpop.f32.mrb[0].mxu0
      %1611 = vmatprep.mubr.bf16.mxu0 0
      %1612 = vmatmul.mubr.bf16.gmra.mrb[0].mxu0 %v1479
      %v1613 = vpop.f32.mrb[0].mxu0
      %v1614 = vadd.f32 0.0, %v1613
      %v1615 = vpop.f32.mrb[0].mxu0
      %v1616 = vpop.f32.mrb[0].mxu0
      %v1617 = vadd.f32 0.0, %v1616
      %v1618 = vpop.f32.mrb[0].mxu0
      %1619 = vmatprep.mubr.bf16.mxu0 0
      %1620 = vmatmul.mubr.bf16.gmra.mrb[0].mxu0 %v1482
      %v1621 = vpop.f32.mrb[0].mxu0
      %v1622 = vadd.f32 0.0, %v1621
      %v1623 = vpop.f32.mrb[0].mxu0
      %v1624 = vpop.f32.mrb[0].mxu0
      %v1625 = vadd.f32 0.0, %v1624
      %v1626 = vpop.f32.mrb[0].mxu0
      %1627 = vmatprep.mubr.bf16.mxu0 0
      %1628 = vmatmul.mubr.bf16.gmra.mrb[0].mxu0 %v1485
      %v1629 = vpop.f32.mrb[0].mxu0
      %v1630 = vadd.f32 0.0, %v1629
      %v1631 = vpop.f32.mrb[0].mxu0
      %v1632 = vpop.f32.mrb[0].mxu0
      %v1633 = vadd.f32 0.0, %v1632
      %v1634 = vpop.f32.mrb[0].mxu0
      %1635 = vmatprep.mubr.bf16.mxu0 0
      %1636 = vmatmul.mubr.bf16.gmra.mrb[0].mxu0 %v1488
      %v1637 = vpop.f32.mrb[0].mxu0
      %v1638 = vadd.f32 0.0, %v1637
      %v1639 = vpop.f32.mrb[0].mxu0
      %v1640 = vpop.f32.mrb[0].mxu0
      %v1641 = vadd.f32 0.0, %v1640
      %v1642 = vpop.f32.mrb[0].mxu0
      %1643 = vmatprep.mubr.bf16.mxu0 0
      %1644 = vmatmul.mubr.bf16.gmra.mrb[0].mxu0 %v1491
      %v1645 = vpop.f32.mrb[0].mxu0
      %v1646 = vadd.f32 0.0, %v1645
      %v1647 = vpop.f32.mrb[0].mxu0
      %v1648 = vpop.f32.mrb[0].mxu0
      %v1649 = vadd.f32 0.0, %v1648
      %v1650 = vpop.f32.mrb[0].mxu0
      %1651 = vmatprep.mubr.bf16.mxu0 0
      %1652 = vmatmul.mubr.bf16.gmra.mrb[0].mxu0 %v1494
      %v1653 = vpop.f32.mrb[0].mxu0
      %v1654 = vadd.f32 0.0, %v1653
      %v1655 = vpop.f32.mrb[0].mxu0
      %v1656 = vpop.f32.mrb[0].mxu0
      %v1657 = vadd.f32 0.0, %v1656
      %v1658 = vpop.f32.mrb[0].mxu0
      %1659 = vdwg.mxu0
      %v1660 = vadd.f32 %v1141, %v1534
      %v1661 = vadd.f32 %v1144, %v1537
      %v1662 = vadd.f32 %v1149, %v1542
      %v1663 = vadd.f32 %v1152, %v1545
      %v1664 = vadd.f32 %v1157, %v1550
      %v1665 = vadd.f32 %v1160, %v1553
      %v1666 = vadd.f32 %v1165, %v1558
      %v1667 = vadd.f32 %v1168, %v1561
      %v1668 = vadd.f32 %v1173, %v1566
      %v1669 = vadd.f32 %v1176, %v1569
      %v1670 = vadd.f32 %v1181, %v1574
      %v1671 = vadd.f32 %v1184, %v1577
      %v1672 = vadd.f32 %v1189, %v1582
      %v1673 = vadd.f32 %v1192, %v1585
      %v1674 = vadd.f32 %v1197, %v1590
      %v1675 = vadd.f32 %v1200, %v1593
      %v1676 = vadd.f32 %v1205, %v1598
      %v1677 = vadd.f32 %v1208, %v1601
      %v1678 = vadd.f32 %v1213, %v1606
      %v1679 = vadd.f32 %v1216, %v1609
      %v1680 = vadd.f32 %v1221, %v1614
      %v1681 = vadd.f32 %v1224, %v1617
      %v1682 = vadd.f32 %v1229, %v1622
      %v1683 = vadd.f32 %v1232, %v1625
      %v1684 = vadd.f32 %v1237, %v1630
      %v1685 = vadd.f32 %v1240, %v1633
      %v1686 = vadd.f32 %v1245, %v1638
      %v1687 = vadd.f32 %v1248, %v1641
      %v1688 = vadd.f32 %v1253, %v1646
      %v1689 = vadd.f32 %v1256, %v1649
      %v1690 = vadd.f32 %v1261, %v1654
      %v1691 = vadd.f32 %v1264, %v1657
      %s1692 = scalar_lea.vmem %s249, 6
      %v1693 = vld [vmem:[%s1692] sm:$0x3]
      %v1696 = vunpack.c.l.b16 %v317
      %v1697 = vunpack.c.l.b16 %v318
      %v1698 = vpack.c.b16 %v1697, %v1696
      %v1700 = vsel %vm761, %v1698, 0
      %v1703 = vsel %vm810, %v1693, 0
      %1705 = vmatprep.subr.bf16.mxu0 0
      %1706 = vmatpush1.bf16.msra.mxu0 %v1703
      %1707 = vmatprep.subr.bf16.mxu0 0
      %1708 = vmatpush1.bf16.msra.mxu0 0
      %1709 = vmatprep.subr.bf16.mxu0 0
      %1710 = vmatpush1.bf16.msra.mxu0 0
      %1711 = vmatprep.subr.bf16.mxu0 0
      %1712 = vmatpush1.bf16.msra.mxu0 0
      %1713 = vmatprep.subr.bf16.mxu0 0
      %1714 = vmatpush1.bf16.msra.mxu0 0
      %1715 = vmatprep.subr.bf16.mxu0 0
      %1716 = vmatpush1.bf16.msra.mxu0 0
      %1717 = vmatprep.subr.bf16.mxu0 0
      %1718 = vmatpush1.bf16.msra.mxu0 0
      %1719 = vmatprep.subr.bf16.mxu0 0
      %1720 = vmatpush1.bf16.msra.mxu0 0
      %1721 = vmatprep.subr.bf16.mxu0 0
      %1722 = vmatpush1.bf16.msra.mxu0 0
      %1723 = vmatprep.subr.bf16.mxu0 0
      %1724 = vmatpush1.bf16.msra.mxu0 0
      %1725 = vmatprep.subr.bf16.mxu0 0
      %1726 = vmatpush1.bf16.msra.mxu0 0
      %1727 = vmatprep.subr.bf16.mxu0 0
      %1728 = vmatpush1.bf16.msra.mxu0 0
      %1729 = vmatprep.subr.bf16.mxu0 0
      %1730 = vmatpush1.bf16.msra.mxu0 0
      %1731 = vmatprep.subr.bf16.mxu0 0
      %1732 = vmatpush1.bf16.msra.mxu0 0
      %1733 = vmatprep.subr.bf16.mxu0 0
      %1734 = vmatpush1.bf16.msra.mxu0 0
      %1735 = vmatprep.subr.bf16.mxu0 0
      %1736 = vmatpush1.bf16.msra.mxu0 0
      %1737 = vmatprep.mubr.bf16.mxu0 0
      %1738 = vmatmul.mubr.bf16.gmra.mrb[0].mxu0 %v1059
      %v1739 = vpop.f32.mrb[0].mxu0
      %v1740 = vadd.f32 0.0, %v1739
      %v1741 = vpop.f32.mrb[0].mxu0
      %v1742 = vpop.f32.mrb[0].mxu0
      %v1743 = vadd.f32 0.0, %v1742
      %v1744 = vpop.f32.mrb[0].mxu0
      %1745 = vmatprep.mubr.bf16.mxu0 0
      %1746 = vmatmul.mubr.bf16.gmra.mrb[0].mxu0 %v1062
      %v1747 = vpop.f32.mrb[0].mxu0
      %v1748 = vadd.f32 0.0, %v1747
      %v1749 = vpop.f32.mrb[0].mxu0
      %v1750 = vpop.f32.mrb[0].mxu0
      %v1751 = vadd.f32 0.0, %v1750
      %v1752 = vpop.f32.mrb[0].mxu0
      %1753 = vmatprep.mubr.bf16.mxu0 0
      %1754 = vmatmul.mubr.bf16.gmra.mrb[0].mxu0 %v1065
      %v1755 = vpop.f32.mrb[0].mxu0
      %v1756 = vadd.f32 0.0, %v1755
      %v1757 = vpop.f32.mrb[0].mxu0
      %v1758 = vpop.f32.mrb[0].mxu0
      %v1759 = vadd.f32 0.0, %v1758
      %v1760 = vpop.f32.mrb[0].mxu0
      %1761 = vmatprep.mubr.bf16.mxu0 0
      %1762 = vmatmul.mubr.bf16.gmra.mrb[0].mxu0 %v1068
      %v1763 = vpop.f32.mrb[0].mxu0
      %v1764 = vadd.f32 0.0, %v1763
      %v1765 = vpop.f32.mrb[0].mxu0
      %v1766 = vpop.f32.mrb[0].mxu0
      %v1767 = vadd.f32 0.0, %v1766
      %v1768 = vpop.f32.mrb[0].mxu0
      %1769 = vmatprep.mubr.bf16.mxu0 0
      %1770 = vmatmul.mubr.bf16.gmra.mrb[0].mxu0 %v1071
      %v1771 = vpop.f32.mrb[0].mxu0
      %v1772 = vadd.f32 0.0, %v1771
      %v1773 = vpop.f32.mrb[0].mxu0
      %v1774 = vpop.f32.mrb[0].mxu0
      %v1775 = vadd.f32 0.0, %v1774
      %v1776 = vpop.f32.mrb[0].mxu0
      %1777 = vmatprep.mubr.bf16.mxu0 0
      %1778 = vmatmul.mubr.bf16.gmra.mrb[0].mxu0 %v1074
      %v1779 = vpop.f32.mrb[0].mxu0
      %v1780 = vadd.f32 0.0, %v1779
      %v1781 = vpop.f32.mrb[0].mxu0
      %v1782 = vpop.f32.mrb[0].mxu0
      %v1783 = vadd.f32 0.0, %v1782
      %v1784 = vpop.f32.mrb[0].mxu0
      %1785 = vmatprep.mubr.bf16.mxu0 0
      %1786 = vmatmul.mubr.bf16.gmra.mrb[0].mxu0 %v1077
      %v1787 = vpop.f32.mrb[0].mxu0
      %v1788 = vadd.f32 0.0, %v1787
      %v1789 = vpop.f32.mrb[0].mxu0
      %v1790 = vpop.f32.mrb[0].mxu0
      %v1791 = vadd.f32 0.0, %v1790
      %v1792 = vpop.f32.mrb[0].mxu0
      %1793 = vmatprep.mubr.bf16.mxu0 0
      %1794 = vmatmul.mubr.bf16.gmra.mrb[0].mxu0 %v1080
      %v1795 = vpop.f32.mrb[0].mxu0
      %v1796 = vadd.f32 0.0, %v1795
      %v1797 = vpop.f32.mrb[0].mxu0
      %v1798 = vpop.f32.mrb[0].mxu0
      %v1799 = vadd.f32 0.0, %v1798
      %v1800 = vpop.f32.mrb[0].mxu0
      %1801 = vmatprep.mubr.bf16.mxu0 0
      %1802 = vmatmul.mubr.bf16.gmra.mrb[0].mxu0 %v1083
      %v1803 = vpop.f32.mrb[0].mxu0
      %v1804 = vadd.f32 0.0, %v1803
      %v1805 = vpop.f32.mrb[0].mxu0
      %v1806 = vpop.f32.mrb[0].mxu0
      %v1807 = vadd.f32 0.0, %v1806
      %v1808 = vpop.f32.mrb[0].mxu0
      %1809 = vmatprep.mubr.bf16.mxu0 0
      %1810 = vmatmul.mubr.bf16.gmra.mrb[0].mxu0 %v1086
      %v1811 = vpop.f32.mrb[0].mxu0
      %v1812 = vadd.f32 0.0, %v1811
      %v1813 = vpop.f32.mrb[0].mxu0
      %v1814 = vpop.f32.mrb[0].mxu0
      %v1815 = vadd.f32 0.0, %v1814
      %v1816 = vpop.f32.mrb[0].mxu0
      %1817 = vmatprep.mubr.bf16.mxu0 0
      %1818 = vmatmul.mubr.bf16.gmra.mrb[0].mxu0 %v1089
      %v1819 = vpop.f32.mrb[0].mxu0
      %v1820 = vadd.f32 0.0, %v1819
      %v1821 = vpop.f32.mrb[0].mxu0
      %v1822 = vpop.f32.mrb[0].mxu0
      %v1823 = vadd.f32 0.0, %v1822
      %v1824 = vpop.f32.mrb[0].mxu0
      %1825 = vmatprep.mubr.bf16.mxu0 0
      %1826 = vmatmul.mubr.bf16.gmra.mrb[0].mxu0 %v1092
      %v1827 = vpop.f32.mrb[0].mxu0
      %v1828 = vadd.f32 0.0, %v1827
      %v1829 = vpop.f32.mrb[0].mxu0
      %v1830 = vpop.f32.mrb[0].mxu0
      %v1831 = vadd.f32 0.0, %v1830
      %v1832 = vpop.f32.mrb[0].mxu0
      %1833 = vmatprep.mubr.bf16.mxu0 0
      %1834 = vmatmul.mubr.bf16.gmra.mrb[0].mxu0 %v1095
      %v1835 = vpop.f32.mrb[0].mxu0
      %v1836 = vadd.f32 0.0, %v1835
      %v1837 = vpop.f32.mrb[0].mxu0
      %v1838 = vpop.f32.mrb[0].mxu0
      %v1839 = vadd.f32 0.0, %v1838
      %v1840 = vpop.f32.mrb[0].mxu0
      %1841 = vmatprep.mubr.bf16.mxu0 0
      %1842 = vmatmul.mubr.bf16.gmra.mrb[0].mxu0 %v1098
      %v1843 = vpop.f32.mrb[0].mxu0
      %v1844 = vadd.f32 0.0, %v1843
      %v1845 = vpop.f32.mrb[0].mxu0
      %v1846 = vpop.f32.mrb[0].mxu0
      %v1847 = vadd.f32 0.0, %v1846
      %v1848 = vpop.f32.mrb[0].mxu0
      %1849 = vmatprep.mubr.bf16.mxu0 0
      %1850 = vmatmul.mubr.bf16.gmra.mrb[0].mxu0 %v1101
      %v1851 = vpop.f32.mrb[0].mxu0
      %v1852 = vadd.f32 0.0, %v1851
      %v1853 = vpop.f32.mrb[0].mxu0
      %v1854 = vpop.f32.mrb[0].mxu0
      %v1855 = vadd.f32 0.0, %v1854
      %v1856 = vpop.f32.mrb[0].mxu0
      %1857 = vmatprep.mubr.bf16.mxu0 0
      %1858 = vmatmul.mubr.bf16.gmra.mrb[0].mxu0 %v1700
      %v1859 = vpop.f32.mrb[0].mxu0
      %v1860 = vadd.f32 0.0, %v1859
      %v1861 = vpop.f32.mrb[0].mxu0
      %v1862 = vpop.f32.mrb[0].mxu0
      %v1863 = vadd.f32 0.0, %v1862
      %v1864 = vpop.f32.mrb[0].mxu0
      %1865 = vdwg.mxu0
      %v1866 = vadd.f32 %v1660, %v1740
      %v1867 = vadd.f32 %v1661, %v1743
      %v1868 = vadd.f32 %v1662, %v1748
      %v1869 = vadd.f32 %v1663, %v1751
      %v1870 = vadd.f32 %v1664, %v1756
      %v1871 = vadd.f32 %v1665, %v1759
      %v1872 = vadd.f32 %v1666, %v1764
      %v1873 = vadd.f32 %v1667, %v1767
      %v1874 = vadd.f32 %v1668, %v1772
      %v1875 = vadd.f32 %v1669, %v1775
      %v1876 = vadd.f32 %v1670, %v1780
      %v1877 = vadd.f32 %v1671, %v1783
      %v1878 = vadd.f32 %v1672, %v1788
      %v1879 = vadd.f32 %v1673, %v1791
      %v1880 = vadd.f32 %v1674, %v1796
      %v1881 = vadd.f32 %v1675, %v1799
      %v1882 = vadd.f32 %v1676, %v1804
      %v1883 = vadd.f32 %v1677, %v1807
      %v1884 = vadd.f32 %v1678, %v1812
      %v1885 = vadd.f32 %v1679, %v1815
      %v1886 = vadd.f32 %v1680, %v1820
      %v1887 = vadd.f32 %v1681, %v1823
      %v1888 = vadd.f32 %v1682, %v1828
      %v1889 = vadd.f32 %v1683, %v1831
      %v1890 = vadd.f32 %v1684, %v1836
      %v1891 = vadd.f32 %v1685, %v1839
      %v1892 = vadd.f32 %v1686, %v1844
      %v1893 = vadd.f32 %v1687, %v1847
      %v1894 = vadd.f32 %v1688, %v1852
      %v1895 = vadd.f32 %v1689, %v1855
      %v1896 = vadd.f32 %v1690, %v1860
      %v1897 = vadd.f32 %v1691, %v1863
      %v1899 = vshrl.u32 %v317, 16
      %v1901 = vrot.slane %v1899, 4
      %v1902 = vshll.u32 %v317, 16
      %v1904 = vrot.slane %v1902, 5
      %v1905 = vor.u32 %v1901, %v1904
      %v1906 = vrot.slane %v1905, 4
      %v1908 = vshll.u32 %v318, 16
      %v1910 = vrot.slane %v1908, 5
      %v1911 = vsel %vm326, %v1906, %v1910
      %v1912 = vshrl.u32 %v318, 16
      %v1914 = vrot.slane %v1912, 4
      %v1915 = vor.u32 %v1914, %v1910
      %v1916 = vrot.slane %v1915, 4
      %v1918 = vshll.u32 %v319, 16
      %v1920 = vrot.slane %v1918, 5
      %v1921 = vsel %vm326, %v1916, %v1920
      %s1922 = scalar_lea.vmem %s249, 8
      %v1923 = vld [vmem:[%s1922] sm:$0x3]
      %v1924 = vunpack.c.l.b16 %v1911
      %v1925 = vunpack.c.l.b16 %v1921
      %v1926 = vpack.c.b16 %v1925, %v1924
      %v1928 = vsel %vm761, %v1926, 0
      %v1931 = vsel %vm810, %v1923, 0
      %1933 = vmatprep.subr.bf16.mxu0 0
      %1934 = vmatpush1.bf16.msra.mxu0 %v1931
      %1935 = vmatprep.subr.bf16.mxu0 0
      %1936 = vmatpush1.bf16.msra.mxu0 0
      %1937 = vmatprep.subr.bf16.mxu0 0
      %1938 = vmatpush1.bf16.msra.mxu0 0
      %1939 = vmatprep.subr.bf16.mxu0 0
      %1940 = vmatpush1.bf16.msra.mxu0 0
      %1941 = vmatprep.subr.bf16.mxu0 0
      %1942 = vmatpush1.bf16.msra.mxu0 0
      %1943 = vmatprep.subr.bf16.mxu0 0
      %1944 = vmatpush1.bf16.msra.mxu0 0
      %1945 = vmatprep.subr.bf16.mxu0 0
      %1946 = vmatpush1.bf16.msra.mxu0 0
      %1947 = vmatprep.subr.bf16.mxu0 0
      %1948 = vmatpush1.bf16.msra.mxu0 0
      %1949 = vmatprep.subr.bf16.mxu0 0
      %1950 = vmatpush1.bf16.msra.mxu0 0
      %1951 = vmatprep.subr.bf16.mxu0 0
      %1952 = vmatpush1.bf16.msra.mxu0 0
      %1953 = vmatprep.subr.bf16.mxu0 0
      %1954 = vmatpush1.bf16.msra.mxu0 0
      %1955 = vmatprep.subr.bf16.mxu0 0
      %1956 = vmatpush1.bf16.msra.mxu0 0
      %1957 = vmatprep.subr.bf16.mxu0 0
      %1958 = vmatpush1.bf16.msra.mxu0 0
      %1959 = vmatprep.subr.bf16.mxu0 0
      %1960 = vmatpush1.bf16.msra.mxu0 0
      %1961 = vmatprep.subr.bf16.mxu0 0
      %1962 = vmatpush1.bf16.msra.mxu0 0
      %1963 = vmatprep.subr.bf16.mxu0 0
      %1964 = vmatpush1.bf16.msra.mxu0 0
      %1965 = vmatprep.mubr.bf16.mxu0 0
      %1966 = vmatmul.mubr.bf16.gmra.mrb[0].mxu0 %v766
      %v1967 = vpop.f32.mrb[0].mxu0
      %v1968 = vadd.f32 0.0, %v1967
      %v1969 = vpop.f32.mrb[0].mxu0
      %v1970 = vpop.f32.mrb[0].mxu0
      %v1971 = vadd.f32 0.0, %v1970
      %v1972 = vpop.f32.mrb[0].mxu0
      %1973 = vmatprep.mubr.bf16.mxu0 0
      %1974 = vmatmul.mubr.bf16.gmra.mrb[0].mxu0 %v769
      %v1975 = vpop.f32.mrb[0].mxu0
      %v1976 = vadd.f32 0.0, %v1975
      %v1977 = vpop.f32.mrb[0].mxu0
      %v1978 = vpop.f32.mrb[0].mxu0
      %v1979 = vadd.f32 0.0, %v1978
      %v1980 = vpop.f32.mrb[0].mxu0
      %1981 = vmatprep.mubr.bf16.mxu0 0
      %1982 = vmatmul.mubr.bf16.gmra.mrb[0].mxu0 %v772
      %v1983 = vpop.f32.mrb[0].mxu0
      %v1984 = vadd.f32 0.0, %v1983
      %v1985 = vpop.f32.mrb[0].mxu0
      %v1986 = vpop.f32.mrb[0].mxu0
      %v1987 = vadd.f32 0.0, %v1986
      %v1988 = vpop.f32.mrb[0].mxu0
      %1989 = vmatprep.mubr.bf16.mxu0 0
      %1990 = vmatmul.mubr.bf16.gmra.mrb[0].mxu0 %v775
      %v1991 = vpop.f32.mrb[0].mxu0
      %v1992 = vadd.f32 0.0, %v1991
      %v1993 = vpop.f32.mrb[0].mxu0
      %v1994 = vpop.f32.mrb[0].mxu0
      %v1995 = vadd.f32 0.0, %v1994
      %v1996 = vpop.f32.mrb[0].mxu0
      %1997 = vmatprep.mubr.bf16.mxu0 0
      %1998 = vmatmul.mubr.bf16.gmra.mrb[0].mxu0 %v778
      %v1999 = vpop.f32.mrb[0].mxu0
      %v2000 = vadd.f32 0.0, %v1999
      %v2001 = vpop.f32.mrb[0].mxu0
      %v2002 = vpop.f32.mrb[0].mxu0
      %v2003 = vadd.f32 0.0, %v2002
      %v2004 = vpop.f32.mrb[0].mxu0
      %2005 = vmatprep.mubr.bf16.mxu0 0
      %2006 = vmatmul.mubr.bf16.gmra.mrb[0].mxu0 %v781
      %v2007 = vpop.f32.mrb[0].mxu0
      %v2008 = vadd.f32 0.0, %v2007
      %v2009 = vpop.f32.mrb[0].mxu0
      %v2010 = vpop.f32.mrb[0].mxu0
      %v2011 = vadd.f32 0.0, %v2010
      %v2012 = vpop.f32.mrb[0].mxu0
      %2013 = vmatprep.mubr.bf16.mxu0 0
      %2014 = vmatmul.mubr.bf16.gmra.mrb[0].mxu0 %v784
      %v2015 = vpop.f32.mrb[0].mxu0
      %v2016 = vadd.f32 0.0, %v2015
      %v2017 = vpop.f32.mrb[0].mxu0
      %v2018 = vpop.f32.mrb[0].mxu0
      %v2019 = vadd.f32 0.0, %v2018
      %v2020 = vpop.f32.mrb[0].mxu0
      %2021 = vmatprep.mubr.bf16.mxu0 0
      %2022 = vmatmul.mubr.bf16.gmra.mrb[0].mxu0 %v787
      %v2023 = vpop.f32.mrb[0].mxu0
      %v2024 = vadd.f32 0.0, %v2023
      %v2025 = vpop.f32.mrb[0].mxu0
      %v2026 = vpop.f32.mrb[0].mxu0
      %v2027 = vadd.f32 0.0, %v2026
      %v2028 = vpop.f32.mrb[0].mxu0
      %2029 = vmatprep.mubr.bf16.mxu0 0
      %2030 = vmatmul.mubr.bf16.gmra.mrb[0].mxu0 %v790
      %v2031 = vpop.f32.mrb[0].mxu0
      %v2032 = vadd.f32 0.0, %v2031
      %v2033 = vpop.f32.mrb[0].mxu0
      %v2034 = vpop.f32.mrb[0].mxu0
      %v2035 = vadd.f32 0.0, %v2034
      %v2036 = vpop.f32.mrb[0].mxu0
      %2037 = vmatprep.mubr.bf16.mxu0 0
      %2038 = vmatmul.mubr.bf16.gmra.mrb[0].mxu0 %v793
      %v2039 = vpop.f32.mrb[0].mxu0
      %v2040 = vadd.f32 0.0, %v2039
      %v2041 = vpop.f32.mrb[0].mxu0
      %v2042 = vpop.f32.mrb[0].mxu0
      %v2043 = vadd.f32 0.0, %v2042
      %v2044 = vpop.f32.mrb[0].mxu0
      %2045 = vmatprep.mubr.bf16.mxu0 0
      %2046 = vmatmul.mubr.bf16.gmra.mrb[0].mxu0 %v796
      %v2047 = vpop.f32.mrb[0].mxu0
      %v2048 = vadd.f32 0.0, %v2047
      %v2049 = vpop.f32.mrb[0].mxu0
      %v2050 = vpop.f32.mrb[0].mxu0
      %v2051 = vadd.f32 0.0, %v2050
      %v2052 = vpop.f32.mrb[0].mxu0
      %2053 = vmatprep.mubr.bf16.mxu0 0
      %2054 = vmatmul.mubr.bf16.gmra.mrb[0].mxu0 %v799
      %v2055 = vpop.f32.mrb[0].mxu0
      %v2056 = vadd.f32 0.0, %v2055
      %v2057 = vpop.f32.mrb[0].mxu0
      %v2058 = vpop.f32.mrb[0].mxu0
      %v2059 = vadd.f32 0.0, %v2058
      %v2060 = vpop.f32.mrb[0].mxu0
      %2061 = vmatprep.mubr.bf16.mxu0 0
      %2062 = vmatmul.mubr.bf16.gmra.mrb[0].mxu0 %v802
      %v2063 = vpop.f32.mrb[0].mxu0
      %v2064 = vadd.f32 0.0, %v2063
      %v2065 = vpop.f32.mrb[0].mxu0
      %v2066 = vpop.f32.mrb[0].mxu0
      %v2067 = vadd.f32 0.0, %v2066
      %v2068 = vpop.f32.mrb[0].mxu0
      %2069 = vmatprep.mubr.bf16.mxu0 0
      %2070 = vmatmul.mubr.bf16.gmra.mrb[0].mxu0 %v805
      %v2071 = vpop.f32.mrb[0].mxu0
      %v2072 = vadd.f32 0.0, %v2071
      %v2073 = vpop.f32.mrb[0].mxu0
      %v2074 = vpop.f32.mrb[0].mxu0
      %v2075 = vadd.f32 0.0, %v2074
      %v2076 = vpop.f32.mrb[0].mxu0
      %2077 = vmatprep.mubr.bf16.mxu0 0
      %2078 = vmatmul.mubr.bf16.gmra.mrb[0].mxu0 %v808
      %v2079 = vpop.f32.mrb[0].mxu0
      %v2080 = vadd.f32 0.0, %v2079
      %v2081 = vpop.f32.mrb[0].mxu0
      %v2082 = vpop.f32.mrb[0].mxu0
      %v2083 = vadd.f32 0.0, %v2082
      %v2084 = vpop.f32.mrb[0].mxu0
      %2085 = vmatprep.mubr.bf16.mxu0 0
      %2086 = vmatmul.mubr.bf16.gmra.mrb[0].mxu0 %v1928
      %v2087 = vpop.f32.mrb[0].mxu0
      %v2088 = vadd.f32 0.0, %v2087
      %v2089 = vpop.f32.mrb[0].mxu0
      %v2090 = vpop.f32.mrb[0].mxu0
      %v2091 = vadd.f32 0.0, %v2090
      %v2092 = vpop.f32.mrb[0].mxu0
      %2093 = vdwg.mxu0
      %v2094 = vadd.f32 %v1866, %v1968
      %v2095 = vadd.f32 %v1867, %v1971
      %v2096 = vadd.f32 %v1868, %v1976
      %v2097 = vadd.f32 %v1869, %v1979
      %v2098 = vadd.f32 %v1870, %v1984
      %v2099 = vadd.f32 %v1871, %v1987
      %v2100 = vadd.f32 %v1872, %v1992
      %v2101 = vadd.f32 %v1873, %v1995
      %v2102 = vadd.f32 %v1874, %v2000
      %v2103 = vadd.f32 %v1875, %v2003
      %v2104 = vadd.f32 %v1876, %v2008
      %v2105 = vadd.f32 %v1877, %v2011
      %v2106 = vadd.f32 %v1878, %v2016
      %v2107 = vadd.f32 %v1879, %v2019
      %v2108 = vadd.f32 %v1880, %v2024
      %v2109 = vadd.f32 %v1881, %v2027
      %v2110 = vadd.f32 %v1882, %v2032
      %v2111 = vadd.f32 %v1883, %v2035
      %v2112 = vadd.f32 %v1884, %v2040
      %v2113 = vadd.f32 %v1885, %v2043
      %v2114 = vadd.f32 %v1886, %v2048
      %v2115 = vadd.f32 %v1887, %v2051
      %v2116 = vadd.f32 %v1888, %v2056
      %v2117 = vadd.f32 %v1889, %v2059
      %v2118 = vadd.f32 %v1890, %v2064
      %v2119 = vadd.f32 %v1891, %v2067
      %v2120 = vadd.f32 %v1892, %v2072
      %v2121 = vadd.f32 %v1893, %v2075
      %v2122 = vadd.f32 %v1894, %v2080
      %v2123 = vadd.f32 %v1895, %v2083
      %v2124 = vadd.f32 %v1896, %v2088
      %v2125 = vadd.f32 %v1897, %v2091
      %v2127 = vrot.slane %v317, 5
      %v2128 = vrot.slane %v2127, 4
      %v2129 = vrot.slane %v318, 5
      %v2130 = vsel %vm1285, %v2128, %v2129
      %v2131 = vrot.slane %v2129, 4
      %v2132 = vrot.slane %v319, 5
      %v2133 = vsel %vm1285, %v2131, %v2132
      %s2134 = scalar_lea.vmem %s249, 10
      %v2135 = vld [vmem:[%s2134] sm:$0x3]
      %v2136 = vunpack.c.l.b16 %v2130
      %v2137 = vunpack.c.l.b16 %v2133
      %v2138 = vpack.c.b16 %v2137, %v2136
      %v2140 = vsel %vm761, %v2138, 0
      %v2143 = vsel %vm810, %v2135, 0
      %2145 = vmatprep.subr.bf16.mxu0 0
      %2146 = vmatpush1.bf16.msra.mxu0 %v2143
      %2147 = vmatprep.subr.bf16.mxu0 0
      %2148 = vmatpush1.bf16.msra.mxu0 0
      %2149 = vmatprep.subr.bf16.mxu0 0
      %2150 = vmatpush1.bf16.msra.mxu0 0
      %2151 = vmatprep.subr.bf16.mxu0 0
      %2152 = vmatpush1.bf16.msra.mxu0 0
      %2153 = vmatprep.subr.bf16.mxu0 0
      %2154 = vmatpush1.bf16.msra.mxu0 0
      %2155 = vmatprep.subr.bf16.mxu0 0
      %2156 = vmatpush1.bf16.msra.mxu0 0
      %2157 = vmatprep.subr.bf16.mxu0 0
      %2158 = vmatpush1.bf16.msra.mxu0 0
      %2159 = vmatprep.subr.bf16.mxu0 0
      %2160 = vmatpush1.bf16.msra.mxu0 0
      %2161 = vmatprep.subr.bf16.mxu0 0
      %2162 = vmatpush1.bf16.msra.mxu0 0
      %2163 = vmatprep.subr.bf16.mxu0 0
      %2164 = vmatpush1.bf16.msra.mxu0 0
      %2165 = vmatprep.subr.bf16.mxu0 0
      %2166 = vmatpush1.bf16.msra.mxu0 0
      %2167 = vmatprep.subr.bf16.mxu0 0
      %2168 = vmatpush1.bf16.msra.mxu0 0
      %2169 = vmatprep.subr.bf16.mxu0 0
      %2170 = vmatpush1.bf16.msra.mxu0 0
      %2171 = vmatprep.subr.bf16.mxu0 0
      %2172 = vmatpush1.bf16.msra.mxu0 0
      %2173 = vmatprep.subr.bf16.mxu0 0
      %2174 = vmatpush1.bf16.msra.mxu0 0
      %2175 = vmatprep.subr.bf16.mxu0 0
      %2176 = vmatpush1.bf16.msra.mxu0 0
      %2177 = vmatprep.mubr.bf16.mxu0 0
      %2178 = vmatmul.mubr.bf16.gmra.mrb[0].mxu0 %v1452
      %v2179 = vpop.f32.mrb[0].mxu0
      %v2180 = vadd.f32 0.0, %v2179
      %v2181 = vpop.f32.mrb[0].mxu0
      %v2182 = vpop.f32.mrb[0].mxu0
      %v2183 = vadd.f32 0.0, %v2182
      %v2184 = vpop.f32.mrb[0].mxu0
      %2185 = vmatprep.mubr.bf16.mxu0 0
      %2186 = vmatmul.mubr.bf16.gmra.mrb[0].mxu0 %v1455
      %v2187 = vpop.f32.mrb[0].mxu0
      %v2188 = vadd.f32 0.0, %v2187
      %v2189 = vpop.f32.mrb[0].mxu0
      %v2190 = vpop.f32.mrb[0].mxu0
      %v2191 = vadd.f32 0.0, %v2190
      %v2192 = vpop.f32.mrb[0].mxu0
      %2193 = vmatprep.mubr.bf16.mxu0 0
      %2194 = vmatmul.mubr.bf16.gmra.mrb[0].mxu0 %v1458
      %v2195 = vpop.f32.mrb[0].mxu0
      %v2196 = vadd.f32 0.0, %v2195
      %v2197 = vpop.f32.mrb[0].mxu0
      %v2198 = vpop.f32.mrb[0].mxu0
      %v2199 = vadd.f32 0.0, %v2198
      %v2200 = vpop.f32.mrb[0].mxu0
      %2201 = vmatprep.mubr.bf16.mxu0 0
      %2202 = vmatmul.mubr.bf16.gmra.mrb[0].mxu0 %v1461
      %v2203 = vpop.f32.mrb[0].mxu0
      %v2204 = vadd.f32 0.0, %v2203
      %v2205 = vpop.f32.mrb[0].mxu0
      %v2206 = vpop.f32.mrb[0].mxu0
      %v2207 = vadd.f32 0.0, %v2206
      %v2208 = vpop.f32.mrb[0].mxu0
      %2209 = vmatprep.mubr.bf16.mxu0 0
      %2210 = vmatmul.mubr.bf16.gmra.mrb[0].mxu0 %v1464
      %v2211 = vpop.f32.mrb[0].mxu0
      %v2212 = vadd.f32 0.0, %v2211
      %v2213 = vpop.f32.mrb[0].mxu0
      %v2214 = vpop.f32.mrb[0].mxu0
      %v2215 = vadd.f32 0.0, %v2214
      %v2216 = vpop.f32.mrb[0].mxu0
      %2217 = vmatprep.mubr.bf16.mxu0 0
      %2218 = vmatmul.mubr.bf16.gmra.mrb[0].mxu0 %v1467
      %v2219 = vpop.f32.mrb[0].mxu0
      %v2220 = vadd.f32 0.0, %v2219
      %v2221 = vpop.f32.mrb[0].mxu0
      %v2222 = vpop.f32.mrb[0].mxu0
      %v2223 = vadd.f32 0.0, %v2222
      %v2224 = vpop.f32.mrb[0].mxu0
      %2225 = vmatprep.mubr.bf16.mxu0 0
      %2226 = vmatmul.mubr.bf16.gmra.mrb[0].mxu0 %v1470
      %v2227 = vpop.f32.mrb[0].mxu0
      %v2228 = vadd.f32 0.0, %v2227
      %v2229 = vpop.f32.mrb[0].mxu0
      %v2230 = vpop.f32.mrb[0].mxu0
      %v2231 = vadd.f32 0.0, %v2230
      %v2232 = vpop.f32.mrb[0].mxu0
      %2233 = vmatprep.mubr.bf16.mxu0 0
      %2234 = vmatmul.mubr.bf16.gmra.mrb[0].mxu0 %v1473
      %v2235 = vpop.f32.mrb[0].mxu0
      %v2236 = vadd.f32 0.0, %v2235
      %v2237 = vpop.f32.mrb[0].mxu0
      %v2238 = vpop.f32.mrb[0].mxu0
      %v2239 = vadd.f32 0.0, %v2238
      %v2240 = vpop.f32.mrb[0].mxu0
      %2241 = vmatprep.mubr.bf16.mxu0 0
      %2242 = vmatmul.mubr.bf16.gmra.mrb[0].mxu0 %v1476
      %v2243 = vpop.f32.mrb[0].mxu0
      %v2244 = vadd.f32 0.0, %v2243
      %v2245 = vpop.f32.mrb[0].mxu0
      %v2246 = vpop.f32.mrb[0].mxu0
      %v2247 = vadd.f32 0.0, %v2246
      %v2248 = vpop.f32.mrb[0].mxu0
      %2249 = vmatprep.mubr.bf16.mxu0 0
      %2250 = vmatmul.mubr.bf16.gmra.mrb[0].mxu0 %v1479
      %v2251 = vpop.f32.mrb[0].mxu0
      %v2252 = vadd.f32 0.0, %v2251
      %v2253 = vpop.f32.mrb[0].mxu0
      %v2254 = vpop.f32.mrb[0].mxu0
      %v2255 = vadd.f32 0.0, %v2254
      %v2256 = vpop.f32.mrb[0].mxu0
      %2257 = vmatprep.mubr.bf16.mxu0 0
      %2258 = vmatmul.mubr.bf16.gmra.mrb[0].mxu0 %v1482
      %v2259 = vpop.f32.mrb[0].mxu0
      %v2260 = vadd.f32 0.0, %v2259
      %v2261 = vpop.f32.mrb[0].mxu0
      %v2262 = vpop.f32.mrb[0].mxu0
      %v2263 = vadd.f32 0.0, %v2262
      %v2264 = vpop.f32.mrb[0].mxu0
      %2265 = vmatprep.mubr.bf16.mxu0 0
      %2266 = vmatmul.mubr.bf16.gmra.mrb[0].mxu0 %v1485
      %v2267 = vpop.f32.mrb[0].mxu0
      %v2268 = vadd.f32 0.0, %v2267
      %v2269 = vpop.f32.mrb[0].mxu0
      %v2270 = vpop.f32.mrb[0].mxu0
      %v2271 = vadd.f32 0.0, %v2270
      %v2272 = vpop.f32.mrb[0].mxu0
      %2273 = vmatprep.mubr.bf16.mxu0 0
      %2274 = vmatmul.mubr.bf16.gmra.mrb[0].mxu0 %v1488
      %v2275 = vpop.f32.mrb[0].mxu0
      %v2276 = vadd.f32 0.0, %v2275
      %v2277 = vpop.f32.mrb[0].mxu0
      %v2278 = vpop.f32.mrb[0].mxu0
      %v2279 = vadd.f32 0.0, %v2278
      %v2280 = vpop.f32.mrb[0].mxu0
      %2281 = vmatprep.mubr.bf16.mxu0 0
      %2282 = vmatmul.mubr.bf16.gmra.mrb[0].mxu0 %v1491
      %v2283 = vpop.f32.mrb[0].mxu0
      %v2284 = vadd.f32 0.0, %v2283
      %v2285 = vpop.f32.mrb[0].mxu0
      %v2286 = vpop.f32.mrb[0].mxu0
      %v2287 = vadd.f32 0.0, %v2286
      %v2288 = vpop.f32.mrb[0].mxu0
      %2289 = vmatprep.mubr.bf16.mxu0 0
      %2290 = vmatmul.mubr.bf16.gmra.mrb[0].mxu0 %v1494
      %v2291 = vpop.f32.mrb[0].mxu0
      %v2292 = vadd.f32 0.0, %v2291
      %v2293 = vpop.f32.mrb[0].mxu0
      %v2294 = vpop.f32.mrb[0].mxu0
      %v2295 = vadd.f32 0.0, %v2294
      %v2296 = vpop.f32.mrb[0].mxu0
      %2297 = vmatprep.mubr.bf16.mxu0 0
      %2298 = vmatmul.mubr.bf16.gmra.mrb[0].mxu0 %v2140
      %v2299 = vpop.f32.mrb[0].mxu0
      %v2300 = vadd.f32 0.0, %v2299
      %v2301 = vpop.f32.mrb[0].mxu0
      %v2302 = vpop.f32.mrb[0].mxu0
      %v2303 = vadd.f32 0.0, %v2302
      %v2304 = vpop.f32.mrb[0].mxu0
      %2305 = vdwg.mxu0
      %v2306 = vadd.f32 %v2094, %v2180
      %v2307 = vadd.f32 %v2095, %v2183
      %v2308 = vadd.f32 %v2096, %v2188
      %v2309 = vadd.f32 %v2097, %v2191
      %v2310 = vadd.f32 %v2098, %v2196
      %v2311 = vadd.f32 %v2099, %v2199
      %v2312 = vadd.f32 %v2100, %v2204
      %v2313 = vadd.f32 %v2101, %v2207
      %v2314 = vadd.f32 %v2102, %v2212
      %v2315 = vadd.f32 %v2103, %v2215
      %v2316 = vadd.f32 %v2104, %v2220
      %v2317 = vadd.f32 %v2105, %v2223
      %v2318 = vadd.f32 %v2106, %v2228
      %v2319 = vadd.f32 %v2107, %v2231
      %v2320 = vadd.f32 %v2108, %v2236
      %v2321 = vadd.f32 %v2109, %v2239
      %v2322 = vadd.f32 %v2110, %v2244
      %v2323 = vadd.f32 %v2111, %v2247
      %v2324 = vadd.f32 %v2112, %v2252
      %v2325 = vadd.f32 %v2113, %v2255
      %v2326 = vadd.f32 %v2114, %v2260
      %v2327 = vadd.f32 %v2115, %v2263
      %v2328 = vadd.f32 %v2116, %v2268
      %v2329 = vadd.f32 %v2117, %v2271
      %v2330 = vadd.f32 %v2118, %v2276
      %v2331 = vadd.f32 %v2119, %v2279
      %v2332 = vadd.f32 %v2120, %v2284
      %v2333 = vadd.f32 %v2121, %v2287
      %v2334 = vadd.f32 %v2122, %v2292
      %v2335 = vadd.f32 %v2123, %v2295
      %v2336 = vadd.f32 %v2124, %v2300
      %v2337 = vadd.f32 %v2125, %v2303
      %s2338 = scalar_lea.vmem %s249, 12
      %v2339 = vld [vmem:[%s2338] sm:$0x3]
      %v2342 = vunpack.c.l.b16 %v320
      %v2343 = vunpack.c.l.b16 %v321
      %v2344 = vpack.c.b16 %v2343, %v2342
      %v2346 = vsel %vm761, %v2344, 0
      %v2349 = vsel %vm810, %v2339, 0
      %2351 = vmatprep.subr.bf16.mxu0 0
      %2352 = vmatpush1.bf16.msra.mxu0 %v2349
      %2353 = vmatprep.subr.bf16.mxu0 0
      %2354 = vmatpush1.bf16.msra.mxu0 0
      %2355 = vmatprep.subr.bf16.mxu0 0
      %2356 = vmatpush1.bf16.msra.mxu0 0
      %2357 = vmatprep.subr.bf16.mxu0 0
      %2358 = vmatpush1.bf16.msra.mxu0 0
      %2359 = vmatprep.subr.bf16.mxu0 0
      %2360 = vmatpush1.bf16.msra.mxu0 0
      %2361 = vmatprep.subr.bf16.mxu0 0
      %2362 = vmatpush1.bf16.msra.mxu0 0
      %2363 = vmatprep.subr.bf16.mxu0 0
      %2364 = vmatpush1.bf16.msra.mxu0 0
      %2365 = vmatprep.subr.bf16.mxu0 0
      %2366 = vmatpush1.bf16.msra.mxu0 0
      %2367 = vmatprep.subr.bf16.mxu0 0
      %2368 = vmatpush1.bf16.msra.mxu0 0
      %2369 = vmatprep.subr.bf16.mxu0 0
      %2370 = vmatpush1.bf16.msra.mxu0 0
      %2371 = vmatprep.subr.bf16.mxu0 0
      %2372 = vmatpush1.bf16.msra.mxu0 0
      %2373 = vmatprep.subr.bf16.mxu0 0
      %2374 = vmatpush1.bf16.msra.mxu0 0
      %2375 = vmatprep.subr.bf16.mxu0 0
      %2376 = vmatpush1.bf16.msra.mxu0 0
      %2377 = vmatprep.subr.bf16.mxu0 0
      %2378 = vmatpush1.bf16.msra.mxu0 0
      %2379 = vmatprep.subr.bf16.mxu0 0
      %2380 = vmatpush1.bf16.msra.mxu0 0
      %2381 = vmatprep.subr.bf16.mxu0 0
      %2382 = vmatpush1.bf16.msra.mxu0 0
      %2383 = vmatprep.mubr.bf16.mxu0 0
      %2384 = vmatmul.mubr.bf16.gmra.mrb[0].mxu0 %v1062
      %v2385 = vpop.f32.mrb[0].mxu0
      %v2386 = vadd.f32 0.0, %v2385
      %v2387 = vpop.f32.mrb[0].mxu0
      %v2388 = vpop.f32.mrb[0].mxu0
      %v2389 = vadd.f32 0.0, %v2388
      %v2390 = vpop.f32.mrb[0].mxu0
      %2391 = vmatprep.mubr.bf16.mxu0 0
      %2392 = vmatmul.mubr.bf16.gmra.mrb[0].mxu0 %v1065
      %v2393 = vpop.f32.mrb[0].mxu0
      %v2394 = vadd.f32 0.0, %v2393
      %v2395 = vpop.f32.mrb[0].mxu0
      %v2396 = vpop.f32.mrb[0].mxu0
      %v2397 = vadd.f32 0.0, %v2396
      %v2398 = vpop.f32.mrb[0].mxu0
      %2399 = vmatprep.mubr.bf16.mxu0 0
      %2400 = vmatmul.mubr.bf16.gmra.mrb[0].mxu0 %v1068
      %v2401 = vpop.f32.mrb[0].mxu0
      %v2402 = vadd.f32 0.0, %v2401
      %v2403 = vpop.f32.mrb[0].mxu0
      %v2404 = vpop.f32.mrb[0].mxu0
      %v2405 = vadd.f32 0.0, %v2404
      %v2406 = vpop.f32.mrb[0].mxu0
      %2407 = vmatprep.mubr.bf16.mxu0 0
      %2408 = vmatmul.mubr.bf16.gmra.mrb[0].mxu0 %v1071
      %v2409 = vpop.f32.mrb[0].mxu0
      %v2410 = vadd.f32 0.0, %v2409
      %v2411 = vpop.f32.mrb[0].mxu0
      %v2412 = vpop.f32.mrb[0].mxu0
      %v2413 = vadd.f32 0.0, %v2412
      %v2414 = vpop.f32.mrb[0].mxu0
      %2415 = vmatprep.mubr.bf16.mxu0 0
      %2416 = vmatmul.mubr.bf16.gmra.mrb[0].mxu0 %v1074
      %v2417 = vpop.f32.mrb[0].mxu0
      %v2418 = vadd.f32 0.0, %v2417
      %v2419 = vpop.f32.mrb[0].mxu0
      %v2420 = vpop.f32.mrb[0].mxu0
      %v2421 = vadd.f32 0.0, %v2420
      %v2422 = vpop.f32.mrb[0].mxu0
      %2423 = vmatprep.mubr.bf16.mxu0 0
      %2424 = vmatmul.mubr.bf16.gmra.mrb[0].mxu0 %v1077
      %v2425 = vpop.f32.mrb[0].mxu0
      %v2426 = vadd.f32 0.0, %v2425
      %v2427 = vpop.f32.mrb[0].mxu0
      %v2428 = vpop.f32.mrb[0].mxu0
      %v2429 = vadd.f32 0.0, %v2428
      %v2430 = vpop.f32.mrb[0].mxu0
      %2431 = vmatprep.mubr.bf16.mxu0 0
      %2432 = vmatmul.mubr.bf16.gmra.mrb[0].mxu0 %v1080
      %v2433 = vpop.f32.mrb[0].mxu0
      %v2434 = vadd.f32 0.0, %v2433
      %v2435 = vpop.f32.mrb[0].mxu0
      %v2436 = vpop.f32.mrb[0].mxu0
      %v2437 = vadd.f32 0.0, %v2436
      %v2438 = vpop.f32.mrb[0].mxu0
      %2439 = vmatprep.mubr.bf16.mxu0 0
      %2440 = vmatmul.mubr.bf16.gmra.mrb[0].mxu0 %v1083
      %v2441 = vpop.f32.mrb[0].mxu0
      %v2442 = vadd.f32 0.0, %v2441
      %v2443 = vpop.f32.mrb[0].mxu0
      %v2444 = vpop.f32.mrb[0].mxu0
      %v2445 = vadd.f32 0.0, %v2444
      %v2446 = vpop.f32.mrb[0].mxu0
      %2447 = vmatprep.mubr.bf16.mxu0 0
      %2448 = vmatmul.mubr.bf16.gmra.mrb[0].mxu0 %v1086
      %v2449 = vpop.f32.mrb[0].mxu0
      %v2450 = vadd.f32 0.0, %v2449
      %v2451 = vpop.f32.mrb[0].mxu0
      %v2452 = vpop.f32.mrb[0].mxu0
      %v2453 = vadd.f32 0.0, %v2452
      %v2454 = vpop.f32.mrb[0].mxu0
      %2455 = vmatprep.mubr.bf16.mxu0 0
      %2456 = vmatmul.mubr.bf16.gmra.mrb[0].mxu0 %v1089
      %v2457 = vpop.f32.mrb[0].mxu0
      %v2458 = vadd.f32 0.0, %v2457
      %v2459 = vpop.f32.mrb[0].mxu0
      %v2460 = vpop.f32.mrb[0].mxu0
      %v2461 = vadd.f32 0.0, %v2460
      %v2462 = vpop.f32.mrb[0].mxu0
      %2463 = vmatprep.mubr.bf16.mxu0 0
      %2464 = vmatmul.mubr.bf16.gmra.mrb[0].mxu0 %v1092
      %v2465 = vpop.f32.mrb[0].mxu0
      %v2466 = vadd.f32 0.0, %v2465
      %v2467 = vpop.f32.mrb[0].mxu0
      %v2468 = vpop.f32.mrb[0].mxu0
      %v2469 = vadd.f32 0.0, %v2468
      %v2470 = vpop.f32.mrb[0].mxu0
      %2471 = vmatprep.mubr.bf16.mxu0 0
      %2472 = vmatmul.mubr.bf16.gmra.mrb[0].mxu0 %v1095
      %v2473 = vpop.f32.mrb[0].mxu0
      %v2474 = vadd.f32 0.0, %v2473
      %v2475 = vpop.f32.mrb[0].mxu0
      %v2476 = vpop.f32.mrb[0].mxu0
      %v2477 = vadd.f32 0.0, %v2476
      %v2478 = vpop.f32.mrb[0].mxu0
      %2479 = vmatprep.mubr.bf16.mxu0 0
      %2480 = vmatmul.mubr.bf16.gmra.mrb[0].mxu0 %v1098
      %v2481 = vpop.f32.mrb[0].mxu0
      %v2482 = vadd.f32 0.0, %v2481
      %v2483 = vpop.f32.mrb[0].mxu0
      %v2484 = vpop.f32.mrb[0].mxu0
      %v2485 = vadd.f32 0.0, %v2484
      %v2486 = vpop.f32.mrb[0].mxu0
      %2487 = vmatprep.mubr.bf16.mxu0 0
      %2488 = vmatmul.mubr.bf16.gmra.mrb[0].mxu0 %v1101
      %v2489 = vpop.f32.mrb[0].mxu0
      %v2490 = vadd.f32 0.0, %v2489
      %v2491 = vpop.f32.mrb[0].mxu0
      %v2492 = vpop.f32.mrb[0].mxu0
      %v2493 = vadd.f32 0.0, %v2492
      %v2494 = vpop.f32.mrb[0].mxu0
      %2495 = vmatprep.mubr.bf16.mxu0 0
      %2496 = vmatmul.mubr.bf16.gmra.mrb[0].mxu0 %v1700
      %v2497 = vpop.f32.mrb[0].mxu0
      %v2498 = vadd.f32 0.0, %v2497
      %v2499 = vpop.f32.mrb[0].mxu0
      %v2500 = vpop.f32.mrb[0].mxu0
      %v2501 = vadd.f32 0.0, %v2500
      %v2502 = vpop.f32.mrb[0].mxu0
      %2503 = vmatprep.mubr.bf16.mxu0 0
      %2504 = vmatmul.mubr.bf16.gmra.mrb[0].mxu0 %v2346
      %v2505 = vpop.f32.mrb[0].mxu0
      %v2506 = vadd.f32 0.0, %v2505
      %v2507 = vpop.f32.mrb[0].mxu0
      %v2508 = vpop.f32.mrb[0].mxu0
      %v2509 = vadd.f32 0.0, %v2508
      %v2510 = vpop.f32.mrb[0].mxu0
      %2511 = vdwg.mxu0
      %v2512 = vadd.f32 %v2306, %v2386
      %v2513 = vadd.f32 %v2307, %v2389
      %v2514 = vadd.f32 %v2308, %v2394
      %v2515 = vadd.f32 %v2309, %v2397
      %v2516 = vadd.f32 %v2310, %v2402
      %v2517 = vadd.f32 %v2311, %v2405
      %v2518 = vadd.f32 %v2312, %v2410
      %v2519 = vadd.f32 %v2313, %v2413
      %v2520 = vadd.f32 %v2314, %v2418
      %v2521 = vadd.f32 %v2315, %v2421
      %v2522 = vadd.f32 %v2316, %v2426
      %v2523 = vadd.f32 %v2317, %v2429
      %v2524 = vadd.f32 %v2318, %v2434
      %v2525 = vadd.f32 %v2319, %v2437
      %v2526 = vadd.f32 %v2320, %v2442
      %v2527 = vadd.f32 %v2321, %v2445
      %v2528 = vadd.f32 %v2322, %v2450
      %v2529 = vadd.f32 %v2323, %v2453
      %v2530 = vadd.f32 %v2324, %v2458
      %v2531 = vadd.f32 %v2325, %v2461
      %v2532 = vadd.f32 %v2326, %v2466
      %v2533 = vadd.f32 %v2327, %v2469
      %v2534 = vadd.f32 %v2328, %v2474
      %v2535 = vadd.f32 %v2329, %v2477
      %v2536 = vadd.f32 %v2330, %v2482
      %v2537 = vadd.f32 %v2331, %v2485
      %v2538 = vadd.f32 %v2332, %v2490
      %v2539 = vadd.f32 %v2333, %v2493
      %v2540 = vadd.f32 %v2334, %v2498
      %v2541 = vadd.f32 %v2335, %v2501
      %v2542 = vadd.f32 %v2336, %v2506
      %v2543 = vadd.f32 %v2337, %v2509
      %v2545 = vshrl.u32 %v320, 16
      %v2547 = vrot.slane %v2545, 4
      %v2548 = vshll.u32 %v320, 16
      %v2550 = vrot.slane %v2548, 5
      %v2551 = vor.u32 %v2547, %v2550
      %v2552 = vrot.slane %v2551, 4
      %v2554 = vshll.u32 %v321, 16
      %v2556 = vrot.slane %v2554, 5
      %v2557 = vsel %vm326, %v2552, %v2556
      %v2558 = vshrl.u32 %v321, 16
      %v2560 = vrot.slane %v2558, 4
      %v2561 = vor.u32 %v2560, %v2556
      %v2562 = vrot.slane %v2561, 4
      %v2564 = vshll.u32 %v322, 16
      %v2566 = vrot.slane %v2564, 5
      %v2567 = vsel %vm326, %v2562, %v2566
      %s2568 = scalar_lea.vmem %s249, 14
      %v2569 = vld [vmem:[%s2568] sm:$0x3]
      %v2570 = vunpack.c.l.b16 %v2557
      %v2571 = vunpack.c.l.b16 %v2567
      %v2572 = vpack.c.b16 %v2571, %v2570
      %v2574 = vsel %vm761, %v2572, 0
      %v2577 = vsel %vm810, %v2569, 0
      %2579 = vmatprep.subr.bf16.mxu0 0
      %2580 = vmatpush1.bf16.msra.mxu0 %v2577
      %2581 = vmatprep.subr.bf16.mxu0 0
      %2582 = vmatpush1.bf16.msra.mxu0 0
      %2583 = vmatprep.subr.bf16.mxu0 0
      %2584 = vmatpush1.bf16.msra.mxu0 0
      %2585 = vmatprep.subr.bf16.mxu0 0
      %2586 = vmatpush1.bf16.msra.mxu0 0
      %2587 = vmatprep.subr.bf16.mxu0 0
      %2588 = vmatpush1.bf16.msra.mxu0 0
      %2589 = vmatprep.subr.bf16.mxu0 0
      %2590 = vmatpush1.bf16.msra.mxu0 0
      %2591 = vmatprep.subr.bf16.mxu0 0
      %2592 = vmatpush1.bf16.msra.mxu0 0
      %2593 = vmatprep.subr.bf16.mxu0 0
      %2594 = vmatpush1.bf16.msra.mxu0 0
      %2595 = vmatprep.subr.bf16.mxu0 0
      %2596 = vmatpush1.bf16.msra.mxu0 0
      %2597 = vmatprep.subr.bf16.mxu0 0
      %2598 = vmatpush1.bf16.msra.mxu0 0
      %2599 = vmatprep.subr.bf16.mxu0 0
      %2600 = vmatpush1.bf16.msra.mxu0 0
      %2601 = vmatprep.subr.bf16.mxu0 0
      %2602 = vmatpush1.bf16.msra.mxu0 0
      %2603 = vmatprep.subr.bf16.mxu0 0
      %2604 = vmatpush1.bf16.msra.mxu0 0
      %2605 = vmatprep.subr.bf16.mxu0 0
      %2606 = vmatpush1.bf16.msra.mxu0 0
      %2607 = vmatprep.subr.bf16.mxu0 0
      %2608 = vmatpush1.bf16.msra.mxu0 0
      %2609 = vmatprep.subr.bf16.mxu0 0
      %2610 = vmatpush1.bf16.msra.mxu0 0
      %2611 = vmatprep.mubr.bf16.mxu0 0
      %2612 = vmatmul.mubr.bf16.gmra.mrb[0].mxu0 %v769
      %v2613 = vpop.f32.mrb[0].mxu0
      %v2614 = vadd.f32 0.0, %v2613
      %v2615 = vpop.f32.mrb[0].mxu0
      %v2616 = vpop.f32.mrb[0].mxu0
      %v2617 = vadd.f32 0.0, %v2616
      %v2618 = vpop.f32.mrb[0].mxu0
      %2619 = vmatprep.mubr.bf16.mxu0 0
      %2620 = vmatmul.mubr.bf16.gmra.mrb[0].mxu0 %v772
      %v2621 = vpop.f32.mrb[0].mxu0
      %v2622 = vadd.f32 0.0, %v2621
      %v2623 = vpop.f32.mrb[0].mxu0
      %v2624 = vpop.f32.mrb[0].mxu0
      %v2625 = vadd.f32 0.0, %v2624
      %v2626 = vpop.f32.mrb[0].mxu0
      %2627 = vmatprep.mubr.bf16.mxu0 0
      %2628 = vmatmul.mubr.bf16.gmra.mrb[0].mxu0 %v775
      %v2629 = vpop.f32.mrb[0].mxu0
      %v2630 = vadd.f32 0.0, %v2629
      %v2631 = vpop.f32.mrb[0].mxu0
      %v2632 = vpop.f32.mrb[0].mxu0
      %v2633 = vadd.f32 0.0, %v2632
      %v2634 = vpop.f32.mrb[0].mxu0
      %2635 = vmatprep.mubr.bf16.mxu0 0
      %2636 = vmatmul.mubr.bf16.gmra.mrb[0].mxu0 %v778
      %v2637 = vpop.f32.mrb[0].mxu0
      %v2638 = vadd.f32 0.0, %v2637
      %v2639 = vpop.f32.mrb[0].mxu0
      %v2640 = vpop.f32.mrb[0].mxu0
      %v2641 = vadd.f32 0.0, %v2640
      %v2642 = vpop.f32.mrb[0].mxu0
      %2643 = vmatprep.mubr.bf16.mxu0 0
      %2644 = vmatmul.mubr.bf16.gmra.mrb[0].mxu0 %v781
      %v2645 = vpop.f32.mrb[0].mxu0
      %v2646 = vadd.f32 0.0, %v2645
      %v2647 = vpop.f32.mrb[0].mxu0
      %v2648 = vpop.f32.mrb[0].mxu0
      %v2649 = vadd.f32 0.0, %v2648
      %v2650 = vpop.f32.mrb[0].mxu0
      %2651 = vmatprep.mubr.bf16.mxu0 0
      %2652 = vmatmul.mubr.bf16.gmra.mrb[0].mxu0 %v784
      %v2653 = vpop.f32.mrb[0].mxu0
      %v2654 = vadd.f32 0.0, %v2653
      %v2655 = vpop.f32.mrb[0].mxu0
      %v2656 = vpop.f32.mrb[0].mxu0
      %v2657 = vadd.f32 0.0, %v2656
      %v2658 = vpop.f32.mrb[0].mxu0
      %2659 = vmatprep.mubr.bf16.mxu0 0
      %2660 = vmatmul.mubr.bf16.gmra.mrb[0].mxu0 %v787
      %v2661 = vpop.f32.mrb[0].mxu0
      %v2662 = vadd.f32 0.0, %v2661
      %v2663 = vpop.f32.mrb[0].mxu0
      %v2664 = vpop.f32.mrb[0].mxu0
      %v2665 = vadd.f32 0.0, %v2664
      %v2666 = vpop.f32.mrb[0].mxu0
      %2667 = vmatprep.mubr.bf16.mxu0 0
      %2668 = vmatmul.mubr.bf16.gmra.mrb[0].mxu0 %v790
      %v2669 = vpop.f32.mrb[0].mxu0
      %v2670 = vadd.f32 0.0, %v2669
      %v2671 = vpop.f32.mrb[0].mxu0
      %v2672 = vpop.f32.mrb[0].mxu0
      %v2673 = vadd.f32 0.0, %v2672
      %v2674 = vpop.f32.mrb[0].mxu0
      %2675 = vmatprep.mubr.bf16.mxu0 0
      %2676 = vmatmul.mubr.bf16.gmra.mrb[0].mxu0 %v793
      %v2677 = vpop.f32.mrb[0].mxu0
      %v2678 = vadd.f32 0.0, %v2677
      %v2679 = vpop.f32.mrb[0].mxu0
      %v2680 = vpop.f32.mrb[0].mxu0
      %v2681 = vadd.f32 0.0, %v2680
      %v2682 = vpop.f32.mrb[0].mxu0
      %2683 = vmatprep.mubr.bf16.mxu0 0
      %2684 = vmatmul.mubr.bf16.gmra.mrb[0].mxu0 %v796
      %v2685 = vpop.f32.mrb[0].mxu0
      %v2686 = vadd.f32 0.0, %v2685
      %v2687 = vpop.f32.mrb[0].mxu0
      %v2688 = vpop.f32.mrb[0].mxu0
      %v2689 = vadd.f32 0.0, %v2688
      %v2690 = vpop.f32.mrb[0].mxu0
      %2691 = vmatprep.mubr.bf16.mxu0 0
      %2692 = vmatmul.mubr.bf16.gmra.mrb[0].mxu0 %v799
      %v2693 = vpop.f32.mrb[0].mxu0
      %v2694 = vadd.f32 0.0, %v2693
      %v2695 = vpop.f32.mrb[0].mxu0
      %v2696 = vpop.f32.mrb[0].mxu0
      %v2697 = vadd.f32 0.0, %v2696
      %v2698 = vpop.f32.mrb[0].mxu0
      %2699 = vmatprep.mubr.bf16.mxu0 0
      %2700 = vmatmul.mubr.bf16.gmra.mrb[0].mxu0 %v802
      %v2701 = vpop.f32.mrb[0].mxu0
      %v2702 = vadd.f32 0.0, %v2701
      %v2703 = vpop.f32.mrb[0].mxu0
      %v2704 = vpop.f32.mrb[0].mxu0
      %v2705 = vadd.f32 0.0, %v2704
      %v2706 = vpop.f32.mrb[0].mxu0
      %2707 = vmatprep.mubr.bf16.mxu0 0
      %2708 = vmatmul.mubr.bf16.gmra.mrb[0].mxu0 %v805
      %v2709 = vpop.f32.mrb[0].mxu0
      %v2710 = vadd.f32 0.0, %v2709
      %v2711 = vpop.f32.mrb[0].mxu0
      %v2712 = vpop.f32.mrb[0].mxu0
      %v2713 = vadd.f32 0.0, %v2712
      %v2714 = vpop.f32.mrb[0].mxu0
      %2715 = vmatprep.mubr.bf16.mxu0 0
      %2716 = vmatmul.mubr.bf16.gmra.mrb[0].mxu0 %v808
      %v2717 = vpop.f32.mrb[0].mxu0
      %v2718 = vadd.f32 0.0, %v2717
      %v2719 = vpop.f32.mrb[0].mxu0
      %v2720 = vpop.f32.mrb[0].mxu0
      %v2721 = vadd.f32 0.0, %v2720
      %v2722 = vpop.f32.mrb[0].mxu0
      %2723 = vmatprep.mubr.bf16.mxu0 0
      %2724 = vmatmul.mubr.bf16.gmra.mrb[0].mxu0 %v1928
      %v2725 = vpop.f32.mrb[0].mxu0
      %v2726 = vadd.f32 0.0, %v2725
      %v2727 = vpop.f32.mrb[0].mxu0
      %v2728 = vpop.f32.mrb[0].mxu0
      %v2729 = vadd.f32 0.0, %v2728
      %v2730 = vpop.f32.mrb[0].mxu0
      %2731 = vmatprep.mubr.bf16.mxu0 0
      %2732 = vmatmul.mubr.bf16.gmra.mrb[0].mxu0 %v2574
      %v2733 = vpop.f32.mrb[0].mxu0
      %v2734 = vadd.f32 0.0, %v2733
      %v2735 = vpop.f32.mrb[0].mxu0
      %v2736 = vpop.f32.mrb[0].mxu0
      %v2737 = vadd.f32 0.0, %v2736
      %v2738 = vpop.f32.mrb[0].mxu0
      %2739 = vdwg.mxu0
      %v2740 = vadd.f32 %v2512, %v2614
      %v2741 = vadd.f32 %v2513, %v2617
      %v2742 = vadd.f32 %v2514, %v2622
      %v2743 = vadd.f32 %v2515, %v2625
      %v2744 = vadd.f32 %v2516, %v2630
      %v2745 = vadd.f32 %v2517, %v2633
      %v2746 = vadd.f32 %v2518, %v2638
      %v2747 = vadd.f32 %v2519, %v2641
      %v2748 = vadd.f32 %v2520, %v2646
      %v2749 = vadd.f32 %v2521, %v2649
      %v2750 = vadd.f32 %v2522, %v2654
      %v2751 = vadd.f32 %v2523, %v2657
      %v2752 = vadd.f32 %v2524, %v2662
      %v2753 = vadd.f32 %v2525, %v2665
      %v2754 = vadd.f32 %v2526, %v2670
      %v2755 = vadd.f32 %v2527, %v2673
      %v2756 = vadd.f32 %v2528, %v2678
      %v2757 = vadd.f32 %v2529, %v2681
      %v2758 = vadd.f32 %v2530, %v2686
      %v2759 = vadd.f32 %v2531, %v2689
      %v2760 = vadd.f32 %v2532, %v2694
      %v2761 = vadd.f32 %v2533, %v2697
      %v2762 = vadd.f32 %v2534, %v2702
      %v2763 = vadd.f32 %v2535, %v2705
      %v2764 = vadd.f32 %v2536, %v2710
      %v2765 = vadd.f32 %v2537, %v2713
      %v2766 = vadd.f32 %v2538, %v2718
      %v2767 = vadd.f32 %v2539, %v2721
      %v2768 = vadd.f32 %v2540, %v2726
      %v2769 = vadd.f32 %v2541, %v2729
      %v2770 = vadd.f32 %v2542, %v2734
      %v2771 = vadd.f32 %v2543, %v2737
      %v2773 = vrot.slane %v320, 5
      %v2774 = vrot.slane %v2773, 4
      %v2775 = vrot.slane %v321, 5
      %v2776 = vsel %vm1285, %v2774, %v2775
      %v2777 = vrot.slane %v2775, 4
      %v2778 = vrot.slane %v322, 5
      %v2779 = vsel %vm1285, %v2777, %v2778
      %s2780 = scalar_lea.vmem %s249, 16
      %v2781 = vld [vmem:[%s2780] sm:$0x3]
      %v2782 = vunpack.c.l.b16 %v2776
      %v2783 = vunpack.c.l.b16 %v2779
      %v2784 = vpack.c.b16 %v2783, %v2782
      %v2786 = vsel %vm761, %v2784, 0
      %v2789 = vsel %vm810, %v2781, 0
      %2791 = vmatprep.subr.bf16.mxu0 0
      %2792 = vmatpush1.bf16.msra.mxu0 %v2789
      %2793 = vmatprep.subr.bf16.mxu0 0
      %2794 = vmatpush1.bf16.msra.mxu0 0
      %2795 = vmatprep.subr.bf16.mxu0 0
      %2796 = vmatpush1.bf16.msra.mxu0 0
      %2797 = vmatprep.subr.bf16.mxu0 0
      %2798 = vmatpush1.bf16.msra.mxu0 0
      %2799 = vmatprep.subr.bf16.mxu0 0
      %2800 = vmatpush1.bf16.msra.mxu0 0
      %2801 = vmatprep.subr.bf16.mxu0 0
      %2802 = vmatpush1.bf16.msra.mxu0 0
      %2803 = vmatprep.subr.bf16.mxu0 0
      %2804 = vmatpush1.bf16.msra.mxu0 0
      %2805 = vmatprep.subr.bf16.mxu0 0
      %2806 = vmatpush1.bf16.msra.mxu0 0
      %2807 = vmatprep.subr.bf16.mxu0 0
      %2808 = vmatpush1.bf16.msra.mxu0 0
      %2809 = vmatprep.subr.bf16.mxu0 0
      %2810 = vmatpush1.bf16.msra.mxu0 0
      %2811 = vmatprep.subr.bf16.mxu0 0
      %2812 = vmatpush1.bf16.msra.mxu0 0
      %2813 = vmatprep.subr.bf16.mxu0 0
      %2814 = vmatpush1.bf16.msra.mxu0 0
      %2815 = vmatprep.subr.bf16.mxu0 0
      %2816 = vmatpush1.bf16.msra.mxu0 0
      %2817 = vmatprep.subr.bf16.mxu0 0
      %2818 = vmatpush1.bf16.msra.mxu0 0
      %2819 = vmatprep.subr.bf16.mxu0 0
      %2820 = vmatpush1.bf16.msra.mxu0 0
      %2821 = vmatprep.subr.bf16.mxu0 0
      %2822 = vmatpush1.bf16.msra.mxu0 0
      %2823 = vmatprep.mubr.bf16.mxu0 0
      %2824 = vmatmul.mubr.bf16.gmra.mrb[0].mxu0 %v1455
      %v2825 = vpop.f32.mrb[0].mxu0
      %v2826 = vadd.f32 0.0, %v2825
      %v2827 = vpop.f32.mrb[0].mxu0
      %v2828 = vpop.f32.mrb[0].mxu0
      %v2829 = vadd.f32 0.0, %v2828
      %v2830 = vpop.f32.mrb[0].mxu0
      %2831 = vmatprep.mubr.bf16.mxu0 0
      %2832 = vmatmul.mubr.bf16.gmra.mrb[0].mxu0 %v1458
      %v2833 = vpop.f32.mrb[0].mxu0
      %v2834 = vadd.f32 0.0, %v2833
      %v2835 = vpop.f32.mrb[0].mxu0
      %v2836 = vpop.f32.mrb[0].mxu0
      %v2837 = vadd.f32 0.0, %v2836
      %v2838 = vpop.f32.mrb[0].mxu0
      %2839 = vmatprep.mubr.bf16.mxu0 0
      %2840 = vmatmul.mubr.bf16.gmra.mrb[0].mxu0 %v1461
      %v2841 = vpop.f32.mrb[0].mxu0
      %v2842 = vadd.f32 0.0, %v2841
      %v2843 = vpop.f32.mrb[0].mxu0
      %v2844 = vpop.f32.mrb[0].mxu0
      %v2845 = vadd.f32 0.0, %v2844
      %v2846 = vpop.f32.mrb[0].mxu0
      %2847 = vmatprep.mubr.bf16.mxu0 0
      %2848 = vmatmul.mubr.bf16.gmra.mrb[0].mxu0 %v1464
      %v2849 = vpop.f32.mrb[0].mxu0
      %v2850 = vadd.f32 0.0, %v2849
      %v2851 = vpop.f32.mrb[0].mxu0
      %v2852 = vpop.f32.mrb[0].mxu0
      %v2853 = vadd.f32 0.0, %v2852
      %v2854 = vpop.f32.mrb[0].mxu0
      %2855 = vmatprep.mubr.bf16.mxu0 0
      %2856 = vmatmul.mubr.bf16.gmra.mrb[0].mxu0 %v1467
      %v2857 = vpop.f32.mrb[0].mxu0
      %v2858 = vadd.f32 0.0, %v2857
      %v2859 = vpop.f32.mrb[0].mxu0
      %v2860 = vpop.f32.mrb[0].mxu0
      %v2861 = vadd.f32 0.0, %v2860
      %v2862 = vpop.f32.mrb[0].mxu0
      %2863 = vmatprep.mubr.bf16.mxu0 0
      %2864 = vmatmul.mubr.bf16.gmra.mrb[0].mxu0 %v1470
      %v2865 = vpop.f32.mrb[0].mxu0
      %v2866 = vadd.f32 0.0, %v2865
      %v2867 = vpop.f32.mrb[0].mxu0
      %v2868 = vpop.f32.mrb[0].mxu0
      %v2869 = vadd.f32 0.0, %v2868
      %v2870 = vpop.f32.mrb[0].mxu0
      %2871 = vmatprep.mubr.bf16.mxu0 0
      %2872 = vmatmul.mubr.bf16.gmra.mrb[0].mxu0 %v1473
      %v2873 = vpop.f32.mrb[0].mxu0
      %v2874 = vadd.f32 0.0, %v2873
      %v2875 = vpop.f32.mrb[0].mxu0
      %v2876 = vpop.f32.mrb[0].mxu0
      %v2877 = vadd.f32 0.0, %v2876
      %v2878 = vpop.f32.mrb[0].mxu0
      %2879 = vmatprep.mubr.bf16.mxu0 0
      %2880 = vmatmul.mubr.bf16.gmra.mrb[0].mxu0 %v1476
      %v2881 = vpop.f32.mrb[0].mxu0
      %v2882 = vadd.f32 0.0, %v2881
      %v2883 = vpop.f32.mrb[0].mxu0
      %v2884 = vpop.f32.mrb[0].mxu0
      %v2885 = vadd.f32 0.0, %v2884
      %v2886 = vpop.f32.mrb[0].mxu0
      %2887 = vmatprep.mubr.bf16.mxu0 0
      %2888 = vmatmul.mubr.bf16.gmra.mrb[0].mxu0 %v1479
      %v2889 = vpop.f32.mrb[0].mxu0
      %v2890 = vadd.f32 0.0, %v2889
      %v2891 = vpop.f32.mrb[0].mxu0
      %v2892 = vpop.f32.mrb[0].mxu0
      %v2893 = vadd.f32 0.0, %v2892
      %v2894 = vpop.f32.mrb[0].mxu0
      %2895 = vmatprep.mubr.bf16.mxu0 0
      %2896 = vmatmul.mubr.bf16.gmra.mrb[0].mxu0 %v1482
      %v2897 = vpop.f32.mrb[0].mxu0
      %v2898 = vadd.f32 0.0, %v2897
      %v2899 = vpop.f32.mrb[0].mxu0
      %v2900 = vpop.f32.mrb[0].mxu0
      %v2901 = vadd.f32 0.0, %v2900
      %v2902 = vpop.f32.mrb[0].mxu0
      %2903 = vmatprep.mubr.bf16.mxu0 0
      %2904 = vmatmul.mubr.bf16.gmra.mrb[0].mxu0 %v1485
      %v2905 = vpop.f32.mrb[0].mxu0
      %v2906 = vadd.f32 0.0, %v2905
      %v2907 = vpop.f32.mrb[0].mxu0
      %v2908 = vpop.f32.mrb[0].mxu0
      %v2909 = vadd.f32 0.0, %v2908
      %v2910 = vpop.f32.mrb[0].mxu0
      %2911 = vmatprep.mubr.bf16.mxu0 0
      %2912 = vmatmul.mubr.bf16.gmra.mrb[0].mxu0 %v1488
      %v2913 = vpop.f32.mrb[0].mxu0
      %v2914 = vadd.f32 0.0, %v2913
      %v2915 = vpop.f32.mrb[0].mxu0
      %v2916 = vpop.f32.mrb[0].mxu0
      %v2917 = vadd.f32 0.0, %v2916
      %v2918 = vpop.f32.mrb[0].mxu0
      %2919 = vmatprep.mubr.bf16.mxu0 0
      %2920 = vmatmul.mubr.bf16.gmra.mrb[0].mxu0 %v1491
      %v2921 = vpop.f32.mrb[0].mxu0
      %v2922 = vadd.f32 0.0, %v2921
      %v2923 = vpop.f32.mrb[0].mxu0
      %v2924 = vpop.f32.mrb[0].mxu0
      %v2925 = vadd.f32 0.0, %v2924
      %v2926 = vpop.f32.mrb[0].mxu0
      %2927 = vmatprep.mubr.bf16.mxu0 0
      %2928 = vmatmul.mubr.bf16.gmra.mrb[0].mxu0 %v1494
      %v2929 = vpop.f32.mrb[0].mxu0
      %v2930 = vadd.f32 0.0, %v2929
      %v2931 = vpop.f32.mrb[0].mxu0
      %v2932 = vpop.f32.mrb[0].mxu0
      %v2933 = vadd.f32 0.0, %v2932
      %v2934 = vpop.f32.mrb[0].mxu0
      %2935 = vmatprep.mubr.bf16.mxu0 0
      %2936 = vmatmul.mubr.bf16.gmra.mrb[0].mxu0 %v2140
      %v2937 = vpop.f32.mrb[0].mxu0
      %v2938 = vadd.f32 0.0, %v2937
      %v2939 = vpop.f32.mrb[0].mxu0
      %v2940 = vpop.f32.mrb[0].mxu0
      %v2941 = vadd.f32 0.0, %v2940
      %v2942 = vpop.f32.mrb[0].mxu0
      %2943 = vmatprep.mubr.bf16.mxu0 0
      %2944 = vmatmul.mubr.bf16.gmra.mrb[0].mxu0 %v2786
      %v2945 = vpop.f32.mrb[0].mxu0
      %v2946 = vadd.f32 0.0, %v2945
      %v2947 = vpop.f32.mrb[0].mxu0
      %v2948 = vpop.f32.mrb[0].mxu0
      %v2949 = vadd.f32 0.0, %v2948
      %v2950 = vpop.f32.mrb[0].mxu0
      %2951 = vdwg.mxu0
      %v2952 = vadd.f32 %v2740, %v2826
      %v2953 = vadd.f32 %v2741, %v2829
      %v2954 = vadd.f32 %v2742, %v2834
      %v2955 = vadd.f32 %v2743, %v2837
      %v2956 = vadd.f32 %v2744, %v2842
      %v2957 = vadd.f32 %v2745, %v2845
      %v2958 = vadd.f32 %v2746, %v2850
      %v2959 = vadd.f32 %v2747, %v2853
      %v2960 = vadd.f32 %v2748, %v2858
      %v2961 = vadd.f32 %v2749, %v2861
      %v2962 = vadd.f32 %v2750, %v2866
      %v2963 = vadd.f32 %v2751, %v2869
      %v2964 = vadd.f32 %v2752, %v2874
      %v2965 = vadd.f32 %v2753, %v2877
      %v2966 = vadd.f32 %v2754, %v2882
      %v2967 = vadd.f32 %v2755, %v2885
      %v2968 = vadd.f32 %v2756, %v2890
      %v2969 = vadd.f32 %v2757, %v2893
      %v2970 = vadd.f32 %v2758, %v2898
      %v2971 = vadd.f32 %v2759, %v2901
      %v2972 = vadd.f32 %v2760, %v2906
      %v2973 = vadd.f32 %v2761, %v2909
      %v2974 = vadd.f32 %v2762, %v2914
      %v2975 = vadd.f32 %v2763, %v2917
      %v2976 = vadd.f32 %v2764, %v2922
      %v2977 = vadd.f32 %v2765, %v2925
      %v2978 = vadd.f32 %v2766, %v2930
      %v2979 = vadd.f32 %v2767, %v2933
      %v2980 = vadd.f32 %v2768, %v2938
      %v2981 = vadd.f32 %v2769, %v2941
      %v2982 = vadd.f32 %v2770, %v2946
      %v2983 = vadd.f32 %v2771, %v2949
      %v2984 = vld [vmem:[%s252] sm:$0x1]
      %v2986 = vlaneseq
      %v2987 = vshrl.u32 %v2986, 7
      %v2988 = vsub.s32 0, %v2987
      %v2989 = vrot.slane %v2984, %v2988
      %v2991 = vadd.f32 %v2952, %v2989
      %v2992 = vadd.f32 %v2953, %v2989
      %v2993 = vadd.f32 %v2954, %v2989
      %v2994 = vadd.f32 %v2955, %v2989
      %v2995 = vadd.f32 %v2956, %v2989
      %v2996 = vadd.f32 %v2957, %v2989
      %v2997 = vadd.f32 %v2958, %v2989
      %v2998 = vadd.f32 %v2959, %v2989
      %v2999 = vadd.f32 %v2960, %v2989
      %v3000 = vadd.f32 %v2961, %v2989
      %v3001 = vadd.f32 %v2962, %v2989
      %v3002 = vadd.f32 %v2963, %v2989
      %v3003 = vadd.f32 %v2964, %v2989
      %v3004 = vadd.f32 %v2965, %v2989
      %v3005 = vadd.f32 %v2966, %v2989
      %v3006 = vadd.f32 %v2967, %v2989
      %v3007 = vadd.f32 %v2968, %v2989
      %v3008 = vadd.f32 %v2969, %v2989
      %v3009 = vadd.f32 %v2970, %v2989
      %v3010 = vadd.f32 %v2971, %v2989
      %v3011 = vadd.f32 %v2972, %v2989
      %v3012 = vadd.f32 %v2973, %v2989
      %v3013 = vadd.f32 %v2974, %v2989
      %v3014 = vadd.f32 %v2975, %v2989
      %v3015 = vadd.f32 %v2976, %v2989
      %v3016 = vadd.f32 %v2977, %v2989
      %v3017 = vadd.f32 %v2978, %v2989
      %v3018 = vadd.f32 %v2979, %v2989
      %v3019 = vadd.f32 %v2980, %v2989
      %v3020 = vadd.f32 %v2981, %v2989
      %v3021 = vadd.f32 %v2982, %v2989
      %v3022 = vadd.f32 %v2983, %v2989
      %3023 = vst [vmem:[%s260] sm:$0xff] %v2991
      %3024 = vst [vmem:[%s260 + $0x8] sm:$0xff] %v2992
      %3025 = vst [vmem:[%s260 + $0x10] sm:$0xff] %v2993
      %3026 = vst [vmem:[%s260 + $0x18] sm:$0xff] %v2994
      %3027 = vst [vmem:[%s260 + $0x20] sm:$0xff] %v2995
      %3028 = vst [vmem:[%s260 + $0x28] sm:$0xff] %v2996
      %3029 = vst [vmem:[%s260 + $0x30] sm:$0xff] %v2997
      %3030 = vst [vmem:[%s260 + $0x38] sm:$0xff] %v2998
      %3031 = vst [vmem:[%s260 + $0x40] sm:$0xff] %v2999
      %3032 = vst [vmem:[%s260 + $0x48] sm:$0xff] %v3000
      %3033 = vst [vmem:[%s260 + $0x50] sm:$0xff] %v3001
      %3034 = vst [vmem:[%s260 + $0x58] sm:$0xff] %v3002
      %3035 = vst [vmem:[%s260 + $0x60] sm:$0xff] %v3003
      %3036 = vst [vmem:[%s260 + $0x68] sm:$0xff] %v3004
      %3037 = vst [vmem:[%s260 + $0x70] sm:$0xff] %v3005
      %3038 = vst [vmem:[%s260 + $0x78] sm:$0xff] %v3006
      %3039 = vst [vmem:[%s260 + $0x80] sm:$0xff] %v3007
      %3040 = vst [vmem:[%s260 + $0x88] sm:$0xff] %v3008
      %3041 = vst [vmem:[%s260 + $0x90] sm:$0xff] %v3009
      %3042 = vst [vmem:[%s260 + $0x98] sm:$0xff] %v3010
      %3043 = vst [vmem:[%s260 + $0xa0] sm:$0xff] %v3011
      %3044 = vst [vmem:[%s260 + $0xa8] sm:$0xff] %v3012
      %3045 = vst [vmem:[%s260 + $0xb0] sm:$0xff] %v3013
      %3046 = vst [vmem:[%s260 + $0xb8] sm:$0xff] %v3014
      %3047 = vst [vmem:[%s260 + $0xc0] sm:$0xff] %v3015
      %3048 = vst [vmem:[%s260 + $0xc8] sm:$0xff] %v3016
      %3049 = vst [vmem:[%s260 + $0xd0] sm:$0xff] %v3017
      %3050 = vst [vmem:[%s260 + $0xd8] sm:$0xff] %v3018
      %3051 = vst [vmem:[%s260 + $0xe0] sm:$0xff] %v3019
      %3052 = vst [vmem:[%s260 + $0xe8] sm:$0xff] %v3020
      %3053 = vst [vmem:[%s260 + $0xf0] sm:$0xff] %v3021
      %3054 = vst [vmem:[%s260 + $0xf8] sm:$0xff] %v3022
      %v3055 = vadd.f32 %v2991, %v2992
      %v3056 = vadd.f32 %v3055, %v2993
      %v3057 = vadd.f32 %v3056, %v2994
      %v3058 = vadd.f32 %v3057, %v2995
      %v3059 = vadd.f32 %v3058, %v2996
      %v3060 = vadd.f32 %v3059, %v2997
      %v3061 = vadd.f32 %v3060, %v2998
      %v3062 = vadd.f32 %v3061, %v2999
      %v3063 = vadd.f32 %v3062, %v3000
      %v3064 = vadd.f32 %v3063, %v3001
      %v3065 = vadd.f32 %v3064, %v3002
      %v3066 = vadd.f32 %v3065, %v3003
      %v3067 = vadd.f32 %v3066, %v3004
      %v3068 = vadd.f32 %v3067, %v3005
      %v3069 = vadd.f32 %v3068, %v3006
      %v3070 = vadd.f32 %v3069, %v3007
      %v3071 = vadd.f32 %v3070, %v3008
      %v3072 = vadd.f32 %v3071, %v3009
      %v3073 = vadd.f32 %v3072, %v3010
      %v3074 = vadd.f32 %v3073, %v3011
      %v3075 = vadd.f32 %v3074, %v3012
      %v3076 = vadd.f32 %v3075, %v3013
      %v3077 = vadd.f32 %v3076, %v3014
      %v3078 = vadd.f32 %v3077, %v3015
      %v3079 = vadd.f32 %v3078, %v3016
      %v3080 = vadd.f32 %v3079, %v3017
      %v3081 = vadd.f32 %v3080, %v3018
      %v3082 = vadd.f32 %v3081, %v3019
      %v3083 = vadd.f32 %v3082, %v3020
      %v3084 = vadd.f32 %v3083, %v3021
      %v3085 = vadd.f32 %v3084, %v3022
      %v3086 = vrot.slane %v3085, 4
      %v3087 = vadd.f32 %v3085, %v3086
      %v3088 = vrot.slane %v3087, 2
      %v3089 = vadd.f32 %v3087, %v3088
      %v3090 = vrot.slane %v3089, 1
      %v3091 = vadd.f32 %v3089, %v3090
      %3092 = vst [vmem:[%s267] sm:$0x1] %v3091
      %v3093 = vmul.f32 %v2991, %v2991
      %v3094 = vmul.f32 %v2992, %v2992
      %v3095 = vmul.f32 %v2993, %v2993
      %v3096 = vmul.f32 %v2994, %v2994
      %v3097 = vmul.f32 %v2995, %v2995
      %v3098 = vmul.f32 %v2996, %v2996
      %v3099 = vmul.f32 %v2997, %v2997
      %v3100 = vmul.f32 %v2998, %v2998
      %v3101 = vmul.f32 %v2999, %v2999
      %v3102 = vmul.f32 %v3000, %v3000
      %v3103 = vmul.f32 %v3001, %v3001
      %v3104 = vmul.f32 %v3002, %v3002
      %v3105 = vmul.f32 %v3003, %v3003
      %v3106 = vmul.f32 %v3004, %v3004
      %v3107 = vmul.f32 %v3005, %v3005
      %v3108 = vmul.f32 %v3006, %v3006
      %v3109 = vmul.f32 %v3007, %v3007
      %v3110 = vmul.f32 %v3008, %v3008
      %v3111 = vmul.f32 %v3009, %v3009
      %v3112 = vmul.f32 %v3010, %v3010
      %v3113 = vmul.f32 %v3011, %v3011
      %v3114 = vmul.f32 %v3012, %v3012
      %v3115 = vmul.f32 %v3013, %v3013
      %v3116 = vmul.f32 %v3014, %v3014
      %v3117 = vmul.f32 %v3015, %v3015
      %v3118 = vmul.f32 %v3016, %v3016
      %v3119 = vmul.f32 %v3017, %v3017
      %v3120 = vmul.f32 %v3018, %v3018
      %v3121 = vmul.f32 %v3019, %v3019
      %v3122 = vmul.f32 %v3020, %v3020
      %v3123 = vmul.f32 %v3021, %v3021
      %v3124 = vmul.f32 %v3022, %v3022
      %v3125 = vadd.f32 %v3093, %v3094
      %v3126 = vadd.f32 %v3125, %v3095
      %v3127 = vadd.f32 %v3126, %v3096
      %v3128 = vadd.f32 %v3127, %v3097
      %v3129 = vadd.f32 %v3128, %v3098
      %v3130 = vadd.f32 %v3129, %v3099
      %v3131 = vadd.f32 %v3130, %v3100
      %v3132 = vadd.f32 %v3131, %v3101
      %v3133 = vadd.f32 %v3132, %v3102
      %v3134 = vadd.f32 %v3133, %v3103
      %v3135 = vadd.f32 %v3134, %v3104
      %v3136 = vadd.f32 %v3135, %v3105
      %v3137 = vadd.f32 %v3136, %v3106
      %v3138 = vadd.f32 %v3137, %v3107
      %v3139 = vadd.f32 %v3138, %v3108
      %v3140 = vadd.f32 %v3139, %v3109
      %v3141 = vadd.f32 %v3140, %v3110
      %v3142 = vadd.f32 %v3141, %v3111
      %v3143 = vadd.f32 %v3142, %v3112
      %v3144 = vadd.f32 %v3143, %v3113
      %v3145 = vadd.f32 %v3144, %v3114
      %v3146 = vadd.f32 %v3145, %v3115
      %v3147 = vadd.f32 %v3146, %v3116
      %v3148 = vadd.f32 %v3147, %v3117
      %v3149 = vadd.f32 %v3148, %v3118
      %v3150 = vadd.f32 %v3149, %v3119
      %v3151 = vadd.f32 %v3150, %v3120
      %v3152 = vadd.f32 %v3151, %v3121
      %v3153 = vadd.f32 %v3152, %v3122
      %v3154 = vadd.f32 %v3153, %v3123
      %v3155 = vadd.f32 %v3154, %v3124
      %v3156 = vrot.slane %v3155, 4
      %v3157 = vadd.f32 %v3155, %v3156
      %v3158 = vrot.slane %v3157, 2
      %v3159 = vadd.f32 %v3157, %v3158
      %v3160 = vrot.slane %v3159, 1
      %v3161 = vadd.f32 %v3159, %v3160
      %3162 = vst [vmem:[%s267 + $0x1] sm:$0x1] %v3161
      %p3163 = scmp.lt.s32.totalorder %s21, 1
      %s3164 = scalar_select %p3163, %s21, 1
      %p3165 = scmp.lt.s32.totalorder %s20, 0
      %s3166 = scalar_select %p3165, %s20, 0
      %s3167 = smul.addr %s3164, 32
      %s3168 = sadd.s32 %s3166, %s3167
      %s3169 = smul.addr %s3168, 8
      %s3170 = scalar_lea.vmem %s3, %s3169
      %p3171 = scmp.lt.s32.totalorder %s21, 1
      %s3172 = scalar_select %p3171, %s21, 1
      %p3173 = scmp.lt.s32.totalorder %s20, 0
      %s3174 = scalar_select %p3173, %s20, 0
      %s3175 = sadd.s32 %s3174, %s3172
      %s3176 = smul.addr %s3175, 2
      %s3177 = scalar_lea.vmem %s4, %s3176
      // Predicated region
      $region33: #{up_conv_forward.2} parent=31 // pred_check
        %p3178 = pneg %p126
      $region34: #{up_conv_forward.2} parent=31 // pred_check_branch
        %3180 = sbr.rel (%p3178) target = $region36
      $region35: #{up_conv_forward.2} parent=31 // pred_region
        _
      $region36: #{up_conv_forward.2} parent=31 // pred_fallthru
        _
      // Predicated region
      $region37: #{up_conv_forward.2} parent=31 // pred_check
        %p3181 = pneg %p154
      $region38: #{up_conv_forward.2} parent=31 // pred_check_branch
        %3183 = sbr.rel (%p3181) target = $region40
      $region39: #{up_conv_forward.2} parent=31 // pred_region
        _
      $region40: #{up_conv_forward.2} parent=31 // pred_fallthru
        _
    $region32: #{up_conv_forward.2} parent=5 // pred_fallthru
      _
    %p3184 = scmp.le.s32.totalorder 2, %s11
    // Predicated region
    $region41: #{up_conv_forward.2} parent=5 // pred_check
      %p3185 = pneg %p3184
    $region42: #{up_conv_forward.2} parent=5 // pred_check_branch
      %3187 = sbr.rel (%p3185) target = $region44
    $region43: #{up_conv_forward.2} parent=5 // pred_region
      %s3188 = ssub.s32 %s11, 2
      // Predicated region
      $region45: #{up_conv_forward.2} parent=43 // pred_check
        %p3189 = pneg %p132
      $region46: #{up_conv_forward.2} parent=43 // pred_check_branch
        %3191 = sbr.rel (%p3189) target = $region48
      $region47: #{up_conv_forward.2} parent=43 // pred_region
        %p3192 = scmp.lt.s32.totalorder %s23, 1
        %s3193 = scalar_select %p3192, %s23, 1
        %p3194 = scmp.lt.s32.totalorder %s22, 0
        %s3195 = scalar_select %p3194, %s22, 0
        %s3196 = smul.addr %s3193, 32
        %s3197 = sadd.s32 %s3195, %s3196
        %s3198 = smul.addr %s3197, 8
        %s3199 = scalar_lea.vmem %s3, %s3198
      $region48: #{up_conv_forward.2} parent=43 // pred_fallthru
        _
      // Predicated region
      $region49: #{up_conv_forward.2} parent=43 // pred_check
        %p3200 = pneg %p160
      $region50: #{up_conv_forward.2} parent=43 // pred_check_branch
        %3202 = sbr.rel (%p3200) target = $region52
      $region51: #{up_conv_forward.2} parent=43 // pred_region
        %p3203 = scmp.lt.s32.totalorder %s23, 1
        %s3204 = scalar_select %p3203, %s23, 1
        %p3205 = scmp.lt.s32.totalorder %s22, 0
        %s3206 = scalar_select %p3205, %s22, 0
        %s3207 = sadd.s32 %s3206, %s3204
        %s3208 = smul.addr %s3207, 2
        %s3209 = scalar_lea.vmem %s4, %s3208
      $region52: #{up_conv_forward.2} parent=43 // pred_fallthru
        _
    $region44: #{up_conv_forward.2} parent=5 // pred_fallthru
      _
  $region6: #{up_conv_forward.2} parent=0 // loop_footer
    %s15 = sadd.s32 1, %s11
  $region7: #{up_conv_forward.2} parent=0 // loop_footer_branch
    %10 = sbr.rel target = $region3
  $region8: #{up_conv_forward.2} parent=0 // loop_exit
    _

</llo_original>
